<compile_context>
chip_gen: v6e
topology: v6e:2x2x1
jax: 0.10.0
libtpu: 0.0.40
codegen_flags: <defaults>
</compile_context>

<pallas_src>
import jax
import jax.numpy as jnp
from jax.experimental import pallas as pl
from jax.experimental.pallas import tpu as pltpu


def _round_up(x, m):
    return (x + m - 1) // m * m


def _largest_divisor_leq(n, cap):
    cap = max(1, min(cap, n))
    for d in range(cap, 0, -1):
        if n % d == 0:
            return d
    return 1


def _lstm_seq_kernel(xw_ref, h0_ref, c0_ref, w_hh_ref, out_ref, c_ref, h_scr):
    """Runs T_INNER timesteps of the recurrence for one batch block.

    xw_ref : [T_INNER, block_b, H_pad] f32  -- precomputed x@W_ih + b_ih + b_hh
    h0_ref : [block_b, H_pad] bf16          -- initial hidden state
    c0_ref : [block_b, H_pad] f32           -- initial cell state
    w_hh_ref: [H_pad, H_pad] bf16           -- recurrent weights (VMEM-resident)
    out_ref: [T_INNER, block_b, H_pad] bf16 -- per-step hidden output
    c_ref  : [block_b, H_pad] f32           -- resident output block; IS the c carry
    h_scr  : [block_b, H_pad] bf16 scratch  -- h carry (matmul dtype)
    """
    tc = pl.program_id(1)

    # Initialize the carries once per batch block. Time is the innermost
    # ("arbitrary") grid axis, so the resident c output block and h scratch
    # persist across all time chunks of this batch block.
    @pl.when(tc == 0)
    def _():
        h_scr[...] = h0_ref[...]
        c_ref[...] = c0_ref[...]

    t_inner = xw_ref.shape[0]
    for s in range(t_inner):        # static unroll; t_inner is small (<= 8)
        # Shared pre-activation for all four "gates" (the module reuses the same
        # two Linear layers). The input projection + bias were hoisted into xw.
        gate = xw_ref[s] + jnp.dot(h_scr[...], w_hh_ref[...],
                                   preferred_element_type=jnp.float32)
        # Clip keeps exp(-gate)^2 finite for extreme inputs; sigmoid/tanh are
        # fully saturated far before +/-20 so this is numerically a no-op.
        gate = jnp.clip(gate, -20.0, 20.0)

        # 2 native EUP transcendentals (exp, tanh) per element instead of 3:
        #   sigmoid(g) = 1/(1+e),  tanh(g) = (1-e^2)/(1+e^2),  e = exp(-g)
        e = jnp.exp(-gate)
        sig = pl.reciprocal(1.0 + e, approx=True)                    # i = f = o
        e2 = e * e
        tanh_g = (1.0 - e2) * pl.reciprocal(1.0 + e2, approx=True)   # cell gate

        # c*sig + sig*tanh == sig*(c + tanh)   (one fewer VPU multiply)
        c_new = sig * (c_ref[...] + tanh_g)
        out = sig * jnp.tanh(c_new)

        h_scr[...] = out.astype(h_scr.dtype)     # bf16 carry, fed straight to MXU
        c_ref[...] = c_new                       # resident f32 carry == final c output
        out_ref[s] = out.astype(out_ref.dtype)


def lstm_sequence(xs, h0, c0, w_ih, b_ih, w_hh, b_hh,
                  *, matmul_dtype=jnp.bfloat16, block_b=None, t_inner=None):
    """Run the LSTM cell over a sequence in ONE pallas_call.

    xs: [T, B, I]; h0, c0: [B, H]; w_ih: [I, H]; w_hh: [H, H]; biases: [H].
    Returns (out_seq [T, B, H] in matmul_dtype, c_final [B, H] f32);
    out_seq[-1] is the final h.
    """
    T, B, I = xs.shape
    H = w_ih.shape[1]
    f32 = jnp.float32

    # ---- Hoisted input projection: one large MXU-efficient matmul (not T tiny ones).
    xw = jnp.dot(xs.reshape(T * B, I).astype(matmul_dtype),
                 w_ih.astype(matmul_dtype),
                 preferred_element_type=f32)
    xw = (xw + (b_ih + b_hh).astype(f32)).reshape(T, B, H)

    # ---- Lane-dense hidden dim + batch blocking.
    # Zero padding is exact for this cell: padded xw / h0 / c0 / W_hh entries are 0,
    # so padded gate entries are 0 and padded batch rows / hidden cols stay 0 forever.
    H_pad = _round_up(H, 128)
    if block_b is None:
        if B <= 256:
            block_b = 128    # fill the MXU M dim; nb >= 2 when B > 128 (v7x megacore)
        else:
            block_b = 256    # fill the 256-wide v6e/v7x MXU; nb >= 2 still holds
    B_pad = _round_up(B, block_b)
    nb = B_pad // block_b

    # ---- Timestep folding: T_INNER steps per grid iteration amortizes per-step
    # pipeline overhead. (For prime T this falls back to 1 step per grid iter.)
    t_inner = _largest_divisor_leq(T, 8 if t_inner is None else t_inner)
    n_tc = T // t_inner

    xw_p = jnp.pad(xw, ((0, 0), (0, B_pad - B), (0, H_pad - H)))
    h0_p = jnp.pad(h0, ((0, B_pad - B), (0, H_pad - H))).astype(matmul_dtype)
    c0_p = jnp.pad(c0, ((0, B_pad - B), (0, H_pad - H))).astype(f32)
    w_hh_p = jnp.pad(w_hh, ((0, H_pad - H), (0, H_pad - H))).astype(matmul_dtype)

    # ---- VMEM budget (streamed xw/out double-buffered, weights, carries) with headroom.
    mm_bytes = jnp.dtype(matmul_dtype).itemsize
    vmem_est = (2 * t_inner * block_b * H_pad * 4              # xw stream (f32)
                + 2 * t_inner * block_b * H_pad * mm_bytes     # out stream
                + 2 * H_pad * H_pad * mm_bytes                 # W_hh
                + 2 * block_b * H_pad * (mm_bytes + 4)         # h0 + c0 blocks
                + block_b * H_pad * (4 + mm_bytes))            # c resident out + h scratch
    vmem_limit = int(min(max(2 * vmem_est, 32 << 20), 64 << 20))

    out_seq, c_final = pl.pallas_call(
        _lstm_seq_kernel,
        out_shape=(jax.ShapeDtypeStruct((T, B_pad, H_pad), matmul_dtype),
                   jax.ShapeDtypeStruct((B_pad, H_pad), f32)),
        grid_spec=pltpu.PrefetchScalarGridSpec(
            num_scalar_prefetch=0,
            # Time MUST stay innermost/"arbitrary": h/c carries live in VMEM across it.
            grid=(nb, n_tc),
            in_specs=[
                pl.BlockSpec((t_inner, block_b, H_pad), lambda b, t: (t, b, 0)),  # xw streamed
                pl.BlockSpec((block_b, H_pad), lambda b, t: (b, 0)),              # h0
                pl.BlockSpec((block_b, H_pad), lambda b, t: (b, 0)),              # c0
                pl.BlockSpec((H_pad, H_pad), lambda b, t: (0, 0)),                # W_hh (VMEM-resident)
            ],
            out_specs=(
                pl.BlockSpec((t_inner, block_b, H_pad), lambda b, t: (t, b, 0)),  # out per chunk
                pl.BlockSpec((block_b, H_pad), lambda b, t: (b, 0)),              # c carry / final c
            ),
            scratch_shapes=[pltpu.VMEM((block_b, H_pad), matmul_dtype)],          # h carry (bf16)
        ),
        compiler_params=pltpu.CompilerParams(
            dimension_semantics=("parallel", "arbitrary"),
            vmem_limit_bytes=vmem_limit),
        # TODO(synk): for production H (>=2048), tile W_hh along the gate output dim,
        # mark its constant-index spec pipeline_mode=pl.Buffered(1) to avoid double
        # buffering, and split the output-N dim across cores when nb == 1 (v7x: 2 TCs,
        # 64 MiB VMEM).
    )(xw_p, h0_p, c0_p, w_hh_p)

    return out_seq[:, :B, :H], c_final[:B, :H]


def lstm_cell(x, h_t, c_t, w_ih, b_ih, w_hh, b_hh, **kw):
    """Single-step forward (same semantics as the PyTorch module's forward)."""
    out_seq, c_final = lstm_sequence(x[None], h_t, c_t, w_ih, b_ih, w_hh, b_hh, **kw)
    return out_seq[0], c_final


# ----------------------------- pure-JAX reference -----------------------------

def reference_step(x, h, c, w_ih, b_ih, w_hh, b_hh):
    gate = x @ w_ih + b_ih + h @ w_hh + b_hh
    sg = jax.nn.sigmoid(gate)
    tg = jnp.tanh(gate)
    c_new = c * sg + sg * tg
    out = sg * jnp.tanh(c_new)
    return out, c_new


def reference_sequence(xs, h, c, *params):
    outs = []
    for t in range(xs.shape[0]):
        h, c = reference_step(xs[t], h, c, *params)
        outs.append(h)
    return jnp.stack(outs), c


if __name__ == "__main__":
    key = jax.random.PRNGKey(0)
    batch, input_size, hidden_size, seq_len = 8, 16, 32, 8

    keys = jax.random.split(key, 7)
    # init_weights_normal: all parameters ~ N(0, 0.02)
    w_ih = 0.02 * jax.random.normal(keys[0], (input_size, hidden_size), jnp.float32)
    b_ih = 0.02 * jax.random.normal(keys[1], (hidden_size,), jnp.float32)
    w_hh = 0.02 * jax.random.normal(keys[2], (hidden_size, hidden_size), jnp.float32)
    b_hh = 0.02 * jax.random.normal(keys[3], (hidden_size,), jnp.float32)

    xs = jax.random.normal(keys[4], (seq_len, batch, input_size), jnp.float32)
    h0 = jax.random.normal(keys[5], (batch, hidden_size), jnp.float32)
    c0 = jax.random.normal(keys[6], (batch, hidden_size), jnp.float32)

    params = (w_ih, b_ih, w_hh, b_hh)

    # Fused multi-step kernel: one pallas_call for the whole sequence.
    run_seq = jax.jit(lstm_sequence)
    out_seq, c_final = run_seq(xs, h0, c0, *params)
    jax.block_until_ready((out_seq, c_final))

    # Single step == the module's forward().
    out1, c1 = lstm_cell(xs[0], h0, c0, *params)
    jax.block_until_ready((out1, c1))

    # References (exact f32 sigmoid/tanh).
    out_seq_ref, c_final_ref = reference_sequence(xs, h0, c0, *params)
    out1_ref, c1_ref = reference_step(xs[0], h0, c0, *params)

    # bf16 matmul inputs, bf16 h carry/out and approx reciprocals -> loosened tol.
    tol = dict(atol=2e-2, rtol=2e-2)
    assert jnp.allclose(out_seq.astype(jnp.float32), out_seq_ref, **tol), "out_seq mismatch"
    assert jnp.allclose(c_final, c_final_ref, **tol), "c_final mismatch"
    assert jnp.allclose(out1.astype(jnp.float32), out1_ref, **tol), "single-step out mismatch"
    assert jnp.allclose(c1, c1_ref, **tol), "single-step c mismatch"

    print("KERNEL_OK")
</pallas_src>

<mosaic_0001>
module attributes {stable_mosaic.version = 11 : i64} {
  func.func @_lstm_seq_kernel(%arg0: i32, %arg1: i32, %arg2: memref<8x128x128xf32, #tpu.memory_space<vmem>>, %arg3: memref<128x128xbf16, #tpu.memory_space<vmem>>, %arg4: memref<128x128xf32, #tpu.memory_space<vmem>>, %arg5: memref<128x128xbf16, #tpu.memory_space<vmem>>, %arg6: memref<8x128x128xbf16, #tpu.memory_space<vmem>>, %arg7: memref<128x128xf32, #tpu.memory_space<vmem>>, %arg8: memref<128x128xbf16, #tpu.memory_space<vmem>>) attributes {dimension_semantics = [#tpu.dimension_semantics<parallel>, #tpu.dimension_semantics<arbitrary>], iteration_bounds = array<i64: 1, 1>, scalar_prefetch = 0 : i64, scratch_operands = 1 : i64, tpu.core_type = #tpu.core_type<tc>, window_params = [{transform_indices = @transform_0, window_bounds = array<i64: 8, 128, 128>}, {transform_indices = @transform_1, window_bounds = array<i64: 128, 128>}, {transform_indices = @transform_2, window_bounds = array<i64: 128, 128>}, {pipeline_mode = #tpu.pipeline_mode<synchronous>, transform_indices = @transform_3, window_bounds = array<i64: 128, 128>}, {transform_indices = @transform_4, window_bounds = array<i64: 8, 128, 128>}, {transform_indices = @transform_5, window_bounds = array<i64: 128, 128>}]} {
    %c0_i32 = arith.constant 0 : i32
    %0 = arith.cmpi eq, %arg1, %c0_i32 : i32
    %1 = arith.extui %0 : i1 to i32
    %c0_i32_0 = arith.constant 0 : i32
    %2 = arith.cmpi ne, %1, %c0_i32_0 : i32
    scf.if %2 {
      %c0_176 = arith.constant 0 : index
      %c0_177 = arith.constant 0 : index
      %283 = vector.load %arg3[%c0_176, %c0_177] : memref<128x128xbf16, #tpu.memory_space<vmem>>, vector<128x128xbf16>
      %c0_178 = arith.constant 0 : index
      %c0_179 = arith.constant 0 : index
      %284 = vector.load %arg8[%c0_178, %c0_179] : memref<128x128xbf16, #tpu.memory_space<vmem>>, vector<128x128xbf16>
      tpu.vector_store %arg8[%c0_178, %c0_179], %283 {strides = array<i32>} : memref<128x128xbf16, #tpu.memory_space<vmem>>, vector<128x128xbf16>,
      %c0_180 = arith.constant 0 : index
      %c0_181 = arith.constant 0 : index
      %285 = vector.load %arg4[%c0_180, %c0_181] : memref<128x128xf32, #tpu.memory_space<vmem>>, vector<128x128xf32>
      %c0_182 = arith.constant 0 : index
      %c0_183 = arith.constant 0 : index
      %286 = vector.load %arg7[%c0_182, %c0_183] : memref<128x128xf32, #tpu.memory_space<vmem>>, vector<128x128xf32>
      tpu.vector_store %arg7[%c0_182, %c0_183], %285 {strides = array<i32>} : memref<128x128xf32, #tpu.memory_space<vmem>>, vector<128x128xf32>,
    } else {
    }
    %c0 = arith.constant 0 : index
    %c0_1 = arith.constant 0 : index
    %c0_2 = arith.constant 0 : index
    %3 = vector.load %arg2[%c0, %c0_1, %c0_2] : memref<8x128x128xf32, #tpu.memory_space<vmem>>, vector<1x128x128xf32>
    %4 = vector.shape_cast %3 : vector<1x128x128xf32> to vector<128x128xf32>
    %c0_3 = arith.constant 0 : index
    %c0_4 = arith.constant 0 : index
    %5 = vector.load %arg8[%c0_3, %c0_4] : memref<128x128xbf16, #tpu.memory_space<vmem>>, vector<128x128xbf16>
    %c0_5 = arith.constant 0 : index
    %c0_6 = arith.constant 0 : index
    %6 = vector.load %arg5[%c0_5, %c0_6] : memref<128x128xbf16, #tpu.memory_space<vmem>>, vector<128x128xbf16>
    %cst = arith.constant dense<0.000000e+00> : vector<128x128xf32>
    %7 = tpu.matmul %5, %6, %cst {dimension_numbers = #tpu.dot_dimension_numbers<[1], [0], [0], [1], [0, 0, 1, 1], [], []>} : vector<128x128xbf16>, vector<128x128xbf16>, vector<128x128xf32> -> vector<128x128xf32>
    %8 = arith.addf %4, %7 : vector<128x128xf32>
    %cst_7 = arith.constant -2.000000e+01 : f32
    %cst_8 = arith.constant 2.000000e+01 : f32
    %9 = vector.broadcast %cst_7 : f32 to vector<128x128xf32>
    %10 = arith.maximumf %9, %8 : vector<128x128xf32>
    %11 = vector.broadcast %cst_8 : f32 to vector<128x128xf32>
    %12 = arith.minimumf %11, %10 : vector<128x128xf32>
    %cst_9 = arith.constant 0.000000e+00 : f32
    %13 = vector.broadcast %cst_9 : f32 to vector<128x128xf32>
    %14 = arith.subf %13, %12 : vector<128x128xf32>
    %15 = math.exp %14 : vector<128x128xf32>
    %cst_10 = arith.constant 1.000000e+00 : f32
    %16 = vector.broadcast %cst_10 : f32 to vector<128x128xf32>
    %17 = arith.addf %16, %15 : vector<128x128xf32>
    %18 = tpu.reciprocal %17 {approx = true} : vector<128x128xf32> -> vector<128x128xf32>
    %19 = arith.mulf %15, %15 : vector<128x128xf32>
    %cst_11 = arith.constant 1.000000e+00 : f32
    %20 = vector.broadcast %cst_11 : f32 to vector<128x128xf32>
    %21 = arith.subf %20, %19 : vector<128x128xf32>
    %cst_12 = arith.constant 1.000000e+00 : f32
    %22 = vector.broadcast %cst_12 : f32 to vector<128x128xf32>
    %23 = arith.addf %22, %19 : vector<128x128xf32>
    %24 = tpu.reciprocal %23 {approx = true} : vector<128x128xf32> -> vector<128x128xf32>
    %25 = arith.mulf %21, %24 : vector<128x128xf32>
    %c0_13 = arith.constant 0 : index
    %c0_14 = arith.constant 0 : index
    %26 = vector.load %arg7[%c0_13, %c0_14] : memref<128x128xf32, #tpu.memory_space<vmem>>, vector<128x128xf32>
    %27 = arith.addf %26, %25 : vector<128x128xf32>
    %28 = arith.mulf %18, %27 : vector<128x128xf32>
    %29 = math.tanh %28 : vector<128x128xf32>
    %30 = arith.mulf %18, %29 : vector<128x128xf32>
    %31 = arith.truncf %30 : vector<128x128xf32> to vector<128x128xbf16>
    %c0_15 = arith.constant 0 : index
    %c0_16 = arith.constant 0 : index
    %32 = vector.load %arg8[%c0_15, %c0_16] : memref<128x128xbf16, #tpu.memory_space<vmem>>, vector<128x128xbf16>
    tpu.vector_store %arg8[%c0_15, %c0_16], %31 {strides = array<i32>} : memref<128x128xbf16, #tpu.memory_space<vmem>>, vector<128x128xbf16>,
    %c0_17 = arith.constant 0 : index
    %c0_18 = arith.constant 0 : index
    %33 = vector.load %arg7[%c0_17, %c0_18] : memref<128x128xf32, #tpu.memory_space<vmem>>, vector<128x128xf32>
    tpu.vector_store %arg7[%c0_17, %c0_18], %28 {strides = array<i32>} : memref<128x128xf32, #tpu.memory_space<vmem>>, vector<128x128xf32>,
    %34 = arith.truncf %30 : vector<128x128xf32> to vector<128x128xbf16>
    %c0_19 = arith.constant 0 : index
    %c0_20 = arith.constant 0 : index
    %c0_21 = arith.constant 0 : index
    %35 = vector.load %arg6[%c0_19, %c0_20, %c0_21] : memref<8x128x128xbf16, #tpu.memory_space<vmem>>, vector<1x128x128xbf16>
    %36 = vector.shape_cast %35 : vector<1x128x128xbf16> to vector<128x128xbf16>
    %37 = vector.shape_cast %34 : vector<128x128xbf16> to vector<1x128x128xbf16>
    tpu.vector_store %arg6[%c0_19, %c0_20, %c0_21], %37 {strides = array<i32>} : memref<8x128x128xbf16, #tpu.memory_space<vmem>>, vector<1x128x128xbf16>,
    %c1 = arith.constant 1 : index
    %c0_22 = arith.constant 0 : index
    %c0_23 = arith.constant 0 : index
    %38 = vector.load %arg2[%c1, %c0_22, %c0_23] : memref<8x128x128xf32, #tpu.memory_space<vmem>>, vector<1x128x128xf32>
    %39 = vector.shape_cast %38 : vector<1x128x128xf32> to vector<128x128xf32>
    %c0_24 = arith.constant 0 : index
    %c0_25 = arith.constant 0 : index
    %40 = vector.load %arg8[%c0_24, %c0_25] : memref<128x128xbf16, #tpu.memory_space<vmem>>, vector<128x128xbf16>
    %c0_26 = arith.constant 0 : index
    %c0_27 = arith.constant 0 : index
    %41 = vector.load %arg5[%c0_26, %c0_27] : memref<128x128xbf16, #tpu.memory_space<vmem>>, vector<128x128xbf16>
    %cst_28 = arith.constant dense<0.000000e+00> : vector<128x128xf32>
    %42 = tpu.matmul %40, %41, %cst_28 {dimension_numbers = #tpu.dot_dimension_numbers<[1], [0], [0], [1], [0, 0, 1, 1], [], []>} : vector<128x128xbf16>, vector<128x128xbf16>, vector<128x128xf32> -> vector<128x128xf32>
    %43 = arith.addf %39, %42 : vector<128x128xf32>
    %cst_29 = arith.constant -2.000000e+01 : f32
    %cst_30 = arith.constant 2.000000e+01 : f32
    %44 = vector.broadcast %cst_29 : f32 to vector<128x128xf32>
    %45 = arith.maximumf %44, %43 : vector<128x128xf32>
    %46 = vector.broadcast %cst_30 : f32 to vector<128x128xf32>
    %47 = arith.minimumf %46, %45 : vector<128x128xf32>
    %cst_31 = arith.constant 0.000000e+00 : f32
    %48 = vector.broadcast %cst_31 : f32 to vector<128x128xf32>
    %49 = arith.subf %48, %47 : vector<128x128xf32>
    %50 = math.exp %49 : vector<128x128xf32>
    %cst_32 = arith.constant 1.000000e+00 : f32
    %51 = vector.broadcast %cst_32 : f32 to vector<128x128xf32>
    %52 = arith.addf %51, %50 : vector<128x128xf32>
    %53 = tpu.reciprocal %52 {approx = true} : vector<128x128xf32> -> vector<128x128xf32>
    %54 = arith.mulf %50, %50 : vector<128x128xf32>
    %cst_33 = arith.constant 1.000000e+00 : f32
    %55 = vector.broadcast %cst_33 : f32 to vector<128x128xf32>
    %56 = arith.subf %55, %54 : vector<128x128xf32>
    %cst_34 = arith.constant 1.000000e+00 : f32
    %57 = vector.broadcast %cst_34 : f32 to vector<128x128xf32>
    %58 = arith.addf %57, %54 : vector<128x128xf32>
    %59 = tpu.reciprocal %58 {approx = true} : vector<128x128xf32> -> vector<128x128xf32>
    %60 = arith.mulf %56, %59 : vector<128x128xf32>
    %c0_35 = arith.constant 0 : index
    %c0_36 = arith.constant 0 : index
    %61 = vector.load %arg7[%c0_35, %c0_36] : memref<128x128xf32, #tpu.memory_space<vmem>>, vector<128x128xf32>
    %62 = arith.addf %61, %60 : vector<128x128xf32>
    %63 = arith.mulf %53, %62 : vector<128x128xf32>
    %64 = math.tanh %63 : vector<128x128xf32>
    %65 = arith.mulf %53, %64 : vector<128x128xf32>
    %66 = arith.truncf %65 : vector<128x128xf32> to vector<128x128xbf16>
    %c0_37 = arith.constant 0 : index
    %c0_38 = arith.constant 0 : index
    %67 = vector.load %arg8[%c0_37, %c0_38] : memref<128x128xbf16, #tpu.memory_space<vmem>>, vector<128x128xbf16>
    tpu.vector_store %arg8[%c0_37, %c0_38], %66 {strides = array<i32>} : memref<128x128xbf16, #tpu.memory_space<vmem>>, vector<128x128xbf16>,
    %c0_39 = arith.constant 0 : index
    %c0_40 = arith.constant 0 : index
    %68 = vector.load %arg7[%c0_39, %c0_40] : memref<128x128xf32, #tpu.memory_space<vmem>>, vector<128x128xf32>
    tpu.vector_store %arg7[%c0_39, %c0_40], %63 {strides = array<i32>} : memref<128x128xf32, #tpu.memory_space<vmem>>, vector<128x128xf32>,
    %69 = arith.truncf %65 : vector<128x128xf32> to vector<128x128xbf16>
    %c1_41 = arith.constant 1 : index
    %c0_42 = arith.constant 0 : index
    %c0_43 = arith.constant 0 : index
    %70 = vector.load %arg6[%c1_41, %c0_42, %c0_43] : memref<8x128x128xbf16, #tpu.memory_space<vmem>>, vector<1x128x128xbf16>
    %71 = vector.shape_cast %70 : vector<1x128x128xbf16> to vector<128x128xbf16>
    %72 = vector.shape_cast %69 : vector<128x128xbf16> to vector<1x128x128xbf16>
    tpu.vector_store %arg6[%c1_41, %c0_42, %c0_43], %72 {strides = array<i32>} : memref<8x128x128xbf16, #tpu.memory_space<vmem>>, vector<1x128x128xbf16>,
    %c2 = arith.constant 2 : index
    %c0_44 = arith.constant 0 : index
    %c0_45 = arith.constant 0 : index
    %73 = vector.load %arg2[%c2, %c0_44, %c0_45] : memref<8x128x128xf32, #tpu.memory_space<vmem>>, vector<1x128x128xf32>
    %74 = vector.shape_cast %73 : vector<1x128x128xf32> to vector<128x128xf32>
    %c0_46 = arith.constant 0 : index
    %c0_47 = arith.constant 0 : index
    %75 = vector.load %arg8[%c0_46, %c0_47] : memref<128x128xbf16, #tpu.memory_space<vmem>>, vector<128x128xbf16>
    %c0_48 = arith.constant 0 : index
    %c0_49 = arith.constant 0 : index
    %76 = vector.load %arg5[%c0_48, %c0_49] : memref<128x128xbf16, #tpu.memory_space<vmem>>, vector<128x128xbf16>
    %cst_50 = arith.constant dense<0.000000e+00> : vector<128x128xf32>
    %77 = tpu.matmul %75, %76, %cst_50 {dimension_numbers = #tpu.dot_dimension_numbers<[1], [0], [0], [1], [0, 0, 1, 1], [], []>} : vector<128x128xbf16>, vector<128x128xbf16>, vector<128x128xf32> -> vector<128x128xf32>
    %78 = arith.addf %74, %77 : vector<128x128xf32>
    %cst_51 = arith.constant -2.000000e+01 : f32
    %cst_52 = arith.constant 2.000000e+01 : f32
    %79 = vector.broadcast %cst_51 : f32 to vector<128x128xf32>
    %80 = arith.maximumf %79, %78 : vector<128x128xf32>
    %81 = vector.broadcast %cst_52 : f32 to vector<128x128xf32>
    %82 = arith.minimumf %81, %80 : vector<128x128xf32>
    %cst_53 = arith.constant 0.000000e+00 : f32
    %83 = vector.broadcast %cst_53 : f32 to vector<128x128xf32>
    %84 = arith.subf %83, %82 : vector<128x128xf32>
    %85 = math.exp %84 : vector<128x128xf32>
    %cst_54 = arith.constant 1.000000e+00 : f32
    %86 = vector.broadcast %cst_54 : f32 to vector<128x128xf32>
    %87 = arith.addf %86, %85 : vector<128x128xf32>
    %88 = tpu.reciprocal %87 {approx = true} : vector<128x128xf32> -> vector<128x128xf32>
    %89 = arith.mulf %85, %85 : vector<128x128xf32>
    %cst_55 = arith.constant 1.000000e+00 : f32
    %90 = vector.broadcast %cst_55 : f32 to vector<128x128xf32>
    %91 = arith.subf %90, %89 : vector<128x128xf32>
    %cst_56 = arith.constant 1.000000e+00 : f32
    %92 = vector.broadcast %cst_56 : f32 to vector<128x128xf32>
    %93 = arith.addf %92, %89 : vector<128x128xf32>
    %94 = tpu.reciprocal %93 {approx = true} : vector<128x128xf32> -> vector<128x128xf32>
    %95 = arith.mulf %91, %94 : vector<128x128xf32>
    %c0_57 = arith.constant 0 : index
    %c0_58 = arith.constant 0 : index
    %96 = vector.load %arg7[%c0_57, %c0_58] : memref<128x128xf32, #tpu.memory_space<vmem>>, vector<128x128xf32>
    %97 = arith.addf %96, %95 : vector<128x128xf32>
    %98 = arith.mulf %88, %97 : vector<128x128xf32>
    %99 = math.tanh %98 : vector<128x128xf32>
    %100 = arith.mulf %88, %99 : vector<128x128xf32>
    %101 = arith.truncf %100 : vector<128x128xf32> to vector<128x128xbf16>
    %c0_59 = arith.constant 0 : index
    %c0_60 = arith.constant 0 : index
    %102 = vector.load %arg8[%c0_59, %c0_60] : memref<128x128xbf16, #tpu.memory_space<vmem>>, vector<128x128xbf16>
    tpu.vector_store %arg8[%c0_59, %c0_60], %101 {strides = array<i32>} : memref<128x128xbf16, #tpu.memory_space<vmem>>, vector<128x128xbf16>,
    %c0_61 = arith.constant 0 : index
    %c0_62 = arith.constant 0 : index
    %103 = vector.load %arg7[%c0_61, %c0_62] : memref<128x128xf32, #tpu.memory_space<vmem>>, vector<128x128xf32>
    tpu.vector_store %arg7[%c0_61, %c0_62], %98 {strides = array<i32>} : memref<128x128xf32, #tpu.memory_space<vmem>>, vector<128x128xf32>,
    %104 = arith.truncf %100 : vector<128x128xf32> to vector<128x128xbf16>
    %c2_63 = arith.constant 2 : index
    %c0_64 = arith.constant 0 : index
    %c0_65 = arith.constant 0 : index
    %105 = vector.load %arg6[%c2_63, %c0_64, %c0_65] : memref<8x128x128xbf16, #tpu.memory_space<vmem>>, vector<1x128x128xbf16>
    %106 = vector.shape_cast %105 : vector<1x128x128xbf16> to vector<128x128xbf16>
    %107 = vector.shape_cast %104 : vector<128x128xbf16> to vector<1x128x128xbf16>
    tpu.vector_store %arg6[%c2_63, %c0_64, %c0_65], %107 {strides = array<i32>} : memref<8x128x128xbf16, #tpu.memory_space<vmem>>, vector<1x128x128xbf16>,
    %c3 = arith.constant 3 : index
    %c0_66 = arith.constant 0 : index
    %c0_67 = arith.constant 0 : index
    %108 = vector.load %arg2[%c3, %c0_66, %c0_67] : memref<8x128x128xf32, #tpu.memory_space<vmem>>, vector<1x128x128xf32>
    %109 = vector.shape_cast %108 : vector<1x128x128xf32> to vector<128x128xf32>
    %c0_68 = arith.constant 0 : index
    %c0_69 = arith.constant 0 : index
    %110 = vector.load %arg8[%c0_68, %c0_69] : memref<128x128xbf16, #tpu.memory_space<vmem>>, vector<128x128xbf16>
    %c0_70 = arith.constant 0 : index
    %c0_71 = arith.constant 0 : index
    %111 = vector.load %arg5[%c0_70, %c0_71] : memref<128x128xbf16, #tpu.memory_space<vmem>>, vector<128x128xbf16>
    %cst_72 = arith.constant dense<0.000000e+00> : vector<128x128xf32>
    %112 = tpu.matmul %110, %111, %cst_72 {dimension_numbers = #tpu.dot_dimension_numbers<[1], [0], [0], [1], [0, 0, 1, 1], [], []>} : vector<128x128xbf16>, vector<128x128xbf16>, vector<128x128xf32> -> vector<128x128xf32>
    %113 = arith.addf %109, %112 : vector<128x128xf32>
    %cst_73 = arith.constant -2.000000e+01 : f32
    %cst_74 = arith.constant 2.000000e+01 : f32
    %114 = vector.broadcast %cst_73 : f32 to vector<128x128xf32>
    %115 = arith.maximumf %114, %113 : vector<128x128xf32>
    %116 = vector.broadcast %cst_74 : f32 to vector<128x128xf32>
    %117 = arith.minimumf %116, %115 : vector<128x128xf32>
    %cst_75 = arith.constant 0.000000e+00 : f32
    %118 = vector.broadcast %cst_75 : f32 to vector<128x128xf32>
    %119 = arith.subf %118, %117 : vector<128x128xf32>
    %120 = math.exp %119 : vector<128x128xf32>
    %cst_76 = arith.constant 1.000000e+00 : f32
    %121 = vector.broadcast %cst_76 : f32 to vector<128x128xf32>
    %122 = arith.addf %121, %120 : vector<128x128xf32>
    %123 = tpu.reciprocal %122 {approx = true} : vector<128x128xf32> -> vector<128x128xf32>
    %124 = arith.mulf %120, %120 : vector<128x128xf32>
    %cst_77 = arith.constant 1.000000e+00 : f32
    %125 = vector.broadcast %cst_77 : f32 to vector<128x128xf32>
    %126 = arith.subf %125, %124 : vector<128x128xf32>
    %cst_78 = arith.constant 1.000000e+00 : f32
    %127 = vector.broadcast %cst_78 : f32 to vector<128x128xf32>
    %128 = arith.addf %127, %124 : vector<128x128xf32>
    %129 = tpu.reciprocal %128 {approx = true} : vector<128x128xf32> -> vector<128x128xf32>
    %130 = arith.mulf %126, %129 : vector<128x128xf32>
    %c0_79 = arith.constant 0 : index
    %c0_80 = arith.constant 0 : index
    %131 = vector.load %arg7[%c0_79, %c0_80] : memref<128x128xf32, #tpu.memory_space<vmem>>, vector<128x128xf32>
    %132 = arith.addf %131, %130 : vector<128x128xf32>
    %133 = arith.mulf %123, %132 : vector<128x128xf32>
    %134 = math.tanh %133 : vector<128x128xf32>
    %135 = arith.mulf %123, %134 : vector<128x128xf32>
    %136 = arith.truncf %135 : vector<128x128xf32> to vector<128x128xbf16>
    %c0_81 = arith.constant 0 : index
    %c0_82 = arith.constant 0 : index
    %137 = vector.load %arg8[%c0_81, %c0_82] : memref<128x128xbf16, #tpu.memory_space<vmem>>, vector<128x128xbf16>
    tpu.vector_store %arg8[%c0_81, %c0_82], %136 {strides = array<i32>} : memref<128x128xbf16, #tpu.memory_space<vmem>>, vector<128x128xbf16>,
    %c0_83 = arith.constant 0 : index
    %c0_84 = arith.constant 0 : index
    %138 = vector.load %arg7[%c0_83, %c0_84] : memref<128x128xf32, #tpu.memory_space<vmem>>, vector<128x128xf32>
    tpu.vector_store %arg7[%c0_83, %c0_84], %133 {strides = array<i32>} : memref<128x128xf32, #tpu.memory_space<vmem>>, vector<128x128xf32>,
    %139 = arith.truncf %135 : vector<128x128xf32> to vector<128x128xbf16>
    %c3_85 = arith.constant 3 : index
    %c0_86 = arith.constant 0 : index
    %c0_87 = arith.constant 0 : index
    %140 = vector.load %arg6[%c3_85, %c0_86, %c0_87] : memref<8x128x128xbf16, #tpu.memory_space<vmem>>, vector<1x128x128xbf16>
    %141 = vector.shape_cast %140 : vector<1x128x128xbf16> to vector<128x128xbf16>
    %142 = vector.shape_cast %139 : vector<128x128xbf16> to vector<1x128x128xbf16>
    tpu.vector_store %arg6[%c3_85, %c0_86, %c0_87], %142 {strides = array<i32>} : memref<8x128x128xbf16, #tpu.memory_space<vmem>>, vector<1x128x128xbf16>,
    %c4 = arith.constant 4 : index
    %c0_88 = arith.constant 0 : index
    %c0_89 = arith.constant 0 : index
    %143 = vector.load %arg2[%c4, %c0_88, %c0_89] : memref<8x128x128xf32, #tpu.memory_space<vmem>>, vector<1x128x128xf32>
    %144 = vector.shape_cast %143 : vector<1x128x128xf32> to vector<128x128xf32>
    %c0_90 = arith.constant 0 : index
    %c0_91 = arith.constant 0 : index
    %145 = vector.load %arg8[%c0_90, %c0_91] : memref<128x128xbf16, #tpu.memory_space<vmem>>, vector<128x128xbf16>
    %c0_92 = arith.constant 0 : index
    %c0_93 = arith.constant 0 : index
    %146 = vector.load %arg5[%c0_92, %c0_93] : memref<128x128xbf16, #tpu.memory_space<vmem>>, vector<128x128xbf16>
    %cst_94 = arith.constant dense<0.000000e+00> : vector<128x128xf32>
    %147 = tpu.matmul %145, %146, %cst_94 {dimension_numbers = #tpu.dot_dimension_numbers<[1], [0], [0], [1], [0, 0, 1, 1], [], []>} : vector<128x128xbf16>, vector<128x128xbf16>, vector<128x128xf32> -> vector<128x128xf32>
    %148 = arith.addf %144, %147 : vector<128x128xf32>
    %cst_95 = arith.constant -2.000000e+01 : f32
    %cst_96 = arith.constant 2.000000e+01 : f32
    %149 = vector.broadcast %cst_95 : f32 to vector<128x128xf32>
    %150 = arith.maximumf %149, %148 : vector<128x128xf32>
    %151 = vector.broadcast %cst_96 : f32 to vector<128x128xf32>
    %152 = arith.minimumf %151, %150 : vector<128x128xf32>
    %cst_97 = arith.constant 0.000000e+00 : f32
    %153 = vector.broadcast %cst_97 : f32 to vector<128x128xf32>
    %154 = arith.subf %153, %152 : vector<128x128xf32>
    %155 = math.exp %154 : vector<128x128xf32>
    %cst_98 = arith.constant 1.000000e+00 : f32
    %156 = vector.broadcast %cst_98 : f32 to vector<128x128xf32>
    %157 = arith.addf %156, %155 : vector<128x128xf32>
    %158 = tpu.reciprocal %157 {approx = true} : vector<128x128xf32> -> vector<128x128xf32>
    %159 = arith.mulf %155, %155 : vector<128x128xf32>
    %cst_99 = arith.constant 1.000000e+00 : f32
    %160 = vector.broadcast %cst_99 : f32 to vector<128x128xf32>
    %161 = arith.subf %160, %159 : vector<128x128xf32>
    %cst_100 = arith.constant 1.000000e+00 : f32
    %162 = vector.broadcast %cst_100 : f32 to vector<128x128xf32>
    %163 = arith.addf %162, %159 : vector<128x128xf32>
    %164 = tpu.reciprocal %163 {approx = true} : vector<128x128xf32> -> vector<128x128xf32>
    %165 = arith.mulf %161, %164 : vector<128x128xf32>
    %c0_101 = arith.constant 0 : index
    %c0_102 = arith.constant 0 : index
    %166 = vector.load %arg7[%c0_101, %c0_102] : memref<128x128xf32, #tpu.memory_space<vmem>>, vector<128x128xf32>
    %167 = arith.addf %166, %165 : vector<128x128xf32>
    %168 = arith.mulf %158, %167 : vector<128x128xf32>
    %169 = math.tanh %168 : vector<128x128xf32>
    %170 = arith.mulf %158, %169 : vector<128x128xf32>
    %171 = arith.truncf %170 : vector<128x128xf32> to vector<128x128xbf16>
    %c0_103 = arith.constant 0 : index
    %c0_104 = arith.constant 0 : index
    %172 = vector.load %arg8[%c0_103, %c0_104] : memref<128x128xbf16, #tpu.memory_space<vmem>>, vector<128x128xbf16>
    tpu.vector_store %arg8[%c0_103, %c0_104], %171 {strides = array<i32>} : memref<128x128xbf16, #tpu.memory_space<vmem>>, vector<128x128xbf16>,
    %c0_105 = arith.constant 0 : index
    %c0_106 = arith.constant 0 : index
    %173 = vector.load %arg7[%c0_105, %c0_106] : memref<128x128xf32, #tpu.memory_space<vmem>>, vector<128x128xf32>
    tpu.vector_store %arg7[%c0_105, %c0_106], %168 {strides = array<i32>} : memref<128x128xf32, #tpu.memory_space<vmem>>, vector<128x128xf32>,
    %174 = arith.truncf %170 : vector<128x128xf32> to vector<128x128xbf16>
    %c4_107 = arith.constant 4 : index
    %c0_108 = arith.constant 0 : index
    %c0_109 = arith.constant 0 : index
    %175 = vector.load %arg6[%c4_107, %c0_108, %c0_109] : memref<8x128x128xbf16, #tpu.memory_space<vmem>>, vector<1x128x128xbf16>
    %176 = vector.shape_cast %175 : vector<1x128x128xbf16> to vector<128x128xbf16>
    %177 = vector.shape_cast %174 : vector<128x128xbf16> to vector<1x128x128xbf16>
    tpu.vector_store %arg6[%c4_107, %c0_108, %c0_109], %177 {strides = array<i32>} : memref<8x128x128xbf16, #tpu.memory_space<vmem>>, vector<1x128x128xbf16>,
    %c5 = arith.constant 5 : index
    %c0_110 = arith.constant 0 : index
    %c0_111 = arith.constant 0 : index
    %178 = vector.load %arg2[%c5, %c0_110, %c0_111] : memref<8x128x128xf32, #tpu.memory_space<vmem>>, vector<1x128x128xf32>
    %179 = vector.shape_cast %178 : vector<1x128x128xf32> to vector<128x128xf32>
    %c0_112 = arith.constant 0 : index
    %c0_113 = arith.constant 0 : index
    %180 = vector.load %arg8[%c0_112, %c0_113] : memref<128x128xbf16, #tpu.memory_space<vmem>>, vector<128x128xbf16>
    %c0_114 = arith.constant 0 : index
    %c0_115 = arith.constant 0 : index
    %181 = vector.load %arg5[%c0_114, %c0_115] : memref<128x128xbf16, #tpu.memory_space<vmem>>, vector<128x128xbf16>
    %cst_116 = arith.constant dense<0.000000e+00> : vector<128x128xf32>
    %182 = tpu.matmul %180, %181, %cst_116 {dimension_numbers = #tpu.dot_dimension_numbers<[1], [0], [0], [1], [0, 0, 1, 1], [], []>} : vector<128x128xbf16>, vector<128x128xbf16>, vector<128x128xf32> -> vector<128x128xf32>
    %183 = arith.addf %179, %182 : vector<128x128xf32>
    %cst_117 = arith.constant -2.000000e+01 : f32
    %cst_118 = arith.constant 2.000000e+01 : f32
    %184 = vector.broadcast %cst_117 : f32 to vector<128x128xf32>
    %185 = arith.maximumf %184, %183 : vector<128x128xf32>
    %186 = vector.broadcast %cst_118 : f32 to vector<128x128xf32>
    %187 = arith.minimumf %186, %185 : vector<128x128xf32>
    %cst_119 = arith.constant 0.000000e+00 : f32
    %188 = vector.broadcast %cst_119 : f32 to vector<128x128xf32>
    %189 = arith.subf %188, %187 : vector<128x128xf32>
    %190 = math.exp %189 : vector<128x128xf32>
    %cst_120 = arith.constant 1.000000e+00 : f32
    %191 = vector.broadcast %cst_120 : f32 to vector<128x128xf32>
    %192 = arith.addf %191, %190 : vector<128x128xf32>
    %193 = tpu.reciprocal %192 {approx = true} : vector<128x128xf32> -> vector<128x128xf32>
    %194 = arith.mulf %190, %190 : vector<128x128xf32>
    %cst_121 = arith.constant 1.000000e+00 : f32
    %195 = vector.broadcast %cst_121 : f32 to vector<128x128xf32>
    %196 = arith.subf %195, %194 : vector<128x128xf32>
    %cst_122 = arith.constant 1.000000e+00 : f32
    %197 = vector.broadcast %cst_122 : f32 to vector<128x128xf32>
    %198 = arith.addf %197, %194 : vector<128x128xf32>
    %199 = tpu.reciprocal %198 {approx = true} : vector<128x128xf32> -> vector<128x128xf32>
    %200 = arith.mulf %196, %199 : vector<128x128xf32>
    %c0_123 = arith.constant 0 : index
    %c0_124 = arith.constant 0 : index
    %201 = vector.load %arg7[%c0_123, %c0_124] : memref<128x128xf32, #tpu.memory_space<vmem>>, vector<128x128xf32>
    %202 = arith.addf %201, %200 : vector<128x128xf32>
    %203 = arith.mulf %193, %202 : vector<128x128xf32>
    %204 = math.tanh %203 : vector<128x128xf32>
    %205 = arith.mulf %193, %204 : vector<128x128xf32>
    %206 = arith.truncf %205 : vector<128x128xf32> to vector<128x128xbf16>
    %c0_125 = arith.constant 0 : index
    %c0_126 = arith.constant 0 : index
    %207 = vector.load %arg8[%c0_125, %c0_126] : memref<128x128xbf16, #tpu.memory_space<vmem>>, vector<128x128xbf16>
    tpu.vector_store %arg8[%c0_125, %c0_126], %206 {strides = array<i32>} : memref<128x128xbf16, #tpu.memory_space<vmem>>, vector<128x128xbf16>,
    %c0_127 = arith.constant 0 : index
    %c0_128 = arith.constant 0 : index
    %208 = vector.load %arg7[%c0_127, %c0_128] : memref<128x128xf32, #tpu.memory_space<vmem>>, vector<128x128xf32>
    tpu.vector_store %arg7[%c0_127, %c0_128], %203 {strides = array<i32>} : memref<128x128xf32, #tpu.memory_space<vmem>>, vector<128x128xf32>,
    %209 = arith.truncf %205 : vector<128x128xf32> to vector<128x128xbf16>
    %c5_129 = arith.constant 5 : index
    %c0_130 = arith.constant 0 : index
    %c0_131 = arith.constant 0 : index
    %210 = vector.load %arg6[%c5_129, %c0_130, %c0_131] : memref<8x128x128xbf16, #tpu.memory_space<vmem>>, vector<1x128x128xbf16>
    %211 = vector.shape_cast %210 : vector<1x128x128xbf16> to vector<128x128xbf16>
    %212 = vector.shape_cast %209 : vector<128x128xbf16> to vector<1x128x128xbf16>
    tpu.vector_store %arg6[%c5_129, %c0_130, %c0_131], %212 {strides = array<i32>} : memref<8x128x128xbf16, #tpu.memory_space<vmem>>, vector<1x128x128xbf16>,
    %c6 = arith.constant 6 : index
    %c0_132 = arith.constant 0 : index
    %c0_133 = arith.constant 0 : index
    %213 = vector.load %arg2[%c6, %c0_132, %c0_133] : memref<8x128x128xf32, #tpu.memory_space<vmem>>, vector<1x128x128xf32>
    %214 = vector.shape_cast %213 : vector<1x128x128xf32> to vector<128x128xf32>
    %c0_134 = arith.constant 0 : index
    %c0_135 = arith.constant 0 : index
    %215 = vector.load %arg8[%c0_134, %c0_135] : memref<128x128xbf16, #tpu.memory_space<vmem>>, vector<128x128xbf16>
    %c0_136 = arith.constant 0 : index
    %c0_137 = arith.constant 0 : index
    %216 = vector.load %arg5[%c0_136, %c0_137] : memref<128x128xbf16, #tpu.memory_space<vmem>>, vector<128x128xbf16>
    %cst_138 = arith.constant dense<0.000000e+00> : vector<128x128xf32>
    %217 = tpu.matmul %215, %216, %cst_138 {dimension_numbers = #tpu.dot_dimension_numbers<[1], [0], [0], [1], [0, 0, 1, 1], [], []>} : vector<128x128xbf16>, vector<128x128xbf16>, vector<128x128xf32> -> vector<128x128xf32>
    %218 = arith.addf %214, %217 : vector<128x128xf32>
    %cst_139 = arith.constant -2.000000e+01 : f32
    %cst_140 = arith.constant 2.000000e+01 : f32
    %219 = vector.broadcast %cst_139 : f32 to vector<128x128xf32>
    %220 = arith.maximumf %219, %218 : vector<128x128xf32>
    %221 = vector.broadcast %cst_140 : f32 to vector<128x128xf32>
    %222 = arith.minimumf %221, %220 : vector<128x128xf32>
    %cst_141 = arith.constant 0.000000e+00 : f32
    %223 = vector.broadcast %cst_141 : f32 to vector<128x128xf32>
    %224 = arith.subf %223, %222 : vector<128x128xf32>
    %225 = math.exp %224 : vector<128x128xf32>
    %cst_142 = arith.constant 1.000000e+00 : f32
    %226 = vector.broadcast %cst_142 : f32 to vector<128x128xf32>
    %227 = arith.addf %226, %225 : vector<128x128xf32>
    %228 = tpu.reciprocal %227 {approx = true} : vector<128x128xf32> -> vector<128x128xf32>
    %229 = arith.mulf %225, %225 : vector<128x128xf32>
    %cst_143 = arith.constant 1.000000e+00 : f32
    %230 = vector.broadcast %cst_143 : f32 to vector<128x128xf32>
    %231 = arith.subf %230, %229 : vector<128x128xf32>
    %cst_144 = arith.constant 1.000000e+00 : f32
    %232 = vector.broadcast %cst_144 : f32 to vector<128x128xf32>
    %233 = arith.addf %232, %229 : vector<128x128xf32>
    %234 = tpu.reciprocal %233 {approx = true} : vector<128x128xf32> -> vector<128x128xf32>
    %235 = arith.mulf %231, %234 : vector<128x128xf32>
    %c0_145 = arith.constant 0 : index
    %c0_146 = arith.constant 0 : index
    %236 = vector.load %arg7[%c0_145, %c0_146] : memref<128x128xf32, #tpu.memory_space<vmem>>, vector<128x128xf32>
    %237 = arith.addf %236, %235 : vector<128x128xf32>
    %238 = arith.mulf %228, %237 : vector<128x128xf32>
    %239 = math.tanh %238 : vector<128x128xf32>
    %240 = arith.mulf %228, %239 : vector<128x128xf32>
    %241 = arith.truncf %240 : vector<128x128xf32> to vector<128x128xbf16>
    %c0_147 = arith.constant 0 : index
    %c0_148 = arith.constant 0 : index
    %242 = vector.load %arg8[%c0_147, %c0_148] : memref<128x128xbf16, #tpu.memory_space<vmem>>, vector<128x128xbf16>
    tpu.vector_store %arg8[%c0_147, %c0_148], %241 {strides = array<i32>} : memref<128x128xbf16, #tpu.memory_space<vmem>>, vector<128x128xbf16>,
    %c0_149 = arith.constant 0 : index
    %c0_150 = arith.constant 0 : index
    %243 = vector.load %arg7[%c0_149, %c0_150] : memref<128x128xf32, #tpu.memory_space<vmem>>, vector<128x128xf32>
    tpu.vector_store %arg7[%c0_149, %c0_150], %238 {strides = array<i32>} : memref<128x128xf32, #tpu.memory_space<vmem>>, vector<128x128xf32>,
    %244 = arith.truncf %240 : vector<128x128xf32> to vector<128x128xbf16>
    %c6_151 = arith.constant 6 : index
    %c0_152 = arith.constant 0 : index
    %c0_153 = arith.constant 0 : index
    %245 = vector.load %arg6[%c6_151, %c0_152, %c0_153] : memref<8x128x128xbf16, #tpu.memory_space<vmem>>, vector<1x128x128xbf16>
    %246 = vector.shape_cast %245 : vector<1x128x128xbf16> to vector<128x128xbf16>
    %247 = vector.shape_cast %244 : vector<128x128xbf16> to vector<1x128x128xbf16>
    tpu.vector_store %arg6[%c6_151, %c0_152, %c0_153], %247 {strides = array<i32>} : memref<8x128x128xbf16, #tpu.memory_space<vmem>>, vector<1x128x128xbf16>,
    %c7 = arith.constant 7 : index
    %c0_154 = arith.constant 0 : index
    %c0_155 = arith.constant 0 : index
    %248 = vector.load %arg2[%c7, %c0_154, %c0_155] : memref<8x128x128xf32, #tpu.memory_space<vmem>>, vector<1x128x128xf32>
    %249 = vector.shape_cast %248 : vector<1x128x128xf32> to vector<128x128xf32>
    %c0_156 = arith.constant 0 : index
    %c0_157 = arith.constant 0 : index
    %250 = vector.load %arg8[%c0_156, %c0_157] : memref<128x128xbf16, #tpu.memory_space<vmem>>, vector<128x128xbf16>
    %c0_158 = arith.constant 0 : index
    %c0_159 = arith.constant 0 : index
    %251 = vector.load %arg5[%c0_158, %c0_159] : memref<128x128xbf16, #tpu.memory_space<vmem>>, vector<128x128xbf16>
    %cst_160 = arith.constant dense<0.000000e+00> : vector<128x128xf32>
    %252 = tpu.matmul %250, %251, %cst_160 {dimension_numbers = #tpu.dot_dimension_numbers<[1], [0], [0], [1], [0, 0, 1, 1], [], []>} : vector<128x128xbf16>, vector<128x128xbf16>, vector<128x128xf32> -> vector<128x128xf32>
    %253 = arith.addf %249, %252 : vector<128x128xf32>
    %cst_161 = arith.constant -2.000000e+01 : f32
    %cst_162 = arith.constant 2.000000e+01 : f32
    %254 = vector.broadcast %cst_161 : f32 to vector<128x128xf32>
    %255 = arith.maximumf %254, %253 : vector<128x128xf32>
    %256 = vector.broadcast %cst_162 : f32 to vector<128x128xf32>
    %257 = arith.minimumf %256, %255 : vector<128x128xf32>
    %cst_163 = arith.constant 0.000000e+00 : f32
    %258 = vector.broadcast %cst_163 : f32 to vector<128x128xf32>
    %259 = arith.subf %258, %257 : vector<128x128xf32>
    %260 = math.exp %259 : vector<128x128xf32>
    %cst_164 = arith.constant 1.000000e+00 : f32
    %261 = vector.broadcast %cst_164 : f32 to vector<128x128xf32>
    %262 = arith.addf %261, %260 : vector<128x128xf32>
    %263 = tpu.reciprocal %262 {approx = true} : vector<128x128xf32> -> vector<128x128xf32>
    %264 = arith.mulf %260, %260 : vector<128x128xf32>
    %cst_165 = arith.constant 1.000000e+00 : f32
    %265 = vector.broadcast %cst_165 : f32 to vector<128x128xf32>
    %266 = arith.subf %265, %264 : vector<128x128xf32>
    %cst_166 = arith.constant 1.000000e+00 : f32
    %267 = vector.broadcast %cst_166 : f32 to vector<128x128xf32>
    %268 = arith.addf %267, %264 : vector<128x128xf32>
    %269 = tpu.reciprocal %268 {approx = true} : vector<128x128xf32> -> vector<128x128xf32>
    %270 = arith.mulf %266, %269 : vector<128x128xf32>
    %c0_167 = arith.constant 0 : index
    %c0_168 = arith.constant 0 : index
    %271 = vector.load %arg7[%c0_167, %c0_168] : memref<128x128xf32, #tpu.memory_space<vmem>>, vector<128x128xf32>
    %272 = arith.addf %271, %270 : vector<128x128xf32>
    %273 = arith.mulf %263, %272 : vector<128x128xf32>
    %274 = math.tanh %273 : vector<128x128xf32>
    %275 = arith.mulf %263, %274 : vector<128x128xf32>
    %276 = arith.truncf %275 : vector<128x128xf32> to vector<128x128xbf16>
    %c0_169 = arith.constant 0 : index
    %c0_170 = arith.constant 0 : index
    %277 = vector.load %arg8[%c0_169, %c0_170] : memref<128x128xbf16, #tpu.memory_space<vmem>>, vector<128x128xbf16>
    tpu.vector_store %arg8[%c0_169, %c0_170], %276 {strides = array<i32>} : memref<128x128xbf16, #tpu.memory_space<vmem>>, vector<128x128xbf16>,
    %c0_171 = arith.constant 0 : index
    %c0_172 = arith.constant 0 : index
    %278 = vector.load %arg7[%c0_171, %c0_172] : memref<128x128xf32, #tpu.memory_space<vmem>>, vector<128x128xf32>
    tpu.vector_store %arg7[%c0_171, %c0_172], %273 {strides = array<i32>} : memref<128x128xf32, #tpu.memory_space<vmem>>, vector<128x128xf32>,
    %279 = arith.truncf %275 : vector<128x128xf32> to vector<128x128xbf16>
    %c7_173 = arith.constant 7 : index
    %c0_174 = arith.constant 0 : index
    %c0_175 = arith.constant 0 : index
    %280 = vector.load %arg6[%c7_173, %c0_174, %c0_175] : memref<8x128x128xbf16, #tpu.memory_space<vmem>>, vector<1x128x128xbf16>
    %281 = vector.shape_cast %280 : vector<1x128x128xbf16> to vector<128x128xbf16>
    %282 = vector.shape_cast %279 : vector<128x128xbf16> to vector<1x128x128xbf16>
    tpu.vector_store %arg6[%c7_173, %c0_174, %c0_175], %282 {strides = array<i32>} : memref<8x128x128xbf16, #tpu.memory_space<vmem>>, vector<1x128x128xbf16>,
    return
  }
  func.func @transform_0(%arg0: i32, %arg1: i32) -> (i32, i32, i32) {
    %c0_i32 = arith.constant 0 : i32
    %c0_i32_0 = arith.constant 0 : i32
    return %arg1, %arg0, %c0_i32 : i32, i32, i32
  }
  func.func @transform_1(%arg0: i32, %arg1: i32) -> (i32, i32) {
    %c0_i32 = arith.constant 0 : i32
    %c0_i32_0 = arith.constant 0 : i32
    return %arg0, %c0_i32 : i32, i32
  }
  func.func @transform_2(%arg0: i32, %arg1: i32) -> (i32, i32) {
    %c0_i32 = arith.constant 0 : i32
    %c0_i32_0 = arith.constant 0 : i32
    return %arg0, %c0_i32 : i32, i32
  }
  func.func @transform_3(%arg0: i32, %arg1: i32) -> (i32, i32) {
    %c0_i32 = arith.constant 0 : i32
    %c0_i32_0 = arith.constant 0 : i32
    %c0_i32_1 = arith.constant 0 : i32
    return %c0_i32, %c0_i32_0 : i32, i32
  }
  func.func @transform_4(%arg0: i32, %arg1: i32) -> (i32, i32, i32) {
    %c0_i32 = arith.constant 0 : i32
    %c0_i32_0 = arith.constant 0 : i32
    return %arg1, %arg0, %c0_i32 : i32, i32, i32
  }
  func.func @transform_5(%arg0: i32, %arg1: i32) -> (i32, i32) {
    %c0_i32 = arith.constant 0 : i32
    %c0_i32_0 = arith.constant 0 : i32
    return %arg0, %c0_i32 : i32, i32
  }
}

</mosaic_0001>

<llo_original>
// kernel: lstm_sequence.1
$region0: #{lstm_sequence.1}
  #allocation0 [shape = 'u32[]', space=smem, size = 0x4, offset = 0x4, fixed_abs, tag = 'smem constant byte address 0x4 - core index']
  #allocation1 [shape = 'u32[144,128]{1,0:T(1,128)}', space=vmem, size = 0x12000, scoped, tag = 'internal scratch']
  #allocation2 [shape = 'bf16[128,128]{1,0:T(8,128)(2,1)}', space=vmem, size = 0x8000, scoped, tag = 'scratch operand']
  %s0 = inlined_call_operand.vmem [shape: f32[8,128,128], index: 0, kind: input, shape index: {}]
  %s1 = inlined_call_operand.vmem [shape: bf16[128,128], index: 1, kind: input, shape index: {}]
  %s2 = inlined_call_operand.vmem [shape: f32[128,128], index: 2, kind: input, shape index: {}]
  %s3 = inlined_call_operand.vmem [shape: bf16[128,128], index: 3, kind: input, shape index: {}]
  %s4 = inlined_call_operand.vmem [shape: bf16[8,128,128], index: 4, kind: output, shape index: {0}]
  %s5 = inlined_call_operand.vmem [shape: f32[128,128], index: 5, kind: output, shape index: {1}]
  %6 = xla_tuple %s4, %s5
  %s7 = sld [smem:[#allocation0]]
  $region38: #{lstm_sequence.1} parent=0
    _
  %s9 = ssub.s32 1, %s7
  %s10 = scalar_select 0, %s9, %s7
  // Predicated region
  $region2: #{lstm_sequence.1} parent=0 // pred_check
    _
  $region3: #{lstm_sequence.1} parent=0 // pred_check_branch
    %12 = sbr.rel (0) target = $region5
  $region4: #{lstm_sequence.1} parent=0 // pred_region
    _
  $region5: #{lstm_sequence.1} parent=0 // pred_fallthru
    _
  // Predicated region
  $region6: #{lstm_sequence.1} parent=0 // pred_check
    _
  $region7: #{lstm_sequence.1} parent=0 // pred_check_branch
    %14 = sbr.rel (0) target = $region9
  $region8: #{lstm_sequence.1} parent=0 // pred_region
    _
  $region9: #{lstm_sequence.1} parent=0 // pred_fallthru
    _
  // Predicated region
  $region10: #{lstm_sequence.1} parent=0 // pred_check
    _
  $region11: #{lstm_sequence.1} parent=0 // pred_check_branch
    %16 = sbr.rel (0) target = $region13
  $region12: #{lstm_sequence.1} parent=0 // pred_region
    _
  $region13: #{lstm_sequence.1} parent=0 // pred_fallthru
    _
  // Predicated region
  $region14: #{lstm_sequence.1} parent=0 // pred_check
    _
  $region15: #{lstm_sequence.1} parent=0 // pred_check_branch
    %18 = sbr.rel (0) target = $region17
  $region16: #{lstm_sequence.1} parent=0 // pred_region
    _
  $region17: #{lstm_sequence.1} parent=0 // pred_fallthru
    _
  %p20 = scmp.eq.s32.totalorder 0, 0
  // Predicated region
  $region18: #{lstm_sequence.1} parent=0 // pred_check
    %p21 = pneg %p20
  $region19: #{lstm_sequence.1} parent=0 // pred_check_branch
    %23 = sbr.rel (%p21) target = $region21
  $region20: #{lstm_sequence.1} parent=0 // pred_region
    %v24 = vld [vmem:[%s1] sm:$0xf]
    %v25 = vld [vmem:[%s1 + $0x4] sm:$0xf]
    %v26 = vld [vmem:[%s1 + $0x8] sm:$0xf]
    %v27 = vld [vmem:[%s1 + $0xc] sm:$0xf]
    %v28 = vld [vmem:[%s1 + $0x10] sm:$0xf]
    %v29 = vld [vmem:[%s1 + $0x14] sm:$0xf]
    %v30 = vld [vmem:[%s1 + $0x18] sm:$0xf]
    %v31 = vld [vmem:[%s1 + $0x1c] sm:$0xf]
    %v32 = vld [vmem:[%s1 + $0x20] sm:$0xf]
    %v33 = vld [vmem:[%s1 + $0x24] sm:$0xf]
    %v34 = vld [vmem:[%s1 + $0x28] sm:$0xf]
    %v35 = vld [vmem:[%s1 + $0x2c] sm:$0xf]
    %v36 = vld [vmem:[%s1 + $0x30] sm:$0xf]
    %v37 = vld [vmem:[%s1 + $0x34] sm:$0xf]
    %v38 = vld [vmem:[%s1 + $0x38] sm:$0xf]
    %v39 = vld [vmem:[%s1 + $0x3c] sm:$0xf]
    %40 = vst [vmem:[#allocation2] sm:$0xf] %v24
    %41 = vst [vmem:[#allocation2 + $0x4] sm:$0xf] %v25
    %42 = vst [vmem:[#allocation2 + $0x8] sm:$0xf] %v26
    %43 = vst [vmem:[#allocation2 + $0xc] sm:$0xf] %v27
    %44 = vst [vmem:[#allocation2 + $0x10] sm:$0xf] %v28
    %45 = vst [vmem:[#allocation2 + $0x14] sm:$0xf] %v29
    %46 = vst [vmem:[#allocation2 + $0x18] sm:$0xf] %v30
    %47 = vst [vmem:[#allocation2 + $0x1c] sm:$0xf] %v31
    %48 = vst [vmem:[#allocation2 + $0x20] sm:$0xf] %v32
    %49 = vst [vmem:[#allocation2 + $0x24] sm:$0xf] %v33
    %50 = vst [vmem:[#allocation2 + $0x28] sm:$0xf] %v34
    %51 = vst [vmem:[#allocation2 + $0x2c] sm:$0xf] %v35
    %52 = vst [vmem:[#allocation2 + $0x30] sm:$0xf] %v36
    %53 = vst [vmem:[#allocation2 + $0x34] sm:$0xf] %v37
    %54 = vst [vmem:[#allocation2 + $0x38] sm:$0xf] %v38
    %55 = vst [vmem:[#allocation2 + $0x3c] sm:$0xf] %v39
    %v56 = vld [vmem:[%s2] sm:$0xff]
    %v57 = vld [vmem:[%s2 + $0x8] sm:$0xff]
    %v58 = vld [vmem:[%s2 + $0x10] sm:$0xff]
    %v59 = vld [vmem:[%s2 + $0x18] sm:$0xff]
    %v60 = vld [vmem:[%s2 + $0x20] sm:$0xff]
    %v61 = vld [vmem:[%s2 + $0x28] sm:$0xff]
    %v62 = vld [vmem:[%s2 + $0x30] sm:$0xff]
    %v63 = vld [vmem:[%s2 + $0x38] sm:$0xff]
    %v64 = vld [vmem:[%s2 + $0x40] sm:$0xff]
    %v65 = vld [vmem:[%s2 + $0x48] sm:$0xff]
    %v66 = vld [vmem:[%s2 + $0x50] sm:$0xff]
    %v67 = vld [vmem:[%s2 + $0x58] sm:$0xff]
    %v68 = vld [vmem:[%s2 + $0x60] sm:$0xff]
    %v69 = vld [vmem:[%s2 + $0x68] sm:$0xff]
    %v70 = vld [vmem:[%s2 + $0x70] sm:$0xff]
    %v71 = vld [vmem:[%s2 + $0x78] sm:$0xff]
    %72 = vst [vmem:[%s5] sm:$0xff] %v56
    %73 = vst [vmem:[%s5 + $0x8] sm:$0xff] %v57
    %74 = vst [vmem:[%s5 + $0x10] sm:$0xff] %v58
    %75 = vst [vmem:[%s5 + $0x18] sm:$0xff] %v59
    %76 = vst [vmem:[%s5 + $0x20] sm:$0xff] %v60
    %77 = vst [vmem:[%s5 + $0x28] sm:$0xff] %v61
    %78 = vst [vmem:[%s5 + $0x30] sm:$0xff] %v62
    %79 = vst [vmem:[%s5 + $0x38] sm:$0xff] %v63
    %80 = vst [vmem:[%s5 + $0x40] sm:$0xff] %v64
    %81 = vst [vmem:[%s5 + $0x48] sm:$0xff] %v65
    %82 = vst [vmem:[%s5 + $0x50] sm:$0xff] %v66
    %83 = vst [vmem:[%s5 + $0x58] sm:$0xff] %v67
    %84 = vst [vmem:[%s5 + $0x60] sm:$0xff] %v68
    %85 = vst [vmem:[%s5 + $0x68] sm:$0xff] %v69
    %86 = vst [vmem:[%s5 + $0x70] sm:$0xff] %v70
    %87 = vst [vmem:[%s5 + $0x78] sm:$0xff] %v71
  $region21: #{lstm_sequence.1} parent=0 // pred_fallthru
    _
  %v88 = vld [vmem:[%s0] sm:$0xff]
  %v89 = vld [vmem:[%s0 + $0x8] sm:$0xff]
  %v90 = vld [vmem:[%s0 + $0x10] sm:$0xff]
  %v91 = vld [vmem:[%s0 + $0x18] sm:$0xff]
  %v92 = vld [vmem:[%s0 + $0x20] sm:$0xff]
  %v93 = vld [vmem:[%s0 + $0x28] sm:$0xff]
  %v94 = vld [vmem:[%s0 + $0x30] sm:$0xff]
  %v95 = vld [vmem:[%s0 + $0x38] sm:$0xff]
  %v96 = vld [vmem:[%s0 + $0x40] sm:$0xff]
  %v97 = vld [vmem:[%s0 + $0x48] sm:$0xff]
  %v98 = vld [vmem:[%s0 + $0x50] sm:$0xff]
  %v99 = vld [vmem:[%s0 + $0x58] sm:$0xff]
  %v100 = vld [vmem:[%s0 + $0x60] sm:$0xff]
  %v101 = vld [vmem:[%s0 + $0x68] sm:$0xff]
  %v102 = vld [vmem:[%s0 + $0x70] sm:$0xff]
  %v103 = vld [vmem:[%s0 + $0x78] sm:$0xff]
  %v104 = vld [vmem:[#allocation2] sm:$0xf]
  %v105 = vld [vmem:[#allocation2 + $0x4] sm:$0xf]
  %v106 = vld [vmem:[#allocation2 + $0x8] sm:$0xf]
  %v107 = vld [vmem:[#allocation2 + $0xc] sm:$0xf]
  %v108 = vld [vmem:[#allocation2 + $0x10] sm:$0xf]
  %v109 = vld [vmem:[#allocation2 + $0x14] sm:$0xf]
  %v110 = vld [vmem:[#allocation2 + $0x18] sm:$0xf]
  %v111 = vld [vmem:[#allocation2 + $0x1c] sm:$0xf]
  %v112 = vld [vmem:[#allocation2 + $0x20] sm:$0xf]
  %v113 = vld [vmem:[#allocation2 + $0x24] sm:$0xf]
  %v114 = vld [vmem:[#allocation2 + $0x28] sm:$0xf]
  %v115 = vld [vmem:[#allocation2 + $0x2c] sm:$0xf]
  %v116 = vld [vmem:[#allocation2 + $0x30] sm:$0xf]
  %v117 = vld [vmem:[#allocation2 + $0x34] sm:$0xf]
  %v118 = vld [vmem:[#allocation2 + $0x38] sm:$0xf]
  %v119 = vld [vmem:[#allocation2 + $0x3c] sm:$0xf]
  %v120 = vld [vmem:[%s3] sm:$0xf]
  %v121 = vld [vmem:[%s3 + $0x4] sm:$0xf]
  %v122 = vld [vmem:[%s3 + $0x8] sm:$0xf]
  %v123 = vld [vmem:[%s3 + $0xc] sm:$0xf]
  %v124 = vld [vmem:[%s3 + $0x10] sm:$0xf]
  %v125 = vld [vmem:[%s3 + $0x14] sm:$0xf]
  %v126 = vld [vmem:[%s3 + $0x18] sm:$0xf]
  %v127 = vld [vmem:[%s3 + $0x1c] sm:$0xf]
  %v128 = vld [vmem:[%s3 + $0x20] sm:$0xf]
  %v129 = vld [vmem:[%s3 + $0x24] sm:$0xf]
  %v130 = vld [vmem:[%s3 + $0x28] sm:$0xf]
  %v131 = vld [vmem:[%s3 + $0x2c] sm:$0xf]
  %v132 = vld [vmem:[%s3 + $0x30] sm:$0xf]
  %v133 = vld [vmem:[%s3 + $0x34] sm:$0xf]
  %v134 = vld [vmem:[%s3 + $0x38] sm:$0xf]
  %v135 = vld [vmem:[%s3 + $0x3c] sm:$0xf]
  %v152 = vunpack.c.l.b16 %v104
  %v153 = vunpack.c.l.b16 %v105
  %v154 = vunpack.c.l.b16 %v106
  %v155 = vunpack.c.l.b16 %v107
  %v156 = vunpack.c.l.b16 %v108
  %v157 = vunpack.c.l.b16 %v109
  %v158 = vunpack.c.l.b16 %v110
  %v159 = vunpack.c.l.b16 %v111
  %v160 = vunpack.c.l.b16 %v112
  %v161 = vunpack.c.l.b16 %v113
  %v162 = vunpack.c.l.b16 %v114
  %v163 = vunpack.c.l.b16 %v115
  %v164 = vunpack.c.l.b16 %v116
  %v165 = vunpack.c.l.b16 %v117
  %v166 = vunpack.c.l.b16 %v118
  %v167 = vunpack.c.l.b16 %v119
  %v168 = vpack.c.b16 %v153, %v152
  %v169 = vpack.c.b16 %v155, %v154
  %v170 = vpack.c.b16 %v157, %v156
  %v171 = vpack.c.b16 %v159, %v158
  %v172 = vpack.c.b16 %v161, %v160
  %v173 = vpack.c.b16 %v163, %v162
  %v174 = vpack.c.b16 %v165, %v164
  %v175 = vpack.c.b16 %v167, %v166
  %v200 = vunpack.c.l.b16 %v120
  %v201 = vunpack.c.l.b16 %v121
  %v202 = vunpack.c.l.b16 %v122
  %v203 = vunpack.c.l.b16 %v123
  %v204 = vunpack.c.l.b16 %v124
  %v205 = vunpack.c.l.b16 %v125
  %v206 = vunpack.c.l.b16 %v126
  %v207 = vunpack.c.l.b16 %v127
  %v208 = vunpack.c.l.b16 %v128
  %v209 = vunpack.c.l.b16 %v129
  %v210 = vunpack.c.l.b16 %v130
  %v211 = vunpack.c.l.b16 %v131
  %v212 = vunpack.c.l.b16 %v132
  %v213 = vunpack.c.l.b16 %v133
  %v214 = vunpack.c.l.b16 %v134
  %v215 = vunpack.c.l.b16 %v135
  %v216 = vpack.c.b16 %v201, %v200
  %v217 = vpack.c.b16 %v203, %v202
  %v218 = vpack.c.b16 %v205, %v204
  %v219 = vpack.c.b16 %v207, %v206
  %v220 = vpack.c.b16 %v209, %v208
  %v221 = vpack.c.b16 %v211, %v210
  %v222 = vpack.c.b16 %v213, %v212
  %v223 = vpack.c.b16 %v215, %v214
  %232 = vmatprep.subr.bf16.mxu0 0
  %233 = vmatpush1.bf16.msra.mxu0 %v223
  %234 = vmatprep.subr.bf16.mxu0 0
  %235 = vmatpush1.bf16.msra.mxu0 %v222
  %236 = vmatprep.subr.bf16.mxu0 0
  %237 = vmatpush1.bf16.msra.mxu0 %v221
  %238 = vmatprep.subr.bf16.mxu0 0
  %239 = vmatpush1.bf16.msra.mxu0 %v220
  %240 = vmatprep.subr.bf16.mxu0 0
  %241 = vmatpush1.bf16.msra.mxu0 %v219
  %242 = vmatprep.subr.bf16.mxu0 0
  %243 = vmatpush1.bf16.msra.mxu0 %v218
  %244 = vmatprep.subr.bf16.mxu0 0
  %245 = vmatpush1.bf16.msra.mxu0 %v217
  %246 = vmatprep.subr.bf16.mxu0 0
  %247 = vmatpush1.bf16.msra.mxu0 %v216
  %248 = vmatprep.subr.bf16.mxu0 0
  %249 = vmatpush2.bf16.msra.mxu0 0
  %250 = vmatprep.subr.bf16.mxu0 0
  %251 = vmatpush2.bf16.msra.mxu0 0
  %252 = vmatprep.subr.bf16.mxu0 0
  %253 = vmatpush2.bf16.msra.mxu0 0
  %254 = vmatprep.subr.bf16.mxu0 0
  %255 = vmatpush2.bf16.msra.mxu0 0
  %256 = vmatprep.subr.bf16.mxu0 0
  %257 = vmatpush2.bf16.msra.mxu0 0
  %258 = vmatprep.subr.bf16.mxu0 0
  %259 = vmatpush2.bf16.msra.mxu0 0
  %260 = vmatprep.subr.bf16.mxu0 0
  %261 = vmatpush2.bf16.msra.mxu0 0
  %262 = vmatprep.subr.bf16.mxu0 0
  %263 = vmatpush2.bf16.msra.mxu0 0
  %264 = vmatprep.mubr.bf16.mxu0 0
  %265 = vmatmul.mubr.bf16.gmra.mxu0 %v168
  %v266 = vpop.f32.mrf.mxu0
  %v267 = vadd.f32 0.0, %v266
  %v268 = vpop.f32.mrf.mxu0
  %v269 = vpop.f32.mrf.mxu0
  %v270 = vadd.f32 0.0, %v269
  %v271 = vpop.f32.mrf.mxu0
  %272 = vmatprep.mubr.bf16.mxu0 0
  %273 = vmatmul.mubr.bf16.gmra.mxu0 %v169
  %v274 = vpop.f32.mrf.mxu0
  %v275 = vadd.f32 0.0, %v274
  %v276 = vpop.f32.mrf.mxu0
  %v277 = vpop.f32.mrf.mxu0
  %v278 = vadd.f32 0.0, %v277
  %v279 = vpop.f32.mrf.mxu0
  %280 = vmatprep.mubr.bf16.mxu0 0
  %281 = vmatmul.mubr.bf16.gmra.mxu0 %v170
  %v282 = vpop.f32.mrf.mxu0
  %v283 = vadd.f32 0.0, %v282
  %v284 = vpop.f32.mrf.mxu0
  %v285 = vpop.f32.mrf.mxu0
  %v286 = vadd.f32 0.0, %v285
  %v287 = vpop.f32.mrf.mxu0
  %288 = vmatprep.mubr.bf16.mxu0 0
  %289 = vmatmul.mubr.bf16.gmra.mxu0 %v171
  %v290 = vpop.f32.mrf.mxu0
  %v291 = vadd.f32 0.0, %v290
  %v292 = vpop.f32.mrf.mxu0
  %v293 = vpop.f32.mrf.mxu0
  %v294 = vadd.f32 0.0, %v293
  %v295 = vpop.f32.mrf.mxu0
  %296 = vmatprep.mubr.bf16.mxu0 0
  %297 = vmatmul.mubr.bf16.gmra.mxu0 %v172
  %v298 = vpop.f32.mrf.mxu0
  %v299 = vadd.f32 0.0, %v298
  %v300 = vpop.f32.mrf.mxu0
  %v301 = vpop.f32.mrf.mxu0
  %v302 = vadd.f32 0.0, %v301
  %v303 = vpop.f32.mrf.mxu0
  %304 = vmatprep.mubr.bf16.mxu0 0
  %305 = vmatmul.mubr.bf16.gmra.mxu0 %v173
  %v306 = vpop.f32.mrf.mxu0
  %v307 = vadd.f32 0.0, %v306
  %v308 = vpop.f32.mrf.mxu0
  %v309 = vpop.f32.mrf.mxu0
  %v310 = vadd.f32 0.0, %v309
  %v311 = vpop.f32.mrf.mxu0
  %312 = vmatprep.mubr.bf16.mxu0 0
  %313 = vmatmul.mubr.bf16.gmra.mxu0 %v174
  %v314 = vpop.f32.mrf.mxu0
  %v315 = vadd.f32 0.0, %v314
  %v316 = vpop.f32.mrf.mxu0
  %v317 = vpop.f32.mrf.mxu0
  %v318 = vadd.f32 0.0, %v317
  %v319 = vpop.f32.mrf.mxu0
  %320 = vmatprep.mubr.bf16.mxu0 0
  %321 = vmatmul.mubr.bf16.gmra.mxu0 %v175
  %v322 = vpop.f32.mrf.mxu0
  %v323 = vadd.f32 0.0, %v322
  %v324 = vpop.f32.mrf.mxu0
  %v325 = vpop.f32.mrf.mxu0
  %v326 = vadd.f32 0.0, %v325
  %v327 = vpop.f32.mrf.mxu0
  %328 = vdwg.mxu0
  %v329 = vadd.f32 %v88, %v267
  %v330 = vadd.f32 %v89, %v270
  %v331 = vadd.f32 %v90, %v275
  %v332 = vadd.f32 %v91, %v278
  %v333 = vadd.f32 %v92, %v283
  %v334 = vadd.f32 %v93, %v286
  %v335 = vadd.f32 %v94, %v291
  %v336 = vadd.f32 %v95, %v294
  %v337 = vadd.f32 %v96, %v299
  %v338 = vadd.f32 %v97, %v302
  %v339 = vadd.f32 %v98, %v307
  %v340 = vadd.f32 %v99, %v310
  %v341 = vadd.f32 %v100, %v315
  %v342 = vadd.f32 %v101, %v318
  %v343 = vadd.f32 %v102, %v323
  %v344 = vadd.f32 %v103, %v326
  %v345 = vmax.f32 %v329, -20.0
  %v346 = vmax.f32 %v330, -20.0
  %v347 = vmax.f32 %v331, -20.0
  %v348 = vmax.f32 %v332, -20.0
  %v349 = vmax.f32 %v333, -20.0
  %v350 = vmax.f32 %v334, -20.0
  %v351 = vmax.f32 %v335, -20.0
  %v352 = vmax.f32 %v336, -20.0
  %v353 = vmax.f32 %v337, -20.0
  %v354 = vmax.f32 %v338, -20.0
  %v355 = vmax.f32 %v339, -20.0
  %v356 = vmax.f32 %v340, -20.0
  %v357 = vmax.f32 %v341, -20.0
  %v358 = vmax.f32 %v342, -20.0
  %v359 = vmax.f32 %v343, -20.0
  %v360 = vmax.f32 %v344, -20.0
  %v361 = vmin.f32 %v345, 20.0
  %v362 = vmin.f32 %v346, 20.0
  %v363 = vmin.f32 %v347, 20.0
  %v364 = vmin.f32 %v348, 20.0
  %v365 = vmin.f32 %v349, 20.0
  %v366 = vmin.f32 %v350, 20.0
  %v367 = vmin.f32 %v351, 20.0
  %v368 = vmin.f32 %v352, 20.0
  %v369 = vmin.f32 %v353, 20.0
  %v370 = vmin.f32 %v354, 20.0
  %v371 = vmin.f32 %v355, 20.0
  %v372 = vmin.f32 %v356, 20.0
  %v373 = vmin.f32 %v357, 20.0
  %v374 = vmin.f32 %v358, 20.0
  %v375 = vmin.f32 %v359, 20.0
  %v376 = vmin.f32 %v360, 20.0
  %v377 = vsub.f32 0.0, %v361
  %v378 = vsub.f32 0.0, %v362
  %v379 = vsub.f32 0.0, %v363
  %v380 = vsub.f32 0.0, %v364
  %v381 = vsub.f32 0.0, %v365
  %v382 = vsub.f32 0.0, %v366
  %v383 = vsub.f32 0.0, %v367
  %v384 = vsub.f32 0.0, %v368
  %v385 = vsub.f32 0.0, %v369
  %v386 = vsub.f32 0.0, %v370
  %v387 = vsub.f32 0.0, %v371
  %v388 = vsub.f32 0.0, %v372
  %v389 = vsub.f32 0.0, %v373
  %v390 = vsub.f32 0.0, %v374
  %v391 = vsub.f32 0.0, %v375
  %v392 = vsub.f32 0.0, %v376
  %v393 = vmul.f32 %v377, 1.442695
  %v394 = vpow.pop %v393
  %v395 = vmul.f32 %v378, 1.442695
  %v396 = vpow.pop %v395
  %v397 = vmul.f32 %v379, 1.442695
  %v398 = vpow.pop %v397
  %v399 = vmul.f32 %v380, 1.442695
  %v400 = vpow.pop %v399
  %v401 = vmul.f32 %v381, 1.442695
  %v402 = vpow.pop %v401
  %v403 = vmul.f32 %v382, 1.442695
  %v404 = vpow.pop %v403
  %v405 = vmul.f32 %v383, 1.442695
  %v406 = vpow.pop %v405
  %v407 = vmul.f32 %v384, 1.442695
  %v408 = vpow.pop %v407
  %v409 = vmul.f32 %v385, 1.442695
  %v410 = vpow.pop %v409
  %v411 = vmul.f32 %v386, 1.442695
  %v412 = vpow.pop %v411
  %v413 = vmul.f32 %v387, 1.442695
  %v414 = vpow.pop %v413
  %v415 = vmul.f32 %v388, 1.442695
  %v416 = vpow.pop %v415
  %v417 = vmul.f32 %v389, 1.442695
  %v418 = vpow.pop %v417
  %v419 = vmul.f32 %v390, 1.442695
  %v420 = vpow.pop %v419
  %v421 = vmul.f32 %v391, 1.442695
  %v422 = vpow.pop %v421
  %v423 = vmul.f32 %v392, 1.442695
  %v424 = vpow.pop %v423
  %v425 = vadd.f32 %v394, 1.0
  %v426 = vadd.f32 %v396, 1.0
  %v427 = vadd.f32 %v398, 1.0
  %v428 = vadd.f32 %v400, 1.0
  %v429 = vadd.f32 %v402, 1.0
  %v430 = vadd.f32 %v404, 1.0
  %v431 = vadd.f32 %v406, 1.0
  %v432 = vadd.f32 %v408, 1.0
  %v433 = vadd.f32 %v410, 1.0
  %v434 = vadd.f32 %v412, 1.0
  %v435 = vadd.f32 %v414, 1.0
  %v436 = vadd.f32 %v416, 1.0
  %v437 = vadd.f32 %v418, 1.0
  %v438 = vadd.f32 %v420, 1.0
  %v439 = vadd.f32 %v422, 1.0
  %v440 = vadd.f32 %v424, 1.0
  %v441 = vrcp.pop %v425
  %v442 = vrcp.pop %v426
  %v443 = vrcp.pop %v427
  %v444 = vrcp.pop %v428
  %v445 = vrcp.pop %v429
  %v446 = vrcp.pop %v430
  %v447 = vrcp.pop %v431
  %v448 = vrcp.pop %v432
  %v449 = vrcp.pop %v433
  %v450 = vrcp.pop %v434
  %v451 = vrcp.pop %v435
  %v452 = vrcp.pop %v436
  %v453 = vrcp.pop %v437
  %v454 = vrcp.pop %v438
  %v455 = vrcp.pop %v439
  %v456 = vrcp.pop %v440
  %v457 = vmul.f32 %v394, %v394
  %v458 = vmul.f32 %v396, %v396
  %v459 = vmul.f32 %v398, %v398
  %v460 = vmul.f32 %v400, %v400
  %v461 = vmul.f32 %v402, %v402
  %v462 = vmul.f32 %v404, %v404
  %v463 = vmul.f32 %v406, %v406
  %v464 = vmul.f32 %v408, %v408
  %v465 = vmul.f32 %v410, %v410
  %v466 = vmul.f32 %v412, %v412
  %v467 = vmul.f32 %v414, %v414
  %v468 = vmul.f32 %v416, %v416
  %v469 = vmul.f32 %v418, %v418
  %v470 = vmul.f32 %v420, %v420
  %v471 = vmul.f32 %v422, %v422
  %v472 = vmul.f32 %v424, %v424
  %v473 = vsub.f32 1.0, %v457
  %v474 = vsub.f32 1.0, %v458
  %v475 = vsub.f32 1.0, %v459
  %v476 = vsub.f32 1.0, %v460
  %v477 = vsub.f32 1.0, %v461
  %v478 = vsub.f32 1.0, %v462
  %v479 = vsub.f32 1.0, %v463
  %v480 = vsub.f32 1.0, %v464
  %v481 = vsub.f32 1.0, %v465
  %v482 = vsub.f32 1.0, %v466
  %v483 = vsub.f32 1.0, %v467
  %v484 = vsub.f32 1.0, %v468
  %v485 = vsub.f32 1.0, %v469
  %v486 = vsub.f32 1.0, %v470
  %v487 = vsub.f32 1.0, %v471
  %v488 = vsub.f32 1.0, %v472
  %v489 = vadd.f32 %v457, 1.0
  %v490 = vadd.f32 %v458, 1.0
  %v491 = vadd.f32 %v459, 1.0
  %v492 = vadd.f32 %v460, 1.0
  %v493 = vadd.f32 %v461, 1.0
  %v494 = vadd.f32 %v462, 1.0
  %v495 = vadd.f32 %v463, 1.0
  %v496 = vadd.f32 %v464, 1.0
  %v497 = vadd.f32 %v465, 1.0
  %v498 = vadd.f32 %v466, 1.0
  %v499 = vadd.f32 %v467, 1.0
  %v500 = vadd.f32 %v468, 1.0
  %v501 = vadd.f32 %v469, 1.0
  %v502 = vadd.f32 %v470, 1.0
  %v503 = vadd.f32 %v471, 1.0
  %v504 = vadd.f32 %v472, 1.0
  %v505 = vrcp.pop %v489
  %v506 = vrcp.pop %v490
  %v507 = vrcp.pop %v491
  %v508 = vrcp.pop %v492
  %v509 = vrcp.pop %v493
  %v510 = vrcp.pop %v494
  %v511 = vrcp.pop %v495
  %v512 = vrcp.pop %v496
  %v513 = vrcp.pop %v497
  %v514 = vrcp.pop %v498
  %v515 = vrcp.pop %v499
  %v516 = vrcp.pop %v500
  %v517 = vrcp.pop %v501
  %v518 = vrcp.pop %v502
  %v519 = vrcp.pop %v503
  %v520 = vrcp.pop %v504
  %v521 = vmul.f32 %v473, %v505
  %v522 = vmul.f32 %v474, %v506
  %v523 = vmul.f32 %v475, %v507
  %v524 = vmul.f32 %v476, %v508
  %v525 = vmul.f32 %v477, %v509
  %v526 = vmul.f32 %v478, %v510
  %v527 = vmul.f32 %v479, %v511
  %v528 = vmul.f32 %v480, %v512
  %v529 = vmul.f32 %v481, %v513
  %v530 = vmul.f32 %v482, %v514
  %v531 = vmul.f32 %v483, %v515
  %v532 = vmul.f32 %v484, %v516
  %v533 = vmul.f32 %v485, %v517
  %v534 = vmul.f32 %v486, %v518
  %v535 = vmul.f32 %v487, %v519
  %v536 = vmul.f32 %v488, %v520
  %v537 = vld [vmem:[%s5] sm:$0xff]
  %v538 = vld [vmem:[%s5 + $0x8] sm:$0xff]
  %v539 = vld [vmem:[%s5 + $0x10] sm:$0xff]
  %v540 = vld [vmem:[%s5 + $0x18] sm:$0xff]
  %v541 = vld [vmem:[%s5 + $0x20] sm:$0xff]
  %v542 = vld [vmem:[%s5 + $0x28] sm:$0xff]
  %v543 = vld [vmem:[%s5 + $0x30] sm:$0xff]
  %v544 = vld [vmem:[%s5 + $0x38] sm:$0xff]
  %v545 = vld [vmem:[%s5 + $0x40] sm:$0xff]
  %v546 = vld [vmem:[%s5 + $0x48] sm:$0xff]
  %v547 = vld [vmem:[%s5 + $0x50] sm:$0xff]
  %v548 = vld [vmem:[%s5 + $0x58] sm:$0xff]
  %v549 = vld [vmem:[%s5 + $0x60] sm:$0xff]
  %v550 = vld [vmem:[%s5 + $0x68] sm:$0xff]
  %v551 = vld [vmem:[%s5 + $0x70] sm:$0xff]
  %v552 = vld [vmem:[%s5 + $0x78] sm:$0xff]
  %v553 = vadd.f32 %v537, %v521
  %v554 = vadd.f32 %v538, %v522
  %v555 = vadd.f32 %v539, %v523
  %v556 = vadd.f32 %v540, %v524
  %v557 = vadd.f32 %v541, %v525
  %v558 = vadd.f32 %v542, %v526
  %v559 = vadd.f32 %v543, %v527
  %v560 = vadd.f32 %v544, %v528
  %v561 = vadd.f32 %v545, %v529
  %v562 = vadd.f32 %v546, %v530
  %v563 = vadd.f32 %v547, %v531
  %v564 = vadd.f32 %v548, %v532
  %v565 = vadd.f32 %v549, %v533
  %v566 = vadd.f32 %v550, %v534
  %v567 = vadd.f32 %v551, %v535
  %v568 = vadd.f32 %v552, %v536
  %v569 = vmul.f32 %v441, %v553
  %v570 = vmul.f32 %v442, %v554
  %v571 = vmul.f32 %v443, %v555
  %v572 = vmul.f32 %v444, %v556
  %v573 = vmul.f32 %v445, %v557
  %v574 = vmul.f32 %v446, %v558
  %v575 = vmul.f32 %v447, %v559
  %v576 = vmul.f32 %v448, %v560
  %v577 = vmul.f32 %v449, %v561
  %v578 = vmul.f32 %v450, %v562
  %v579 = vmul.f32 %v451, %v563
  %v580 = vmul.f32 %v452, %v564
  %v581 = vmul.f32 %v453, %v565
  %v582 = vmul.f32 %v454, %v566
  %v583 = vmul.f32 %v455, %v567
  %v584 = vmul.f32 %v456, %v568
  %v585 = vtanh.pop %v569
  %v586 = vtanh.pop %v570
  %v587 = vtanh.pop %v571
  %v588 = vtanh.pop %v572
  %v589 = vtanh.pop %v573
  %v590 = vtanh.pop %v574
  %v591 = vtanh.pop %v575
  %v592 = vtanh.pop %v576
  %v593 = vtanh.pop %v577
  %v594 = vtanh.pop %v578
  %v595 = vtanh.pop %v579
  %v596 = vtanh.pop %v580
  %v597 = vtanh.pop %v581
  %v598 = vtanh.pop %v582
  %v599 = vtanh.pop %v583
  %v600 = vtanh.pop %v584
  %v601 = vmul.f32 %v441, %v585
  %v602 = vmul.f32 %v442, %v586
  %v603 = vmul.f32 %v443, %v587
  %v604 = vmul.f32 %v444, %v588
  %v605 = vmul.f32 %v445, %v589
  %v606 = vmul.f32 %v446, %v590
  %v607 = vmul.f32 %v447, %v591
  %v608 = vmul.f32 %v448, %v592
  %v609 = vmul.f32 %v449, %v593
  %v610 = vmul.f32 %v450, %v594
  %v611 = vmul.f32 %v451, %v595
  %v612 = vmul.f32 %v452, %v596
  %v613 = vmul.f32 %v453, %v597
  %v614 = vmul.f32 %v454, %v598
  %v615 = vmul.f32 %v455, %v599
  %v616 = vmul.f32 %v456, %v600
  %v617 = vpack.c.bf16 %v602, %v601
  %v618 = vpack.c.bf16 %v604, %v603
  %v619 = vpack.c.bf16 %v606, %v605
  %v620 = vpack.c.bf16 %v608, %v607
  %v621 = vpack.c.bf16 %v610, %v609
  %v622 = vpack.c.bf16 %v612, %v611
  %v623 = vpack.c.bf16 %v614, %v613
  %v624 = vpack.c.bf16 %v616, %v615
  %v633 = vunpack.c.l.b16 %v617
  %v634 = vunpack.c.h.b16 %v617
  %v635 = vunpack.c.l.b16 %v618
  %v636 = vunpack.c.h.b16 %v618
  %v637 = vunpack.c.l.b16 %v619
  %v638 = vunpack.c.h.b16 %v619
  %v639 = vunpack.c.l.b16 %v620
  %v640 = vunpack.c.h.b16 %v620
  %v641 = vunpack.c.l.b16 %v621
  %v642 = vunpack.c.h.b16 %v621
  %v643 = vunpack.c.l.b16 %v622
  %v644 = vunpack.c.h.b16 %v622
  %v645 = vunpack.c.l.b16 %v623
  %v646 = vunpack.c.h.b16 %v623
  %v647 = vunpack.c.l.b16 %v624
  %v648 = vunpack.c.h.b16 %v624
  %v649 = vpack.c.b16 %v633, %v633
  %v650 = vpack.c.b16 %v634, %v634
  %v651 = vpack.c.b16 %v635, %v635
  %v652 = vpack.c.b16 %v636, %v636
  %v653 = vpack.c.b16 %v637, %v637
  %v654 = vpack.c.b16 %v638, %v638
  %v655 = vpack.c.b16 %v639, %v639
  %v656 = vpack.c.b16 %v640, %v640
  %v657 = vpack.c.b16 %v641, %v641
  %v658 = vpack.c.b16 %v642, %v642
  %v659 = vpack.c.b16 %v643, %v643
  %v660 = vpack.c.b16 %v644, %v644
  %v661 = vpack.c.b16 %v645, %v645
  %v662 = vpack.c.b16 %v646, %v646
  %v663 = vpack.c.b16 %v647, %v647
  %v664 = vpack.c.b16 %v648, %v648
  %681 = vst [vmem:[#allocation2] sm:$0xf] %v649
  %682 = vst [vmem:[#allocation2 + $0x4] sm:$0xf] %v650
  %683 = vst [vmem:[#allocation2 + $0x8] sm:$0xf] %v651
  %684 = vst [vmem:[#allocation2 + $0xc] sm:$0xf] %v652
  %685 = vst [vmem:[#allocation2 + $0x10] sm:$0xf] %v653
  %686 = vst [vmem:[#allocation2 + $0x14] sm:$0xf] %v654
  %687 = vst [vmem:[#allocation2 + $0x18] sm:$0xf] %v655
  %688 = vst [vmem:[#allocation2 + $0x1c] sm:$0xf] %v656
  %689 = vst [vmem:[#allocation2 + $0x20] sm:$0xf] %v657
  %690 = vst [vmem:[#allocation2 + $0x24] sm:$0xf] %v658
  %691 = vst [vmem:[#allocation2 + $0x28] sm:$0xf] %v659
  %692 = vst [vmem:[#allocation2 + $0x2c] sm:$0xf] %v660
  %693 = vst [vmem:[#allocation2 + $0x30] sm:$0xf] %v661
  %694 = vst [vmem:[#allocation2 + $0x34] sm:$0xf] %v662
  %695 = vst [vmem:[#allocation2 + $0x38] sm:$0xf] %v663
  %696 = vst [vmem:[#allocation2 + $0x3c] sm:$0xf] %v664
  %697 = vst [vmem:[%s5] sm:$0xff] %v569
  %698 = vst [vmem:[%s5 + $0x8] sm:$0xff] %v570
  %699 = vst [vmem:[%s5 + $0x10] sm:$0xff] %v571
  %700 = vst [vmem:[%s5 + $0x18] sm:$0xff] %v572
  %701 = vst [vmem:[%s5 + $0x20] sm:$0xff] %v573
  %702 = vst [vmem:[%s5 + $0x28] sm:$0xff] %v574
  %703 = vst [vmem:[%s5 + $0x30] sm:$0xff] %v575
  %704 = vst [vmem:[%s5 + $0x38] sm:$0xff] %v576
  %705 = vst [vmem:[%s5 + $0x40] sm:$0xff] %v577
  %706 = vst [vmem:[%s5 + $0x48] sm:$0xff] %v578
  %707 = vst [vmem:[%s5 + $0x50] sm:$0xff] %v579
  %708 = vst [vmem:[%s5 + $0x58] sm:$0xff] %v580
  %709 = vst [vmem:[%s5 + $0x60] sm:$0xff] %v581
  %710 = vst [vmem:[%s5 + $0x68] sm:$0xff] %v582
  %711 = vst [vmem:[%s5 + $0x70] sm:$0xff] %v583
  %712 = vst [vmem:[%s5 + $0x78] sm:$0xff] %v584
  %713 = vst [vmem:[%s4] sm:$0xf] %v649
  %714 = vst [vmem:[%s4 + $0x4] sm:$0xf] %v650
  %715 = vst [vmem:[%s4 + $0x8] sm:$0xf] %v651
  %716 = vst [vmem:[%s4 + $0xc] sm:$0xf] %v652
  %717 = vst [vmem:[%s4 + $0x10] sm:$0xf] %v653
  %718 = vst [vmem:[%s4 + $0x14] sm:$0xf] %v654
  %719 = vst [vmem:[%s4 + $0x18] sm:$0xf] %v655
  %720 = vst [vmem:[%s4 + $0x1c] sm:$0xf] %v656
  %721 = vst [vmem:[%s4 + $0x20] sm:$0xf] %v657
  %722 = vst [vmem:[%s4 + $0x24] sm:$0xf] %v658
  %723 = vst [vmem:[%s4 + $0x28] sm:$0xf] %v659
  %724 = vst [vmem:[%s4 + $0x2c] sm:$0xf] %v660
  %725 = vst [vmem:[%s4 + $0x30] sm:$0xf] %v661
  %726 = vst [vmem:[%s4 + $0x34] sm:$0xf] %v662
  %727 = vst [vmem:[%s4 + $0x38] sm:$0xf] %v663
  %728 = vst [vmem:[%s4 + $0x3c] sm:$0xf] %v664
  %s729 = scalar_lea.vmem %s0, 128
  %v730 = vld [vmem:[%s729] sm:$0xff]
  %v731 = vld [vmem:[%s729 + $0x8] sm:$0xff]
  %v732 = vld [vmem:[%s729 + $0x10] sm:$0xff]
  %v733 = vld [vmem:[%s729 + $0x18] sm:$0xff]
  %v734 = vld [vmem:[%s729 + $0x20] sm:$0xff]
  %v735 = vld [vmem:[%s729 + $0x28] sm:$0xff]
  %v736 = vld [vmem:[%s729 + $0x30] sm:$0xff]
  %v737 = vld [vmem:[%s729 + $0x38] sm:$0xff]
  %v738 = vld [vmem:[%s729 + $0x40] sm:$0xff]
  %v739 = vld [vmem:[%s729 + $0x48] sm:$0xff]
  %v740 = vld [vmem:[%s729 + $0x50] sm:$0xff]
  %v741 = vld [vmem:[%s729 + $0x58] sm:$0xff]
  %v742 = vld [vmem:[%s729 + $0x60] sm:$0xff]
  %v743 = vld [vmem:[%s729 + $0x68] sm:$0xff]
  %v744 = vld [vmem:[%s729 + $0x70] sm:$0xff]
  %v745 = vld [vmem:[%s729 + $0x78] sm:$0xff]
  %v746 = vld [vmem:[#allocation2] sm:$0xf]
  %v747 = vld [vmem:[#allocation2 + $0x4] sm:$0xf]
  %v748 = vld [vmem:[#allocation2 + $0x8] sm:$0xf]
  %v749 = vld [vmem:[#allocation2 + $0xc] sm:$0xf]
  %v750 = vld [vmem:[#allocation2 + $0x10] sm:$0xf]
  %v751 = vld [vmem:[#allocation2 + $0x14] sm:$0xf]
  %v752 = vld [vmem:[#allocation2 + $0x18] sm:$0xf]
  %v753 = vld [vmem:[#allocation2 + $0x1c] sm:$0xf]
  %v754 = vld [vmem:[#allocation2 + $0x20] sm:$0xf]
  %v755 = vld [vmem:[#allocation2 + $0x24] sm:$0xf]
  %v756 = vld [vmem:[#allocation2 + $0x28] sm:$0xf]
  %v757 = vld [vmem:[#allocation2 + $0x2c] sm:$0xf]
  %v758 = vld [vmem:[#allocation2 + $0x30] sm:$0xf]
  %v759 = vld [vmem:[#allocation2 + $0x34] sm:$0xf]
  %v760 = vld [vmem:[#allocation2 + $0x38] sm:$0xf]
  %v761 = vld [vmem:[#allocation2 + $0x3c] sm:$0xf]
  %v762 = vld [vmem:[%s3] sm:$0xf]
  %v763 = vld [vmem:[%s3 + $0x4] sm:$0xf]
  %v764 = vld [vmem:[%s3 + $0x8] sm:$0xf]
  %v765 = vld [vmem:[%s3 + $0xc] sm:$0xf]
  %v766 = vld [vmem:[%s3 + $0x10] sm:$0xf]
  %v767 = vld [vmem:[%s3 + $0x14] sm:$0xf]
  %v768 = vld [vmem:[%s3 + $0x18] sm:$0xf]
  %v769 = vld [vmem:[%s3 + $0x1c] sm:$0xf]
  %v770 = vld [vmem:[%s3 + $0x20] sm:$0xf]
  %v771 = vld [vmem:[%s3 + $0x24] sm:$0xf]
  %v772 = vld [vmem:[%s3 + $0x28] sm:$0xf]
  %v773 = vld [vmem:[%s3 + $0x2c] sm:$0xf]
  %v774 = vld [vmem:[%s3 + $0x30] sm:$0xf]
  %v775 = vld [vmem:[%s3 + $0x34] sm:$0xf]
  %v776 = vld [vmem:[%s3 + $0x38] sm:$0xf]
  %v777 = vld [vmem:[%s3 + $0x3c] sm:$0xf]
  %v794 = vunpack.c.l.b16 %v746
  %v795 = vunpack.c.l.b16 %v747
  %v796 = vunpack.c.l.b16 %v748
  %v797 = vunpack.c.l.b16 %v749
  %v798 = vunpack.c.l.b16 %v750
  %v799 = vunpack.c.l.b16 %v751
  %v800 = vunpack.c.l.b16 %v752
  %v801 = vunpack.c.l.b16 %v753
  %v802 = vunpack.c.l.b16 %v754
  %v803 = vunpack.c.l.b16 %v755
  %v804 = vunpack.c.l.b16 %v756
  %v805 = vunpack.c.l.b16 %v757
  %v806 = vunpack.c.l.b16 %v758
  %v807 = vunpack.c.l.b16 %v759
  %v808 = vunpack.c.l.b16 %v760
  %v809 = vunpack.c.l.b16 %v761
  %v810 = vpack.c.b16 %v795, %v794
  %v811 = vpack.c.b16 %v797, %v796
  %v812 = vpack.c.b16 %v799, %v798
  %v813 = vpack.c.b16 %v801, %v800
  %v814 = vpack.c.b16 %v803, %v802
  %v815 = vpack.c.b16 %v805, %v804
  %v816 = vpack.c.b16 %v807, %v806
  %v817 = vpack.c.b16 %v809, %v808
  %v842 = vunpack.c.l.b16 %v762
  %v843 = vunpack.c.l.b16 %v763
  %v844 = vunpack.c.l.b16 %v764
  %v845 = vunpack.c.l.b16 %v765
  %v846 = vunpack.c.l.b16 %v766
  %v847 = vunpack.c.l.b16 %v767
  %v848 = vunpack.c.l.b16 %v768
  %v849 = vunpack.c.l.b16 %v769
  %v850 = vunpack.c.l.b16 %v770
  %v851 = vunpack.c.l.b16 %v771
  %v852 = vunpack.c.l.b16 %v772
  %v853 = vunpack.c.l.b16 %v773
  %v854 = vunpack.c.l.b16 %v774
  %v855 = vunpack.c.l.b16 %v775
  %v856 = vunpack.c.l.b16 %v776
  %v857 = vunpack.c.l.b16 %v777
  %v858 = vpack.c.b16 %v843, %v842
  %v859 = vpack.c.b16 %v845, %v844
  %v860 = vpack.c.b16 %v847, %v846
  %v861 = vpack.c.b16 %v849, %v848
  %v862 = vpack.c.b16 %v851, %v850
  %v863 = vpack.c.b16 %v853, %v852
  %v864 = vpack.c.b16 %v855, %v854
  %v865 = vpack.c.b16 %v857, %v856
  %874 = vmatprep.subr.bf16.mxu0 0
  %875 = vmatpush1.bf16.msra.mxu0 %v865
  %876 = vmatprep.subr.bf16.mxu0 0
  %877 = vmatpush1.bf16.msra.mxu0 %v864
  %878 = vmatprep.subr.bf16.mxu0 0
  %879 = vmatpush1.bf16.msra.mxu0 %v863
  %880 = vmatprep.subr.bf16.mxu0 0
  %881 = vmatpush1.bf16.msra.mxu0 %v862
  %882 = vmatprep.subr.bf16.mxu0 0
  %883 = vmatpush1.bf16.msra.mxu0 %v861
  %884 = vmatprep.subr.bf16.mxu0 0
  %885 = vmatpush1.bf16.msra.mxu0 %v860
  %886 = vmatprep.subr.bf16.mxu0 0
  %887 = vmatpush1.bf16.msra.mxu0 %v859
  %888 = vmatprep.subr.bf16.mxu0 0
  %889 = vmatpush1.bf16.msra.mxu0 %v858
  %890 = vmatprep.subr.bf16.mxu0 0
  %891 = vmatpush2.bf16.msra.mxu0 0
  %892 = vmatprep.subr.bf16.mxu0 0
  %893 = vmatpush2.bf16.msra.mxu0 0
  %894 = vmatprep.subr.bf16.mxu0 0
  %895 = vmatpush2.bf16.msra.mxu0 0
  %896 = vmatprep.subr.bf16.mxu0 0
  %897 = vmatpush2.bf16.msra.mxu0 0
  %898 = vmatprep.subr.bf16.mxu0 0
  %899 = vmatpush2.bf16.msra.mxu0 0
  %900 = vmatprep.subr.bf16.mxu0 0
  %901 = vmatpush2.bf16.msra.mxu0 0
  %902 = vmatprep.subr.bf16.mxu0 0
  %903 = vmatpush2.bf16.msra.mxu0 0
  %904 = vmatprep.subr.bf16.mxu0 0
  %905 = vmatpush2.bf16.msra.mxu0 0
  %906 = vmatprep.mubr.bf16.mxu0 0
  %907 = vmatmul.mubr.bf16.gmra.mxu0 %v810
  %v908 = vpop.f32.mrf.mxu0
  %v909 = vadd.f32 0.0, %v908
  %v910 = vpop.f32.mrf.mxu0
  %v911 = vpop.f32.mrf.mxu0
  %v912 = vadd.f32 0.0, %v911
  %v913 = vpop.f32.mrf.mxu0
  %914 = vmatprep.mubr.bf16.mxu0 0
  %915 = vmatmul.mubr.bf16.gmra.mxu0 %v811
  %v916 = vpop.f32.mrf.mxu0
  %v917 = vadd.f32 0.0, %v916
  %v918 = vpop.f32.mrf.mxu0
  %v919 = vpop.f32.mrf.mxu0
  %v920 = vadd.f32 0.0, %v919
  %v921 = vpop.f32.mrf.mxu0
  %922 = vmatprep.mubr.bf16.mxu0 0
  %923 = vmatmul.mubr.bf16.gmra.mxu0 %v812
  %v924 = vpop.f32.mrf.mxu0
  %v925 = vadd.f32 0.0, %v924
  %v926 = vpop.f32.mrf.mxu0
  %v927 = vpop.f32.mrf.mxu0
  %v928 = vadd.f32 0.0, %v927
  %v929 = vpop.f32.mrf.mxu0
  %930 = vmatprep.mubr.bf16.mxu0 0
  %931 = vmatmul.mubr.bf16.gmra.mxu0 %v813
  %v932 = vpop.f32.mrf.mxu0
  %v933 = vadd.f32 0.0, %v932
  %v934 = vpop.f32.mrf.mxu0
  %v935 = vpop.f32.mrf.mxu0
  %v936 = vadd.f32 0.0, %v935
  %v937 = vpop.f32.mrf.mxu0
  %938 = vmatprep.mubr.bf16.mxu0 0
  %939 = vmatmul.mubr.bf16.gmra.mxu0 %v814
  %v940 = vpop.f32.mrf.mxu0
  %v941 = vadd.f32 0.0, %v940
  %v942 = vpop.f32.mrf.mxu0
  %v943 = vpop.f32.mrf.mxu0
  %v944 = vadd.f32 0.0, %v943
  %v945 = vpop.f32.mrf.mxu0
  %946 = vmatprep.mubr.bf16.mxu0 0
  %947 = vmatmul.mubr.bf16.gmra.mxu0 %v815
  %v948 = vpop.f32.mrf.mxu0
  %v949 = vadd.f32 0.0, %v948
  %v950 = vpop.f32.mrf.mxu0
  %v951 = vpop.f32.mrf.mxu0
  %v952 = vadd.f32 0.0, %v951
  %v953 = vpop.f32.mrf.mxu0
  %954 = vmatprep.mubr.bf16.mxu0 0
  %955 = vmatmul.mubr.bf16.gmra.mxu0 %v816
  %v956 = vpop.f32.mrf.mxu0
  %v957 = vadd.f32 0.0, %v956
  %v958 = vpop.f32.mrf.mxu0
  %v959 = vpop.f32.mrf.mxu0
  %v960 = vadd.f32 0.0, %v959
  %v961 = vpop.f32.mrf.mxu0
  %962 = vmatprep.mubr.bf16.mxu0 0
  %963 = vmatmul.mubr.bf16.gmra.mxu0 %v817
  %v964 = vpop.f32.mrf.mxu0
  %v965 = vadd.f32 0.0, %v964
  %v966 = vpop.f32.mrf.mxu0
  %v967 = vpop.f32.mrf.mxu0
  %v968 = vadd.f32 0.0, %v967
  %v969 = vpop.f32.mrf.mxu0
  %970 = vdwg.mxu0
  %v971 = vadd.f32 %v730, %v909
  %v972 = vadd.f32 %v731, %v912
  %v973 = vadd.f32 %v732, %v917
  %v974 = vadd.f32 %v733, %v920
  %v975 = vadd.f32 %v734, %v925
  %v976 = vadd.f32 %v735, %v928
  %v977 = vadd.f32 %v736, %v933
  %v978 = vadd.f32 %v737, %v936
  %v979 = vadd.f32 %v738, %v941
  %v980 = vadd.f32 %v739, %v944
  %v981 = vadd.f32 %v740, %v949
  %v982 = vadd.f32 %v741, %v952
  %v983 = vadd.f32 %v742, %v957
  %v984 = vadd.f32 %v743, %v960
  %v985 = vadd.f32 %v744, %v965
  %v986 = vadd.f32 %v745, %v968
  %v987 = vmax.f32 %v971, -20.0
  %v988 = vmax.f32 %v972, -20.0
  %v989 = vmax.f32 %v973, -20.0
  %v990 = vmax.f32 %v974, -20.0
  %v991 = vmax.f32 %v975, -20.0
  %v992 = vmax.f32 %v976, -20.0
  %v993 = vmax.f32 %v977, -20.0
  %v994 = vmax.f32 %v978, -20.0
  %v995 = vmax.f32 %v979, -20.0
  %v996 = vmax.f32 %v980, -20.0
  %v997 = vmax.f32 %v981, -20.0
  %v998 = vmax.f32 %v982, -20.0
  %v999 = vmax.f32 %v983, -20.0
  %v1000 = vmax.f32 %v984, -20.0
  %v1001 = vmax.f32 %v985, -20.0
  %v1002 = vmax.f32 %v986, -20.0
  %v1003 = vmin.f32 %v987, 20.0
  %v1004 = vmin.f32 %v988, 20.0
  %v1005 = vmin.f32 %v989, 20.0
  %v1006 = vmin.f32 %v990, 20.0
  %v1007 = vmin.f32 %v991, 20.0
  %v1008 = vmin.f32 %v992, 20.0
  %v1009 = vmin.f32 %v993, 20.0
  %v1010 = vmin.f32 %v994, 20.0
  %v1011 = vmin.f32 %v995, 20.0
  %v1012 = vmin.f32 %v996, 20.0
  %v1013 = vmin.f32 %v997, 20.0
  %v1014 = vmin.f32 %v998, 20.0
  %v1015 = vmin.f32 %v999, 20.0
  %v1016 = vmin.f32 %v1000, 20.0
  %v1017 = vmin.f32 %v1001, 20.0
  %v1018 = vmin.f32 %v1002, 20.0
  %v1019 = vsub.f32 0.0, %v1003
  %v1020 = vsub.f32 0.0, %v1004
  %v1021 = vsub.f32 0.0, %v1005
  %v1022 = vsub.f32 0.0, %v1006
  %v1023 = vsub.f32 0.0, %v1007
  %v1024 = vsub.f32 0.0, %v1008
  %v1025 = vsub.f32 0.0, %v1009
  %v1026 = vsub.f32 0.0, %v1010
  %v1027 = vsub.f32 0.0, %v1011
  %v1028 = vsub.f32 0.0, %v1012
  %v1029 = vsub.f32 0.0, %v1013
  %v1030 = vsub.f32 0.0, %v1014
  %v1031 = vsub.f32 0.0, %v1015
  %v1032 = vsub.f32 0.0, %v1016
  %v1033 = vsub.f32 0.0, %v1017
  %v1034 = vsub.f32 0.0, %v1018
  %v1035 = vmul.f32 %v1019, 1.442695
  %v1036 = vpow.pop %v1035
  %v1037 = vmul.f32 %v1020, 1.442695
  %v1038 = vpow.pop %v1037
  %v1039 = vmul.f32 %v1021, 1.442695
  %v1040 = vpow.pop %v1039
  %v1041 = vmul.f32 %v1022, 1.442695
  %v1042 = vpow.pop %v1041
  %v1043 = vmul.f32 %v1023, 1.442695
  %v1044 = vpow.pop %v1043
  %v1045 = vmul.f32 %v1024, 1.442695
  %v1046 = vpow.pop %v1045
  %v1047 = vmul.f32 %v1025, 1.442695
  %v1048 = vpow.pop %v1047
  %v1049 = vmul.f32 %v1026, 1.442695
  %v1050 = vpow.pop %v1049
  %v1051 = vmul.f32 %v1027, 1.442695
  %v1052 = vpow.pop %v1051
  %v1053 = vmul.f32 %v1028, 1.442695
  %v1054 = vpow.pop %v1053
  %v1055 = vmul.f32 %v1029, 1.442695
  %v1056 = vpow.pop %v1055
  %v1057 = vmul.f32 %v1030, 1.442695
  %v1058 = vpow.pop %v1057
  %v1059 = vmul.f32 %v1031, 1.442695
  %v1060 = vpow.pop %v1059
  %v1061 = vmul.f32 %v1032, 1.442695
  %v1062 = vpow.pop %v1061
  %v1063 = vmul.f32 %v1033, 1.442695
  %v1064 = vpow.pop %v1063
  %v1065 = vmul.f32 %v1034, 1.442695
  %v1066 = vpow.pop %v1065
  %v1067 = vadd.f32 %v1036, 1.0
  %v1068 = vadd.f32 %v1038, 1.0
  %v1069 = vadd.f32 %v1040, 1.0
  %v1070 = vadd.f32 %v1042, 1.0
  %v1071 = vadd.f32 %v1044, 1.0
  %v1072 = vadd.f32 %v1046, 1.0
  %v1073 = vadd.f32 %v1048, 1.0
  %v1074 = vadd.f32 %v1050, 1.0
  %v1075 = vadd.f32 %v1052, 1.0
  %v1076 = vadd.f32 %v1054, 1.0
  %v1077 = vadd.f32 %v1056, 1.0
  %v1078 = vadd.f32 %v1058, 1.0
  %v1079 = vadd.f32 %v1060, 1.0
  %v1080 = vadd.f32 %v1062, 1.0
  %v1081 = vadd.f32 %v1064, 1.0
  %v1082 = vadd.f32 %v1066, 1.0
  %v1083 = vrcp.pop %v1067
  %v1084 = vrcp.pop %v1068
  %v1085 = vrcp.pop %v1069
  %v1086 = vrcp.pop %v1070
  %v1087 = vrcp.pop %v1071
  %v1088 = vrcp.pop %v1072
  %v1089 = vrcp.pop %v1073
  %v1090 = vrcp.pop %v1074
  %v1091 = vrcp.pop %v1075
  %v1092 = vrcp.pop %v1076
  %v1093 = vrcp.pop %v1077
  %v1094 = vrcp.pop %v1078
  %v1095 = vrcp.pop %v1079
  %v1096 = vrcp.pop %v1080
  %v1097 = vrcp.pop %v1081
  %v1098 = vrcp.pop %v1082
  %v1099 = vmul.f32 %v1036, %v1036
  %v1100 = vmul.f32 %v1038, %v1038
  %v1101 = vmul.f32 %v1040, %v1040
  %v1102 = vmul.f32 %v1042, %v1042
  %v1103 = vmul.f32 %v1044, %v1044
  %v1104 = vmul.f32 %v1046, %v1046
  %v1105 = vmul.f32 %v1048, %v1048
  %v1106 = vmul.f32 %v1050, %v1050
  %v1107 = vmul.f32 %v1052, %v1052
  %v1108 = vmul.f32 %v1054, %v1054
  %v1109 = vmul.f32 %v1056, %v1056
  %v1110 = vmul.f32 %v1058, %v1058
  %v1111 = vmul.f32 %v1060, %v1060
  %v1112 = vmul.f32 %v1062, %v1062
  %v1113 = vmul.f32 %v1064, %v1064
  %v1114 = vmul.f32 %v1066, %v1066
  %v1115 = vsub.f32 1.0, %v1099
  %v1116 = vsub.f32 1.0, %v1100
  %v1117 = vsub.f32 1.0, %v1101
  %v1118 = vsub.f32 1.0, %v1102
  %v1119 = vsub.f32 1.0, %v1103
  %v1120 = vsub.f32 1.0, %v1104
  %v1121 = vsub.f32 1.0, %v1105
  %v1122 = vsub.f32 1.0, %v1106
  %v1123 = vsub.f32 1.0, %v1107
  %v1124 = vsub.f32 1.0, %v1108
  %v1125 = vsub.f32 1.0, %v1109
  %v1126 = vsub.f32 1.0, %v1110
  %v1127 = vsub.f32 1.0, %v1111
  %v1128 = vsub.f32 1.0, %v1112
  %v1129 = vsub.f32 1.0, %v1113
  %v1130 = vsub.f32 1.0, %v1114
  %v1131 = vadd.f32 %v1099, 1.0
  %v1132 = vadd.f32 %v1100, 1.0
  %v1133 = vadd.f32 %v1101, 1.0
  %v1134 = vadd.f32 %v1102, 1.0
  %v1135 = vadd.f32 %v1103, 1.0
  %v1136 = vadd.f32 %v1104, 1.0
  %v1137 = vadd.f32 %v1105, 1.0
  %v1138 = vadd.f32 %v1106, 1.0
  %v1139 = vadd.f32 %v1107, 1.0
  %v1140 = vadd.f32 %v1108, 1.0
  %v1141 = vadd.f32 %v1109, 1.0
  %v1142 = vadd.f32 %v1110, 1.0
  %v1143 = vadd.f32 %v1111, 1.0
  %v1144 = vadd.f32 %v1112, 1.0
  %v1145 = vadd.f32 %v1113, 1.0
  %v1146 = vadd.f32 %v1114, 1.0
  %v1147 = vrcp.pop %v1131
  %v1148 = vrcp.pop %v1132
  %v1149 = vrcp.pop %v1133
  %v1150 = vrcp.pop %v1134
  %v1151 = vrcp.pop %v1135
  %v1152 = vrcp.pop %v1136
  %v1153 = vrcp.pop %v1137
  %v1154 = vrcp.pop %v1138
  %v1155 = vrcp.pop %v1139
  %v1156 = vrcp.pop %v1140
  %v1157 = vrcp.pop %v1141
  %v1158 = vrcp.pop %v1142
  %v1159 = vrcp.pop %v1143
  %v1160 = vrcp.pop %v1144
  %v1161 = vrcp.pop %v1145
  %v1162 = vrcp.pop %v1146
  %v1163 = vmul.f32 %v1115, %v1147
  %v1164 = vmul.f32 %v1116, %v1148
  %v1165 = vmul.f32 %v1117, %v1149
  %v1166 = vmul.f32 %v1118, %v1150
  %v1167 = vmul.f32 %v1119, %v1151
  %v1168 = vmul.f32 %v1120, %v1152
  %v1169 = vmul.f32 %v1121, %v1153
  %v1170 = vmul.f32 %v1122, %v1154
  %v1171 = vmul.f32 %v1123, %v1155
  %v1172 = vmul.f32 %v1124, %v1156
  %v1173 = vmul.f32 %v1125, %v1157
  %v1174 = vmul.f32 %v1126, %v1158
  %v1175 = vmul.f32 %v1127, %v1159
  %v1176 = vmul.f32 %v1128, %v1160
  %v1177 = vmul.f32 %v1129, %v1161
  %v1178 = vmul.f32 %v1130, %v1162
  %v1179 = vld [vmem:[%s5] sm:$0xff]
  %v1180 = vld [vmem:[%s5 + $0x8] sm:$0xff]
  %v1181 = vld [vmem:[%s5 + $0x10] sm:$0xff]
  %v1182 = vld [vmem:[%s5 + $0x18] sm:$0xff]
  %v1183 = vld [vmem:[%s5 + $0x20] sm:$0xff]
  %v1184 = vld [vmem:[%s5 + $0x28] sm:$0xff]
  %v1185 = vld [vmem:[%s5 + $0x30] sm:$0xff]
  %v1186 = vld [vmem:[%s5 + $0x38] sm:$0xff]
  %v1187 = vld [vmem:[%s5 + $0x40] sm:$0xff]
  %v1188 = vld [vmem:[%s5 + $0x48] sm:$0xff]
  %v1189 = vld [vmem:[%s5 + $0x50] sm:$0xff]
  %v1190 = vld [vmem:[%s5 + $0x58] sm:$0xff]
  %v1191 = vld [vmem:[%s5 + $0x60] sm:$0xff]
  %v1192 = vld [vmem:[%s5 + $0x68] sm:$0xff]
  %v1193 = vld [vmem:[%s5 + $0x70] sm:$0xff]
  %v1194 = vld [vmem:[%s5 + $0x78] sm:$0xff]
  %v1195 = vadd.f32 %v1179, %v1163
  %v1196 = vadd.f32 %v1180, %v1164
  %v1197 = vadd.f32 %v1181, %v1165
  %v1198 = vadd.f32 %v1182, %v1166
  %v1199 = vadd.f32 %v1183, %v1167
  %v1200 = vadd.f32 %v1184, %v1168
  %v1201 = vadd.f32 %v1185, %v1169
  %v1202 = vadd.f32 %v1186, %v1170
  %v1203 = vadd.f32 %v1187, %v1171
  %v1204 = vadd.f32 %v1188, %v1172
  %v1205 = vadd.f32 %v1189, %v1173
  %v1206 = vadd.f32 %v1190, %v1174
  %v1207 = vadd.f32 %v1191, %v1175
  %v1208 = vadd.f32 %v1192, %v1176
  %v1209 = vadd.f32 %v1193, %v1177
  %v1210 = vadd.f32 %v1194, %v1178
  %v1211 = vmul.f32 %v1083, %v1195
  %v1212 = vmul.f32 %v1084, %v1196
  %v1213 = vmul.f32 %v1085, %v1197
  %v1214 = vmul.f32 %v1086, %v1198
  %v1215 = vmul.f32 %v1087, %v1199
  %v1216 = vmul.f32 %v1088, %v1200
  %v1217 = vmul.f32 %v1089, %v1201
  %v1218 = vmul.f32 %v1090, %v1202
  %v1219 = vmul.f32 %v1091, %v1203
  %v1220 = vmul.f32 %v1092, %v1204
  %v1221 = vmul.f32 %v1093, %v1205
  %v1222 = vmul.f32 %v1094, %v1206
  %v1223 = vmul.f32 %v1095, %v1207
  %v1224 = vmul.f32 %v1096, %v1208
  %v1225 = vmul.f32 %v1097, %v1209
  %v1226 = vmul.f32 %v1098, %v1210
  %v1227 = vtanh.pop %v1211
  %v1228 = vtanh.pop %v1212
  %v1229 = vtanh.pop %v1213
  %v1230 = vtanh.pop %v1214
  %v1231 = vtanh.pop %v1215
  %v1232 = vtanh.pop %v1216
  %v1233 = vtanh.pop %v1217
  %v1234 = vtanh.pop %v1218
  %v1235 = vtanh.pop %v1219
  %v1236 = vtanh.pop %v1220
  %v1237 = vtanh.pop %v1221
  %v1238 = vtanh.pop %v1222
  %v1239 = vtanh.pop %v1223
  %v1240 = vtanh.pop %v1224
  %v1241 = vtanh.pop %v1225
  %v1242 = vtanh.pop %v1226
  %v1243 = vmul.f32 %v1083, %v1227
  %v1244 = vmul.f32 %v1084, %v1228
  %v1245 = vmul.f32 %v1085, %v1229
  %v1246 = vmul.f32 %v1086, %v1230
  %v1247 = vmul.f32 %v1087, %v1231
  %v1248 = vmul.f32 %v1088, %v1232
  %v1249 = vmul.f32 %v1089, %v1233
  %v1250 = vmul.f32 %v1090, %v1234
  %v1251 = vmul.f32 %v1091, %v1235
  %v1252 = vmul.f32 %v1092, %v1236
  %v1253 = vmul.f32 %v1093, %v1237
  %v1254 = vmul.f32 %v1094, %v1238
  %v1255 = vmul.f32 %v1095, %v1239
  %v1256 = vmul.f32 %v1096, %v1240
  %v1257 = vmul.f32 %v1097, %v1241
  %v1258 = vmul.f32 %v1098, %v1242
  %v1259 = vpack.c.bf16 %v1244, %v1243
  %v1260 = vpack.c.bf16 %v1246, %v1245
  %v1261 = vpack.c.bf16 %v1248, %v1247
  %v1262 = vpack.c.bf16 %v1250, %v1249
  %v1263 = vpack.c.bf16 %v1252, %v1251
  %v1264 = vpack.c.bf16 %v1254, %v1253
  %v1265 = vpack.c.bf16 %v1256, %v1255
  %v1266 = vpack.c.bf16 %v1258, %v1257
  %v1275 = vunpack.c.l.b16 %v1259
  %v1276 = vunpack.c.h.b16 %v1259
  %v1277 = vunpack.c.l.b16 %v1260
  %v1278 = vunpack.c.h.b16 %v1260
  %v1279 = vunpack.c.l.b16 %v1261
  %v1280 = vunpack.c.h.b16 %v1261
  %v1281 = vunpack.c.l.b16 %v1262
  %v1282 = vunpack.c.h.b16 %v1262
  %v1283 = vunpack.c.l.b16 %v1263
  %v1284 = vunpack.c.h.b16 %v1263
  %v1285 = vunpack.c.l.b16 %v1264
  %v1286 = vunpack.c.h.b16 %v1264
  %v1287 = vunpack.c.l.b16 %v1265
  %v1288 = vunpack.c.h.b16 %v1265
  %v1289 = vunpack.c.l.b16 %v1266
  %v1290 = vunpack.c.h.b16 %v1266
  %v1291 = vpack.c.b16 %v1275, %v1275
  %v1292 = vpack.c.b16 %v1276, %v1276
  %v1293 = vpack.c.b16 %v1277, %v1277
  %v1294 = vpack.c.b16 %v1278, %v1278
  %v1295 = vpack.c.b16 %v1279, %v1279
  %v1296 = vpack.c.b16 %v1280, %v1280
  %v1297 = vpack.c.b16 %v1281, %v1281
  %v1298 = vpack.c.b16 %v1282, %v1282
  %v1299 = vpack.c.b16 %v1283, %v1283
  %v1300 = vpack.c.b16 %v1284, %v1284
  %v1301 = vpack.c.b16 %v1285, %v1285
  %v1302 = vpack.c.b16 %v1286, %v1286
  %v1303 = vpack.c.b16 %v1287, %v1287
  %v1304 = vpack.c.b16 %v1288, %v1288
  %v1305 = vpack.c.b16 %v1289, %v1289
  %v1306 = vpack.c.b16 %v1290, %v1290
  %1323 = vst [vmem:[#allocation2] sm:$0xf] %v1291
  %1324 = vst [vmem:[#allocation2 + $0x4] sm:$0xf] %v1292
  %1325 = vst [vmem:[#allocation2 + $0x8] sm:$0xf] %v1293
  %1326 = vst [vmem:[#allocation2 + $0xc] sm:$0xf] %v1294
  %1327 = vst [vmem:[#allocation2 + $0x10] sm:$0xf] %v1295
  %1328 = vst [vmem:[#allocation2 + $0x14] sm:$0xf] %v1296
  %1329 = vst [vmem:[#allocation2 + $0x18] sm:$0xf] %v1297
  %1330 = vst [vmem:[#allocation2 + $0x1c] sm:$0xf] %v1298
  %1331 = vst [vmem:[#allocation2 + $0x20] sm:$0xf] %v1299
  %1332 = vst [vmem:[#allocation2 + $0x24] sm:$0xf] %v1300
  %1333 = vst [vmem:[#allocation2 + $0x28] sm:$0xf] %v1301
  %1334 = vst [vmem:[#allocation2 + $0x2c] sm:$0xf] %v1302
  %1335 = vst [vmem:[#allocation2 + $0x30] sm:$0xf] %v1303
  %1336 = vst [vmem:[#allocation2 + $0x34] sm:$0xf] %v1304
  %1337 = vst [vmem:[#allocation2 + $0x38] sm:$0xf] %v1305
  %1338 = vst [vmem:[#allocation2 + $0x3c] sm:$0xf] %v1306
  %1339 = vst [vmem:[%s5] sm:$0xff] %v1211
  %1340 = vst [vmem:[%s5 + $0x8] sm:$0xff] %v1212
  %1341 = vst [vmem:[%s5 + $0x10] sm:$0xff] %v1213
  %1342 = vst [vmem:[%s5 + $0x18] sm:$0xff] %v1214
  %1343 = vst [vmem:[%s5 + $0x20] sm:$0xff] %v1215
  %1344 = vst [vmem:[%s5 + $0x28] sm:$0xff] %v1216
  %1345 = vst [vmem:[%s5 + $0x30] sm:$0xff] %v1217
  %1346 = vst [vmem:[%s5 + $0x38] sm:$0xff] %v1218
  %1347 = vst [vmem:[%s5 + $0x40] sm:$0xff] %v1219
  %1348 = vst [vmem:[%s5 + $0x48] sm:$0xff] %v1220
  %1349 = vst [vmem:[%s5 + $0x50] sm:$0xff] %v1221
  %1350 = vst [vmem:[%s5 + $0x58] sm:$0xff] %v1222
  %1351 = vst [vmem:[%s5 + $0x60] sm:$0xff] %v1223
  %1352 = vst [vmem:[%s5 + $0x68] sm:$0xff] %v1224
  %1353 = vst [vmem:[%s5 + $0x70] sm:$0xff] %v1225
  %1354 = vst [vmem:[%s5 + $0x78] sm:$0xff] %v1226
  %s1355 = scalar_lea.vmem %s4, 64
  %1356 = vst [vmem:[%s1355] sm:$0xf] %v1291
  %1357 = vst [vmem:[%s1355 + $0x4] sm:$0xf] %v1292
  %1358 = vst [vmem:[%s1355 + $0x8] sm:$0xf] %v1293
  %1359 = vst [vmem:[%s1355 + $0xc] sm:$0xf] %v1294
  %1360 = vst [vmem:[%s1355 + $0x10] sm:$0xf] %v1295
  %1361 = vst [vmem:[%s1355 + $0x14] sm:$0xf] %v1296
  %1362 = vst [vmem:[%s1355 + $0x18] sm:$0xf] %v1297
  %1363 = vst [vmem:[%s1355 + $0x1c] sm:$0xf] %v1298
  %1364 = vst [vmem:[%s1355 + $0x20] sm:$0xf] %v1299
  %1365 = vst [vmem:[%s1355 + $0x24] sm:$0xf] %v1300
  %1366 = vst [vmem:[%s1355 + $0x28] sm:$0xf] %v1301
  %1367 = vst [vmem:[%s1355 + $0x2c] sm:$0xf] %v1302
  %1368 = vst [vmem:[%s1355 + $0x30] sm:$0xf] %v1303
  %1369 = vst [vmem:[%s1355 + $0x34] sm:$0xf] %v1304
  %1370 = vst [vmem:[%s1355 + $0x38] sm:$0xf] %v1305
  %1371 = vst [vmem:[%s1355 + $0x3c] sm:$0xf] %v1306
  %s1372 = scalar_lea.vmem %s0, 256
  %v1373 = vld [vmem:[%s1372] sm:$0xff]
  %v1374 = vld [vmem:[%s1372 + $0x8] sm:$0xff]
  %v1375 = vld [vmem:[%s1372 + $0x10] sm:$0xff]
  %v1376 = vld [vmem:[%s1372 + $0x18] sm:$0xff]
  %v1377 = vld [vmem:[%s1372 + $0x20] sm:$0xff]
  %v1378 = vld [vmem:[%s1372 + $0x28] sm:$0xff]
  %v1379 = vld [vmem:[%s1372 + $0x30] sm:$0xff]
  %v1380 = vld [vmem:[%s1372 + $0x38] sm:$0xff]
  %v1381 = vld [vmem:[%s1372 + $0x40] sm:$0xff]
  %v1382 = vld [vmem:[%s1372 + $0x48] sm:$0xff]
  %v1383 = vld [vmem:[%s1372 + $0x50] sm:$0xff]
  %v1384 = vld [vmem:[%s1372 + $0x58] sm:$0xff]
  %v1385 = vld [vmem:[%s1372 + $0x60] sm:$0xff]
  %v1386 = vld [vmem:[%s1372 + $0x68] sm:$0xff]
  %v1387 = vld [vmem:[%s1372 + $0x70] sm:$0xff]
  %v1388 = vld [vmem:[%s1372 + $0x78] sm:$0xff]
  %v1389 = vld [vmem:[#allocation2] sm:$0xf]
  %v1390 = vld [vmem:[#allocation2 + $0x4] sm:$0xf]
  %v1391 = vld [vmem:[#allocation2 + $0x8] sm:$0xf]
  %v1392 = vld [vmem:[#allocation2 + $0xc] sm:$0xf]
  %v1393 = vld [vmem:[#allocation2 + $0x10] sm:$0xf]
  %v1394 = vld [vmem:[#allocation2 + $0x14] sm:$0xf]
  %v1395 = vld [vmem:[#allocation2 + $0x18] sm:$0xf]
  %v1396 = vld [vmem:[#allocation2 + $0x1c] sm:$0xf]
  %v1397 = vld [vmem:[#allocation2 + $0x20] sm:$0xf]
  %v1398 = vld [vmem:[#allocation2 + $0x24] sm:$0xf]
  %v1399 = vld [vmem:[#allocation2 + $0x28] sm:$0xf]
  %v1400 = vld [vmem:[#allocation2 + $0x2c] sm:$0xf]
  %v1401 = vld [vmem:[#allocation2 + $0x30] sm:$0xf]
  %v1402 = vld [vmem:[#allocation2 + $0x34] sm:$0xf]
  %v1403 = vld [vmem:[#allocation2 + $0x38] sm:$0xf]
  %v1404 = vld [vmem:[#allocation2 + $0x3c] sm:$0xf]
  %v1405 = vld [vmem:[%s3] sm:$0xf]
  %v1406 = vld [vmem:[%s3 + $0x4] sm:$0xf]
  %v1407 = vld [vmem:[%s3 + $0x8] sm:$0xf]
  %v1408 = vld [vmem:[%s3 + $0xc] sm:$0xf]
  %v1409 = vld [vmem:[%s3 + $0x10] sm:$0xf]
  %v1410 = vld [vmem:[%s3 + $0x14] sm:$0xf]
  %v1411 = vld [vmem:[%s3 + $0x18] sm:$0xf]
  %v1412 = vld [vmem:[%s3 + $0x1c] sm:$0xf]
  %v1413 = vld [vmem:[%s3 + $0x20] sm:$0xf]
  %v1414 = vld [vmem:[%s3 + $0x24] sm:$0xf]
  %v1415 = vld [vmem:[%s3 + $0x28] sm:$0xf]
  %v1416 = vld [vmem:[%s3 + $0x2c] sm:$0xf]
  %v1417 = vld [vmem:[%s3 + $0x30] sm:$0xf]
  %v1418 = vld [vmem:[%s3 + $0x34] sm:$0xf]
  %v1419 = vld [vmem:[%s3 + $0x38] sm:$0xf]
  %v1420 = vld [vmem:[%s3 + $0x3c] sm:$0xf]
  %v1437 = vunpack.c.l.b16 %v1389
  %v1438 = vunpack.c.l.b16 %v1390
  %v1439 = vunpack.c.l.b16 %v1391
  %v1440 = vunpack.c.l.b16 %v1392
  %v1441 = vunpack.c.l.b16 %v1393
  %v1442 = vunpack.c.l.b16 %v1394
  %v1443 = vunpack.c.l.b16 %v1395
  %v1444 = vunpack.c.l.b16 %v1396
  %v1445 = vunpack.c.l.b16 %v1397
  %v1446 = vunpack.c.l.b16 %v1398
  %v1447 = vunpack.c.l.b16 %v1399
  %v1448 = vunpack.c.l.b16 %v1400
  %v1449 = vunpack.c.l.b16 %v1401
  %v1450 = vunpack.c.l.b16 %v1402
  %v1451 = vunpack.c.l.b16 %v1403
  %v1452 = vunpack.c.l.b16 %v1404
  %v1453 = vpack.c.b16 %v1438, %v1437
  %v1454 = vpack.c.b16 %v1440, %v1439
  %v1455 = vpack.c.b16 %v1442, %v1441
  %v1456 = vpack.c.b16 %v1444, %v1443
  %v1457 = vpack.c.b16 %v1446, %v1445
  %v1458 = vpack.c.b16 %v1448, %v1447
  %v1459 = vpack.c.b16 %v1450, %v1449
  %v1460 = vpack.c.b16 %v1452, %v1451
  %v1485 = vunpack.c.l.b16 %v1405
  %v1486 = vunpack.c.l.b16 %v1406
  %v1487 = vunpack.c.l.b16 %v1407
  %v1488 = vunpack.c.l.b16 %v1408
  %v1489 = vunpack.c.l.b16 %v1409
  %v1490 = vunpack.c.l.b16 %v1410
  %v1491 = vunpack.c.l.b16 %v1411
  %v1492 = vunpack.c.l.b16 %v1412
  %v1493 = vunpack.c.l.b16 %v1413
  %v1494 = vunpack.c.l.b16 %v1414
  %v1495 = vunpack.c.l.b16 %v1415
  %v1496 = vunpack.c.l.b16 %v1416
  %v1497 = vunpack.c.l.b16 %v1417
  %v1498 = vunpack.c.l.b16 %v1418
  %v1499 = vunpack.c.l.b16 %v1419
  %v1500 = vunpack.c.l.b16 %v1420
  %v1501 = vpack.c.b16 %v1486, %v1485
  %v1502 = vpack.c.b16 %v1488, %v1487
  %v1503 = vpack.c.b16 %v1490, %v1489
  %v1504 = vpack.c.b16 %v1492, %v1491
  %v1505 = vpack.c.b16 %v1494, %v1493
  %v1506 = vpack.c.b16 %v1496, %v1495
  %v1507 = vpack.c.b16 %v1498, %v1497
  %v1508 = vpack.c.b16 %v1500, %v1499
  %1517 = vmatprep.subr.bf16.mxu0 0
  %1518 = vmatpush1.bf16.msra.mxu0 %v1508
  %1519 = vmatprep.subr.bf16.mxu0 0
  %1520 = vmatpush1.bf16.msra.mxu0 %v1507
  %1521 = vmatprep.subr.bf16.mxu0 0
  %1522 = vmatpush1.bf16.msra.mxu0 %v1506
  %1523 = vmatprep.subr.bf16.mxu0 0
  %1524 = vmatpush1.bf16.msra.mxu0 %v1505
  %1525 = vmatprep.subr.bf16.mxu0 0
  %1526 = vmatpush1.bf16.msra.mxu0 %v1504
  %1527 = vmatprep.subr.bf16.mxu0 0
  %1528 = vmatpush1.bf16.msra.mxu0 %v1503
  %1529 = vmatprep.subr.bf16.mxu0 0
  %1530 = vmatpush1.bf16.msra.mxu0 %v1502
  %1531 = vmatprep.subr.bf16.mxu0 0
  %1532 = vmatpush1.bf16.msra.mxu0 %v1501
  %1533 = vmatprep.subr.bf16.mxu0 0
  %1534 = vmatpush2.bf16.msra.mxu0 0
  %1535 = vmatprep.subr.bf16.mxu0 0
  %1536 = vmatpush2.bf16.msra.mxu0 0
  %1537 = vmatprep.subr.bf16.mxu0 0
  %1538 = vmatpush2.bf16.msra.mxu0 0
  %1539 = vmatprep.subr.bf16.mxu0 0
  %1540 = vmatpush2.bf16.msra.mxu0 0
  %1541 = vmatprep.subr.bf16.mxu0 0
  %1542 = vmatpush2.bf16.msra.mxu0 0
  %1543 = vmatprep.subr.bf16.mxu0 0
  %1544 = vmatpush2.bf16.msra.mxu0 0
  %1545 = vmatprep.subr.bf16.mxu0 0
  %1546 = vmatpush2.bf16.msra.mxu0 0
  %1547 = vmatprep.subr.bf16.mxu0 0
  %1548 = vmatpush2.bf16.msra.mxu0 0
  %1549 = vmatprep.mubr.bf16.mxu0 0
  %1550 = vmatmul.mubr.bf16.gmra.mxu0 %v1453
  %v1551 = vpop.f32.mrf.mxu0
  %v1552 = vadd.f32 0.0, %v1551
  %v1553 = vpop.f32.mrf.mxu0
  %v1554 = vpop.f32.mrf.mxu0
  %v1555 = vadd.f32 0.0, %v1554
  %v1556 = vpop.f32.mrf.mxu0
  %1557 = vmatprep.mubr.bf16.mxu0 0
  %1558 = vmatmul.mubr.bf16.gmra.mxu0 %v1454
  %v1559 = vpop.f32.mrf.mxu0
  %v1560 = vadd.f32 0.0, %v1559
  %v1561 = vpop.f32.mrf.mxu0
  %v1562 = vpop.f32.mrf.mxu0
  %v1563 = vadd.f32 0.0, %v1562
  %v1564 = vpop.f32.mrf.mxu0
  %1565 = vmatprep.mubr.bf16.mxu0 0
  %1566 = vmatmul.mubr.bf16.gmra.mxu0 %v1455
  %v1567 = vpop.f32.mrf.mxu0
  %v1568 = vadd.f32 0.0, %v1567
  %v1569 = vpop.f32.mrf.mxu0
  %v1570 = vpop.f32.mrf.mxu0
  %v1571 = vadd.f32 0.0, %v1570
  %v1572 = vpop.f32.mrf.mxu0
  %1573 = vmatprep.mubr.bf16.mxu0 0
  %1574 = vmatmul.mubr.bf16.gmra.mxu0 %v1456
  %v1575 = vpop.f32.mrf.mxu0
  %v1576 = vadd.f32 0.0, %v1575
  %v1577 = vpop.f32.mrf.mxu0
  %v1578 = vpop.f32.mrf.mxu0
  %v1579 = vadd.f32 0.0, %v1578
  %v1580 = vpop.f32.mrf.mxu0
  %1581 = vmatprep.mubr.bf16.mxu0 0
  %1582 = vmatmul.mubr.bf16.gmra.mxu0 %v1457
  %v1583 = vpop.f32.mrf.mxu0
  %v1584 = vadd.f32 0.0, %v1583
  %v1585 = vpop.f32.mrf.mxu0
  %v1586 = vpop.f32.mrf.mxu0
  %v1587 = vadd.f32 0.0, %v1586
  %v1588 = vpop.f32.mrf.mxu0
  %1589 = vmatprep.mubr.bf16.mxu0 0
  %1590 = vmatmul.mubr.bf16.gmra.mxu0 %v1458
  %v1591 = vpop.f32.mrf.mxu0
  %v1592 = vadd.f32 0.0, %v1591
  %v1593 = vpop.f32.mrf.mxu0
  %v1594 = vpop.f32.mrf.mxu0
  %v1595 = vadd.f32 0.0, %v1594
  %v1596 = vpop.f32.mrf.mxu0
  %1597 = vmatprep.mubr.bf16.mxu0 0
  %1598 = vmatmul.mubr.bf16.gmra.mxu0 %v1459
  %v1599 = vpop.f32.mrf.mxu0
  %v1600 = vadd.f32 0.0, %v1599
  %v1601 = vpop.f32.mrf.mxu0
  %v1602 = vpop.f32.mrf.mxu0
  %v1603 = vadd.f32 0.0, %v1602
  %v1604 = vpop.f32.mrf.mxu0
  %1605 = vmatprep.mubr.bf16.mxu0 0
  %1606 = vmatmul.mubr.bf16.gmra.mxu0 %v1460
  %v1607 = vpop.f32.mrf.mxu0
  %v1608 = vadd.f32 0.0, %v1607
  %v1609 = vpop.f32.mrf.mxu0
  %v1610 = vpop.f32.mrf.mxu0
  %v1611 = vadd.f32 0.0, %v1610
  %v1612 = vpop.f32.mrf.mxu0
  %1613 = vdwg.mxu0
  %v1614 = vadd.f32 %v1373, %v1552
  %v1615 = vadd.f32 %v1374, %v1555
  %v1616 = vadd.f32 %v1375, %v1560
  %v1617 = vadd.f32 %v1376, %v1563
  %v1618 = vadd.f32 %v1377, %v1568
  %v1619 = vadd.f32 %v1378, %v1571
  %v1620 = vadd.f32 %v1379, %v1576
  %v1621 = vadd.f32 %v1380, %v1579
  %v1622 = vadd.f32 %v1381, %v1584
  %v1623 = vadd.f32 %v1382, %v1587
  %v1624 = vadd.f32 %v1383, %v1592
  %v1625 = vadd.f32 %v1384, %v1595
  %v1626 = vadd.f32 %v1385, %v1600
  %v1627 = vadd.f32 %v1386, %v1603
  %v1628 = vadd.f32 %v1387, %v1608
  %v1629 = vadd.f32 %v1388, %v1611
  %v1630 = vmax.f32 %v1614, -20.0
  %v1631 = vmax.f32 %v1615, -20.0
  %v1632 = vmax.f32 %v1616, -20.0
  %v1633 = vmax.f32 %v1617, -20.0
  %v1634 = vmax.f32 %v1618, -20.0
  %v1635 = vmax.f32 %v1619, -20.0
  %v1636 = vmax.f32 %v1620, -20.0
  %v1637 = vmax.f32 %v1621, -20.0
  %v1638 = vmax.f32 %v1622, -20.0
  %v1639 = vmax.f32 %v1623, -20.0
  %v1640 = vmax.f32 %v1624, -20.0
  %v1641 = vmax.f32 %v1625, -20.0
  %v1642 = vmax.f32 %v1626, -20.0
  %v1643 = vmax.f32 %v1627, -20.0
  %v1644 = vmax.f32 %v1628, -20.0
  %v1645 = vmax.f32 %v1629, -20.0
  %v1646 = vmin.f32 %v1630, 20.0
  %v1647 = vmin.f32 %v1631, 20.0
  %v1648 = vmin.f32 %v1632, 20.0
  %v1649 = vmin.f32 %v1633, 20.0
  %v1650 = vmin.f32 %v1634, 20.0
  %v1651 = vmin.f32 %v1635, 20.0
  %v1652 = vmin.f32 %v1636, 20.0
  %v1653 = vmin.f32 %v1637, 20.0
  %v1654 = vmin.f32 %v1638, 20.0
  %v1655 = vmin.f32 %v1639, 20.0
  %v1656 = vmin.f32 %v1640, 20.0
  %v1657 = vmin.f32 %v1641, 20.0
  %v1658 = vmin.f32 %v1642, 20.0
  %v1659 = vmin.f32 %v1643, 20.0
  %v1660 = vmin.f32 %v1644, 20.0
  %v1661 = vmin.f32 %v1645, 20.0
  %v1662 = vsub.f32 0.0, %v1646
  %v1663 = vsub.f32 0.0, %v1647
  %v1664 = vsub.f32 0.0, %v1648
  %v1665 = vsub.f32 0.0, %v1649
  %v1666 = vsub.f32 0.0, %v1650
  %v1667 = vsub.f32 0.0, %v1651
  %v1668 = vsub.f32 0.0, %v1652
  %v1669 = vsub.f32 0.0, %v1653
  %v1670 = vsub.f32 0.0, %v1654
  %v1671 = vsub.f32 0.0, %v1655
  %v1672 = vsub.f32 0.0, %v1656
  %v1673 = vsub.f32 0.0, %v1657
  %v1674 = vsub.f32 0.0, %v1658
  %v1675 = vsub.f32 0.0, %v1659
  %v1676 = vsub.f32 0.0, %v1660
  %v1677 = vsub.f32 0.0, %v1661
  %v1678 = vmul.f32 %v1662, 1.442695
  %v1679 = vpow.pop %v1678
  %v1680 = vmul.f32 %v1663, 1.442695
  %v1681 = vpow.pop %v1680
  %v1682 = vmul.f32 %v1664, 1.442695
  %v1683 = vpow.pop %v1682
  %v1684 = vmul.f32 %v1665, 1.442695
  %v1685 = vpow.pop %v1684
  %v1686 = vmul.f32 %v1666, 1.442695
  %v1687 = vpow.pop %v1686
  %v1688 = vmul.f32 %v1667, 1.442695
  %v1689 = vpow.pop %v1688
  %v1690 = vmul.f32 %v1668, 1.442695
  %v1691 = vpow.pop %v1690
  %v1692 = vmul.f32 %v1669, 1.442695
  %v1693 = vpow.pop %v1692
  %v1694 = vmul.f32 %v1670, 1.442695
  %v1695 = vpow.pop %v1694
  %v1696 = vmul.f32 %v1671, 1.442695
  %v1697 = vpow.pop %v1696
  %v1698 = vmul.f32 %v1672, 1.442695
  %v1699 = vpow.pop %v1698
  %v1700 = vmul.f32 %v1673, 1.442695
  %v1701 = vpow.pop %v1700
  %v1702 = vmul.f32 %v1674, 1.442695
  %v1703 = vpow.pop %v1702
  %v1704 = vmul.f32 %v1675, 1.442695
  %v1705 = vpow.pop %v1704
  %v1706 = vmul.f32 %v1676, 1.442695
  %v1707 = vpow.pop %v1706
  %v1708 = vmul.f32 %v1677, 1.442695
  %v1709 = vpow.pop %v1708
  %v1710 = vadd.f32 %v1679, 1.0
  %v1711 = vadd.f32 %v1681, 1.0
  %v1712 = vadd.f32 %v1683, 1.0
  %v1713 = vadd.f32 %v1685, 1.0
  %v1714 = vadd.f32 %v1687, 1.0
  %v1715 = vadd.f32 %v1689, 1.0
  %v1716 = vadd.f32 %v1691, 1.0
  %v1717 = vadd.f32 %v1693, 1.0
  %v1718 = vadd.f32 %v1695, 1.0
  %v1719 = vadd.f32 %v1697, 1.0
  %v1720 = vadd.f32 %v1699, 1.0
  %v1721 = vadd.f32 %v1701, 1.0
  %v1722 = vadd.f32 %v1703, 1.0
  %v1723 = vadd.f32 %v1705, 1.0
  %v1724 = vadd.f32 %v1707, 1.0
  %v1725 = vadd.f32 %v1709, 1.0
  %v1726 = vrcp.pop %v1710
  %v1727 = vrcp.pop %v1711
  %v1728 = vrcp.pop %v1712
  %v1729 = vrcp.pop %v1713
  %v1730 = vrcp.pop %v1714
  %v1731 = vrcp.pop %v1715
  %v1732 = vrcp.pop %v1716
  %v1733 = vrcp.pop %v1717
  %v1734 = vrcp.pop %v1718
  %v1735 = vrcp.pop %v1719
  %v1736 = vrcp.pop %v1720
  %v1737 = vrcp.pop %v1721
  %v1738 = vrcp.pop %v1722
  %v1739 = vrcp.pop %v1723
  %v1740 = vrcp.pop %v1724
  %v1741 = vrcp.pop %v1725
  %v1742 = vmul.f32 %v1679, %v1679
  %v1743 = vmul.f32 %v1681, %v1681
  %v1744 = vmul.f32 %v1683, %v1683
  %v1745 = vmul.f32 %v1685, %v1685
  %v1746 = vmul.f32 %v1687, %v1687
  %v1747 = vmul.f32 %v1689, %v1689
  %v1748 = vmul.f32 %v1691, %v1691
  %v1749 = vmul.f32 %v1693, %v1693
  %v1750 = vmul.f32 %v1695, %v1695
  %v1751 = vmul.f32 %v1697, %v1697
  %v1752 = vmul.f32 %v1699, %v1699
  %v1753 = vmul.f32 %v1701, %v1701
  %v1754 = vmul.f32 %v1703, %v1703
  %v1755 = vmul.f32 %v1705, %v1705
  %v1756 = vmul.f32 %v1707, %v1707
  %v1757 = vmul.f32 %v1709, %v1709
  %v1758 = vsub.f32 1.0, %v1742
  %v1759 = vsub.f32 1.0, %v1743
  %v1760 = vsub.f32 1.0, %v1744
  %v1761 = vsub.f32 1.0, %v1745
  %v1762 = vsub.f32 1.0, %v1746
  %v1763 = vsub.f32 1.0, %v1747
  %v1764 = vsub.f32 1.0, %v1748
  %v1765 = vsub.f32 1.0, %v1749
  %v1766 = vsub.f32 1.0, %v1750
  %v1767 = vsub.f32 1.0, %v1751
  %v1768 = vsub.f32 1.0, %v1752
  %v1769 = vsub.f32 1.0, %v1753
  %v1770 = vsub.f32 1.0, %v1754
  %v1771 = vsub.f32 1.0, %v1755
  %v1772 = vsub.f32 1.0, %v1756
  %v1773 = vsub.f32 1.0, %v1757
  %v1774 = vadd.f32 %v1742, 1.0
  %v1775 = vadd.f32 %v1743, 1.0
  %v1776 = vadd.f32 %v1744, 1.0
  %v1777 = vadd.f32 %v1745, 1.0
  %v1778 = vadd.f32 %v1746, 1.0
  %v1779 = vadd.f32 %v1747, 1.0
  %v1780 = vadd.f32 %v1748, 1.0
  %v1781 = vadd.f32 %v1749, 1.0
  %v1782 = vadd.f32 %v1750, 1.0
  %v1783 = vadd.f32 %v1751, 1.0
  %v1784 = vadd.f32 %v1752, 1.0
  %v1785 = vadd.f32 %v1753, 1.0
  %v1786 = vadd.f32 %v1754, 1.0
  %v1787 = vadd.f32 %v1755, 1.0
  %v1788 = vadd.f32 %v1756, 1.0
  %v1789 = vadd.f32 %v1757, 1.0
  %v1790 = vrcp.pop %v1774
  %v1791 = vrcp.pop %v1775
  %v1792 = vrcp.pop %v1776
  %v1793 = vrcp.pop %v1777
  %v1794 = vrcp.pop %v1778
  %v1795 = vrcp.pop %v1779
  %v1796 = vrcp.pop %v1780
  %v1797 = vrcp.pop %v1781
  %v1798 = vrcp.pop %v1782
  %v1799 = vrcp.pop %v1783
  %v1800 = vrcp.pop %v1784
  %v1801 = vrcp.pop %v1785
  %v1802 = vrcp.pop %v1786
  %v1803 = vrcp.pop %v1787
  %v1804 = vrcp.pop %v1788
  %v1805 = vrcp.pop %v1789
  %v1806 = vmul.f32 %v1758, %v1790
  %v1807 = vmul.f32 %v1759, %v1791
  %v1808 = vmul.f32 %v1760, %v1792
  %v1809 = vmul.f32 %v1761, %v1793
  %v1810 = vmul.f32 %v1762, %v1794
  %v1811 = vmul.f32 %v1763, %v1795
  %v1812 = vmul.f32 %v1764, %v1796
  %v1813 = vmul.f32 %v1765, %v1797
  %v1814 = vmul.f32 %v1766, %v1798
  %v1815 = vmul.f32 %v1767, %v1799
  %v1816 = vmul.f32 %v1768, %v1800
  %v1817 = vmul.f32 %v1769, %v1801
  %v1818 = vmul.f32 %v1770, %v1802
  %v1819 = vmul.f32 %v1771, %v1803
  %v1820 = vmul.f32 %v1772, %v1804
  %v1821 = vmul.f32 %v1773, %v1805
  %v1822 = vld [vmem:[%s5] sm:$0xff]
  %v1823 = vld [vmem:[%s5 + $0x8] sm:$0xff]
  %v1824 = vld [vmem:[%s5 + $0x10] sm:$0xff]
  %v1825 = vld [vmem:[%s5 + $0x18] sm:$0xff]
  %v1826 = vld [vmem:[%s5 + $0x20] sm:$0xff]
  %v1827 = vld [vmem:[%s5 + $0x28] sm:$0xff]
  %v1828 = vld [vmem:[%s5 + $0x30] sm:$0xff]
  %v1829 = vld [vmem:[%s5 + $0x38] sm:$0xff]
  %v1830 = vld [vmem:[%s5 + $0x40] sm:$0xff]
  %v1831 = vld [vmem:[%s5 + $0x48] sm:$0xff]
  %v1832 = vld [vmem:[%s5 + $0x50] sm:$0xff]
  %v1833 = vld [vmem:[%s5 + $0x58] sm:$0xff]
  %v1834 = vld [vmem:[%s5 + $0x60] sm:$0xff]
  %v1835 = vld [vmem:[%s5 + $0x68] sm:$0xff]
  %v1836 = vld [vmem:[%s5 + $0x70] sm:$0xff]
  %v1837 = vld [vmem:[%s5 + $0x78] sm:$0xff]
  %v1838 = vadd.f32 %v1822, %v1806
  %v1839 = vadd.f32 %v1823, %v1807
  %v1840 = vadd.f32 %v1824, %v1808
  %v1841 = vadd.f32 %v1825, %v1809
  %v1842 = vadd.f32 %v1826, %v1810
  %v1843 = vadd.f32 %v1827, %v1811
  %v1844 = vadd.f32 %v1828, %v1812
  %v1845 = vadd.f32 %v1829, %v1813
  %v1846 = vadd.f32 %v1830, %v1814
  %v1847 = vadd.f32 %v1831, %v1815
  %v1848 = vadd.f32 %v1832, %v1816
  %v1849 = vadd.f32 %v1833, %v1817
  %v1850 = vadd.f32 %v1834, %v1818
  %v1851 = vadd.f32 %v1835, %v1819
  %v1852 = vadd.f32 %v1836, %v1820
  %v1853 = vadd.f32 %v1837, %v1821
  %v1854 = vmul.f32 %v1726, %v1838
  %v1855 = vmul.f32 %v1727, %v1839
  %v1856 = vmul.f32 %v1728, %v1840
  %v1857 = vmul.f32 %v1729, %v1841
  %v1858 = vmul.f32 %v1730, %v1842
  %v1859 = vmul.f32 %v1731, %v1843
  %v1860 = vmul.f32 %v1732, %v1844
  %v1861 = vmul.f32 %v1733, %v1845
  %v1862 = vmul.f32 %v1734, %v1846
  %v1863 = vmul.f32 %v1735, %v1847
  %v1864 = vmul.f32 %v1736, %v1848
  %v1865 = vmul.f32 %v1737, %v1849
  %v1866 = vmul.f32 %v1738, %v1850
  %v1867 = vmul.f32 %v1739, %v1851
  %v1868 = vmul.f32 %v1740, %v1852
  %v1869 = vmul.f32 %v1741, %v1853
  %v1870 = vtanh.pop %v1854
  %v1871 = vtanh.pop %v1855
  %v1872 = vtanh.pop %v1856
  %v1873 = vtanh.pop %v1857
  %v1874 = vtanh.pop %v1858
  %v1875 = vtanh.pop %v1859
  %v1876 = vtanh.pop %v1860
  %v1877 = vtanh.pop %v1861
  %v1878 = vtanh.pop %v1862
  %v1879 = vtanh.pop %v1863
  %v1880 = vtanh.pop %v1864
  %v1881 = vtanh.pop %v1865
  %v1882 = vtanh.pop %v1866
  %v1883 = vtanh.pop %v1867
  %v1884 = vtanh.pop %v1868
  %v1885 = vtanh.pop %v1869
  %v1886 = vmul.f32 %v1726, %v1870
  %v1887 = vmul.f32 %v1727, %v1871
  %v1888 = vmul.f32 %v1728, %v1872
  %v1889 = vmul.f32 %v1729, %v1873
  %v1890 = vmul.f32 %v1730, %v1874
  %v1891 = vmul.f32 %v1731, %v1875
  %v1892 = vmul.f32 %v1732, %v1876
  %v1893 = vmul.f32 %v1733, %v1877
  %v1894 = vmul.f32 %v1734, %v1878
  %v1895 = vmul.f32 %v1735, %v1879
  %v1896 = vmul.f32 %v1736, %v1880
  %v1897 = vmul.f32 %v1737, %v1881
  %v1898 = vmul.f32 %v1738, %v1882
  %v1899 = vmul.f32 %v1739, %v1883
  %v1900 = vmul.f32 %v1740, %v1884
  %v1901 = vmul.f32 %v1741, %v1885
  %v1902 = vpack.c.bf16 %v1887, %v1886
  %v1903 = vpack.c.bf16 %v1889, %v1888
  %v1904 = vpack.c.bf16 %v1891, %v1890
  %v1905 = vpack.c.bf16 %v1893, %v1892
  %v1906 = vpack.c.bf16 %v1895, %v1894
  %v1907 = vpack.c.bf16 %v1897, %v1896
  %v1908 = vpack.c.bf16 %v1899, %v1898
  %v1909 = vpack.c.bf16 %v1901, %v1900
  %v1918 = vunpack.c.l.b16 %v1902
  %v1919 = vunpack.c.h.b16 %v1902
  %v1920 = vunpack.c.l.b16 %v1903
  %v1921 = vunpack.c.h.b16 %v1903
  %v1922 = vunpack.c.l.b16 %v1904
  %v1923 = vunpack.c.h.b16 %v1904
  %v1924 = vunpack.c.l.b16 %v1905
  %v1925 = vunpack.c.h.b16 %v1905
  %v1926 = vunpack.c.l.b16 %v1906
  %v1927 = vunpack.c.h.b16 %v1906
  %v1928 = vunpack.c.l.b16 %v1907
  %v1929 = vunpack.c.h.b16 %v1907
  %v1930 = vunpack.c.l.b16 %v1908
  %v1931 = vunpack.c.h.b16 %v1908
  %v1932 = vunpack.c.l.b16 %v1909
  %v1933 = vunpack.c.h.b16 %v1909
  %v1934 = vpack.c.b16 %v1918, %v1918
  %v1935 = vpack.c.b16 %v1919, %v1919
  %v1936 = vpack.c.b16 %v1920, %v1920
  %v1937 = vpack.c.b16 %v1921, %v1921
  %v1938 = vpack.c.b16 %v1922, %v1922
  %v1939 = vpack.c.b16 %v1923, %v1923
  %v1940 = vpack.c.b16 %v1924, %v1924
  %v1941 = vpack.c.b16 %v1925, %v1925
  %v1942 = vpack.c.b16 %v1926, %v1926
  %v1943 = vpack.c.b16 %v1927, %v1927
  %v1944 = vpack.c.b16 %v1928, %v1928
  %v1945 = vpack.c.b16 %v1929, %v1929
  %v1946 = vpack.c.b16 %v1930, %v1930
  %v1947 = vpack.c.b16 %v1931, %v1931
  %v1948 = vpack.c.b16 %v1932, %v1932
  %v1949 = vpack.c.b16 %v1933, %v1933
  %1966 = vst [vmem:[#allocation2] sm:$0xf] %v1934
  %1967 = vst [vmem:[#allocation2 + $0x4] sm:$0xf] %v1935
  %1968 = vst [vmem:[#allocation2 + $0x8] sm:$0xf] %v1936
  %1969 = vst [vmem:[#allocation2 + $0xc] sm:$0xf] %v1937
  %1970 = vst [vmem:[#allocation2 + $0x10] sm:$0xf] %v1938
  %1971 = vst [vmem:[#allocation2 + $0x14] sm:$0xf] %v1939
  %1972 = vst [vmem:[#allocation2 + $0x18] sm:$0xf] %v1940
  %1973 = vst [vmem:[#allocation2 + $0x1c] sm:$0xf] %v1941
  %1974 = vst [vmem:[#allocation2 + $0x20] sm:$0xf] %v1942
  %1975 = vst [vmem:[#allocation2 + $0x24] sm:$0xf] %v1943
  %1976 = vst [vmem:[#allocation2 + $0x28] sm:$0xf] %v1944
  %1977 = vst [vmem:[#allocation2 + $0x2c] sm:$0xf] %v1945
  %1978 = vst [vmem:[#allocation2 + $0x30] sm:$0xf] %v1946
  %1979 = vst [vmem:[#allocation2 + $0x34] sm:$0xf] %v1947
  %1980 = vst [vmem:[#allocation2 + $0x38] sm:$0xf] %v1948
  %1981 = vst [vmem:[#allocation2 + $0x3c] sm:$0xf] %v1949
  %1982 = vst [vmem:[%s5] sm:$0xff] %v1854
  %1983 = vst [vmem:[%s5 + $0x8] sm:$0xff] %v1855
  %1984 = vst [vmem:[%s5 + $0x10] sm:$0xff] %v1856
  %1985 = vst [vmem:[%s5 + $0x18] sm:$0xff] %v1857
  %1986 = vst [vmem:[%s5 + $0x20] sm:$0xff] %v1858
  %1987 = vst [vmem:[%s5 + $0x28] sm:$0xff] %v1859
  %1988 = vst [vmem:[%s5 + $0x30] sm:$0xff] %v1860
  %1989 = vst [vmem:[%s5 + $0x38] sm:$0xff] %v1861
  %1990 = vst [vmem:[%s5 + $0x40] sm:$0xff] %v1862
  %1991 = vst [vmem:[%s5 + $0x48] sm:$0xff] %v1863
  %1992 = vst [vmem:[%s5 + $0x50] sm:$0xff] %v1864
  %1993 = vst [vmem:[%s5 + $0x58] sm:$0xff] %v1865
  %1994 = vst [vmem:[%s5 + $0x60] sm:$0xff] %v1866
  %1995 = vst [vmem:[%s5 + $0x68] sm:$0xff] %v1867
  %1996 = vst [vmem:[%s5 + $0x70] sm:$0xff] %v1868
  %1997 = vst [vmem:[%s5 + $0x78] sm:$0xff] %v1869
  %s1998 = scalar_lea.vmem %s4, 128
  %1999 = vst [vmem:[%s1998] sm:$0xf] %v1934
  %2000 = vst [vmem:[%s1998 + $0x4] sm:$0xf] %v1935
  %2001 = vst [vmem:[%s1998 + $0x8] sm:$0xf] %v1936
  %2002 = vst [vmem:[%s1998 + $0xc] sm:$0xf] %v1937
  %2003 = vst [vmem:[%s1998 + $0x10] sm:$0xf] %v1938
  %2004 = vst [vmem:[%s1998 + $0x14] sm:$0xf] %v1939
  %2005 = vst [vmem:[%s1998 + $0x18] sm:$0xf] %v1940
  %2006 = vst [vmem:[%s1998 + $0x1c] sm:$0xf] %v1941
  %2007 = vst [vmem:[%s1998 + $0x20] sm:$0xf] %v1942
  %2008 = vst [vmem:[%s1998 + $0x24] sm:$0xf] %v1943
  %2009 = vst [vmem:[%s1998 + $0x28] sm:$0xf] %v1944
  %2010 = vst [vmem:[%s1998 + $0x2c] sm:$0xf] %v1945
  %2011 = vst [vmem:[%s1998 + $0x30] sm:$0xf] %v1946
  %2012 = vst [vmem:[%s1998 + $0x34] sm:$0xf] %v1947
  %2013 = vst [vmem:[%s1998 + $0x38] sm:$0xf] %v1948
  %2014 = vst [vmem:[%s1998 + $0x3c] sm:$0xf] %v1949
  %s2015 = scalar_lea.vmem %s0, 384
  %v2016 = vld [vmem:[%s2015] sm:$0xff]
  %v2017 = vld [vmem:[%s2015 + $0x8] sm:$0xff]
  %v2018 = vld [vmem:[%s2015 + $0x10] sm:$0xff]
  %v2019 = vld [vmem:[%s2015 + $0x18] sm:$0xff]
  %v2020 = vld [vmem:[%s2015 + $0x20] sm:$0xff]
  %v2021 = vld [vmem:[%s2015 + $0x28] sm:$0xff]
  %v2022 = vld [vmem:[%s2015 + $0x30] sm:$0xff]
  %v2023 = vld [vmem:[%s2015 + $0x38] sm:$0xff]
  %v2024 = vld [vmem:[%s2015 + $0x40] sm:$0xff]
  %v2025 = vld [vmem:[%s2015 + $0x48] sm:$0xff]
  %v2026 = vld [vmem:[%s2015 + $0x50] sm:$0xff]
  %v2027 = vld [vmem:[%s2015 + $0x58] sm:$0xff]
  %v2028 = vld [vmem:[%s2015 + $0x60] sm:$0xff]
  %v2029 = vld [vmem:[%s2015 + $0x68] sm:$0xff]
  %v2030 = vld [vmem:[%s2015 + $0x70] sm:$0xff]
  %v2031 = vld [vmem:[%s2015 + $0x78] sm:$0xff]
  %v2032 = vld [vmem:[#allocation2] sm:$0xf]
  %v2033 = vld [vmem:[#allocation2 + $0x4] sm:$0xf]
  %v2034 = vld [vmem:[#allocation2 + $0x8] sm:$0xf]
  %v2035 = vld [vmem:[#allocation2 + $0xc] sm:$0xf]
  %v2036 = vld [vmem:[#allocation2 + $0x10] sm:$0xf]
  %v2037 = vld [vmem:[#allocation2 + $0x14] sm:$0xf]
  %v2038 = vld [vmem:[#allocation2 + $0x18] sm:$0xf]
  %v2039 = vld [vmem:[#allocation2 + $0x1c] sm:$0xf]
  %v2040 = vld [vmem:[#allocation2 + $0x20] sm:$0xf]
  %v2041 = vld [vmem:[#allocation2 + $0x24] sm:$0xf]
  %v2042 = vld [vmem:[#allocation2 + $0x28] sm:$0xf]
  %v2043 = vld [vmem:[#allocation2 + $0x2c] sm:$0xf]
  %v2044 = vld [vmem:[#allocation2 + $0x30] sm:$0xf]
  %v2045 = vld [vmem:[#allocation2 + $0x34] sm:$0xf]
  %v2046 = vld [vmem:[#allocation2 + $0x38] sm:$0xf]
  %v2047 = vld [vmem:[#allocation2 + $0x3c] sm:$0xf]
  %v2048 = vld [vmem:[%s3] sm:$0xf]
  %v2049 = vld [vmem:[%s3 + $0x4] sm:$0xf]
  %v2050 = vld [vmem:[%s3 + $0x8] sm:$0xf]
  %v2051 = vld [vmem:[%s3 + $0xc] sm:$0xf]
  %v2052 = vld [vmem:[%s3 + $0x10] sm:$0xf]
  %v2053 = vld [vmem:[%s3 + $0x14] sm:$0xf]
  %v2054 = vld [vmem:[%s3 + $0x18] sm:$0xf]
  %v2055 = vld [vmem:[%s3 + $0x1c] sm:$0xf]
  %v2056 = vld [vmem:[%s3 + $0x20] sm:$0xf]
  %v2057 = vld [vmem:[%s3 + $0x24] sm:$0xf]
  %v2058 = vld [vmem:[%s3 + $0x28] sm:$0xf]
  %v2059 = vld [vmem:[%s3 + $0x2c] sm:$0xf]
  %v2060 = vld [vmem:[%s3 + $0x30] sm:$0xf]
  %v2061 = vld [vmem:[%s3 + $0x34] sm:$0xf]
  %v2062 = vld [vmem:[%s3 + $0x38] sm:$0xf]
  %v2063 = vld [vmem:[%s3 + $0x3c] sm:$0xf]
  %v2080 = vunpack.c.l.b16 %v2032
  %v2081 = vunpack.c.l.b16 %v2033
  %v2082 = vunpack.c.l.b16 %v2034
  %v2083 = vunpack.c.l.b16 %v2035
  %v2084 = vunpack.c.l.b16 %v2036
  %v2085 = vunpack.c.l.b16 %v2037
  %v2086 = vunpack.c.l.b16 %v2038
  %v2087 = vunpack.c.l.b16 %v2039
  %v2088 = vunpack.c.l.b16 %v2040
  %v2089 = vunpack.c.l.b16 %v2041
  %v2090 = vunpack.c.l.b16 %v2042
  %v2091 = vunpack.c.l.b16 %v2043
  %v2092 = vunpack.c.l.b16 %v2044
  %v2093 = vunpack.c.l.b16 %v2045
  %v2094 = vunpack.c.l.b16 %v2046
  %v2095 = vunpack.c.l.b16 %v2047
  %v2096 = vpack.c.b16 %v2081, %v2080
  %v2097 = vpack.c.b16 %v2083, %v2082
  %v2098 = vpack.c.b16 %v2085, %v2084
  %v2099 = vpack.c.b16 %v2087, %v2086
  %v2100 = vpack.c.b16 %v2089, %v2088
  %v2101 = vpack.c.b16 %v2091, %v2090
  %v2102 = vpack.c.b16 %v2093, %v2092
  %v2103 = vpack.c.b16 %v2095, %v2094
  %v2128 = vunpack.c.l.b16 %v2048
  %v2129 = vunpack.c.l.b16 %v2049
  %v2130 = vunpack.c.l.b16 %v2050
  %v2131 = vunpack.c.l.b16 %v2051
  %v2132 = vunpack.c.l.b16 %v2052
  %v2133 = vunpack.c.l.b16 %v2053
  %v2134 = vunpack.c.l.b16 %v2054
  %v2135 = vunpack.c.l.b16 %v2055
  %v2136 = vunpack.c.l.b16 %v2056
  %v2137 = vunpack.c.l.b16 %v2057
  %v2138 = vunpack.c.l.b16 %v2058
  %v2139 = vunpack.c.l.b16 %v2059
  %v2140 = vunpack.c.l.b16 %v2060
  %v2141 = vunpack.c.l.b16 %v2061
  %v2142 = vunpack.c.l.b16 %v2062
  %v2143 = vunpack.c.l.b16 %v2063
  %v2144 = vpack.c.b16 %v2129, %v2128
  %v2145 = vpack.c.b16 %v2131, %v2130
  %v2146 = vpack.c.b16 %v2133, %v2132
  %v2147 = vpack.c.b16 %v2135, %v2134
  %v2148 = vpack.c.b16 %v2137, %v2136
  %v2149 = vpack.c.b16 %v2139, %v2138
  %v2150 = vpack.c.b16 %v2141, %v2140
  %v2151 = vpack.c.b16 %v2143, %v2142
  %2160 = vmatprep.subr.bf16.mxu0 0
  %2161 = vmatpush1.bf16.msra.mxu0 %v2151
  %2162 = vmatprep.subr.bf16.mxu0 0
  %2163 = vmatpush1.bf16.msra.mxu0 %v2150
  %2164 = vmatprep.subr.bf16.mxu0 0
  %2165 = vmatpush1.bf16.msra.mxu0 %v2149
  %2166 = vmatprep.subr.bf16.mxu0 0
  %2167 = vmatpush1.bf16.msra.mxu0 %v2148
  %2168 = vmatprep.subr.bf16.mxu0 0
  %2169 = vmatpush1.bf16.msra.mxu0 %v2147
  %2170 = vmatprep.subr.bf16.mxu0 0
  %2171 = vmatpush1.bf16.msra.mxu0 %v2146
  %2172 = vmatprep.subr.bf16.mxu0 0
  %2173 = vmatpush1.bf16.msra.mxu0 %v2145
  %2174 = vmatprep.subr.bf16.mxu0 0
  %2175 = vmatpush1.bf16.msra.mxu0 %v2144
  %2176 = vmatprep.subr.bf16.mxu0 0
  %2177 = vmatpush2.bf16.msra.mxu0 0
  %2178 = vmatprep.subr.bf16.mxu0 0
  %2179 = vmatpush2.bf16.msra.mxu0 0
  %2180 = vmatprep.subr.bf16.mxu0 0
  %2181 = vmatpush2.bf16.msra.mxu0 0
  %2182 = vmatprep.subr.bf16.mxu0 0
  %2183 = vmatpush2.bf16.msra.mxu0 0
  %2184 = vmatprep.subr.bf16.mxu0 0
  %2185 = vmatpush2.bf16.msra.mxu0 0
  %2186 = vmatprep.subr.bf16.mxu0 0
  %2187 = vmatpush2.bf16.msra.mxu0 0
  %2188 = vmatprep.subr.bf16.mxu0 0
  %2189 = vmatpush2.bf16.msra.mxu0 0
  %2190 = vmatprep.subr.bf16.mxu0 0
  %2191 = vmatpush2.bf16.msra.mxu0 0
  %2192 = vmatprep.mubr.bf16.mxu0 0
  %2193 = vmatmul.mubr.bf16.gmra.mxu0 %v2096
  %v2194 = vpop.f32.mrf.mxu0
  %v2195 = vadd.f32 0.0, %v2194
  %v2196 = vpop.f32.mrf.mxu0
  %v2197 = vpop.f32.mrf.mxu0
  %v2198 = vadd.f32 0.0, %v2197
  %v2199 = vpop.f32.mrf.mxu0
  %2200 = vmatprep.mubr.bf16.mxu0 0
  %2201 = vmatmul.mubr.bf16.gmra.mxu0 %v2097
  %v2202 = vpop.f32.mrf.mxu0
  %v2203 = vadd.f32 0.0, %v2202
  %v2204 = vpop.f32.mrf.mxu0
  %v2205 = vpop.f32.mrf.mxu0
  %v2206 = vadd.f32 0.0, %v2205
  %v2207 = vpop.f32.mrf.mxu0
  %2208 = vmatprep.mubr.bf16.mxu0 0
  %2209 = vmatmul.mubr.bf16.gmra.mxu0 %v2098
  %v2210 = vpop.f32.mrf.mxu0
  %v2211 = vadd.f32 0.0, %v2210
  %v2212 = vpop.f32.mrf.mxu0
  %v2213 = vpop.f32.mrf.mxu0
  %v2214 = vadd.f32 0.0, %v2213
  %v2215 = vpop.f32.mrf.mxu0
  %2216 = vmatprep.mubr.bf16.mxu0 0
  %2217 = vmatmul.mubr.bf16.gmra.mxu0 %v2099
  %v2218 = vpop.f32.mrf.mxu0
  %v2219 = vadd.f32 0.0, %v2218
  %v2220 = vpop.f32.mrf.mxu0
  %v2221 = vpop.f32.mrf.mxu0
  %v2222 = vadd.f32 0.0, %v2221
  %v2223 = vpop.f32.mrf.mxu0
  %2224 = vmatprep.mubr.bf16.mxu0 0
  %2225 = vmatmul.mubr.bf16.gmra.mxu0 %v2100
  %v2226 = vpop.f32.mrf.mxu0
  %v2227 = vadd.f32 0.0, %v2226
  %v2228 = vpop.f32.mrf.mxu0
  %v2229 = vpop.f32.mrf.mxu0
  %v2230 = vadd.f32 0.0, %v2229
  %v2231 = vpop.f32.mrf.mxu0
  %2232 = vmatprep.mubr.bf16.mxu0 0
  %2233 = vmatmul.mubr.bf16.gmra.mxu0 %v2101
  %v2234 = vpop.f32.mrf.mxu0
  %v2235 = vadd.f32 0.0, %v2234
  %v2236 = vpop.f32.mrf.mxu0
  %v2237 = vpop.f32.mrf.mxu0
  %v2238 = vadd.f32 0.0, %v2237
  %v2239 = vpop.f32.mrf.mxu0
  %2240 = vmatprep.mubr.bf16.mxu0 0
  %2241 = vmatmul.mubr.bf16.gmra.mxu0 %v2102
  %v2242 = vpop.f32.mrf.mxu0
  %v2243 = vadd.f32 0.0, %v2242
  %v2244 = vpop.f32.mrf.mxu0
  %v2245 = vpop.f32.mrf.mxu0
  %v2246 = vadd.f32 0.0, %v2245
  %v2247 = vpop.f32.mrf.mxu0
  %2248 = vmatprep.mubr.bf16.mxu0 0
  %2249 = vmatmul.mubr.bf16.gmra.mxu0 %v2103
  %v2250 = vpop.f32.mrf.mxu0
  %v2251 = vadd.f32 0.0, %v2250
  %v2252 = vpop.f32.mrf.mxu0
  %v2253 = vpop.f32.mrf.mxu0
  %v2254 = vadd.f32 0.0, %v2253
  %v2255 = vpop.f32.mrf.mxu0
  %2256 = vdwg.mxu0
  %v2257 = vadd.f32 %v2016, %v2195
  %v2258 = vadd.f32 %v2017, %v2198
  %v2259 = vadd.f32 %v2018, %v2203
  %v2260 = vadd.f32 %v2019, %v2206
  %v2261 = vadd.f32 %v2020, %v2211
  %v2262 = vadd.f32 %v2021, %v2214
  %v2263 = vadd.f32 %v2022, %v2219
  %v2264 = vadd.f32 %v2023, %v2222
  %v2265 = vadd.f32 %v2024, %v2227
  %v2266 = vadd.f32 %v2025, %v2230
  %v2267 = vadd.f32 %v2026, %v2235
  %v2268 = vadd.f32 %v2027, %v2238
  %v2269 = vadd.f32 %v2028, %v2243
  %v2270 = vadd.f32 %v2029, %v2246
  %v2271 = vadd.f32 %v2030, %v2251
  %v2272 = vadd.f32 %v2031, %v2254
  %v2273 = vmax.f32 %v2257, -20.0
  %v2274 = vmax.f32 %v2258, -20.0
  %v2275 = vmax.f32 %v2259, -20.0
  %v2276 = vmax.f32 %v2260, -20.0
  %v2277 = vmax.f32 %v2261, -20.0
  %v2278 = vmax.f32 %v2262, -20.0
  %v2279 = vmax.f32 %v2263, -20.0
  %v2280 = vmax.f32 %v2264, -20.0
  %v2281 = vmax.f32 %v2265, -20.0
  %v2282 = vmax.f32 %v2266, -20.0
  %v2283 = vmax.f32 %v2267, -20.0
  %v2284 = vmax.f32 %v2268, -20.0
  %v2285 = vmax.f32 %v2269, -20.0
  %v2286 = vmax.f32 %v2270, -20.0
  %v2287 = vmax.f32 %v2271, -20.0
  %v2288 = vmax.f32 %v2272, -20.0
  %v2289 = vmin.f32 %v2273, 20.0
  %v2290 = vmin.f32 %v2274, 20.0
  %v2291 = vmin.f32 %v2275, 20.0
  %v2292 = vmin.f32 %v2276, 20.0
  %v2293 = vmin.f32 %v2277, 20.0
  %v2294 = vmin.f32 %v2278, 20.0
  %v2295 = vmin.f32 %v2279, 20.0
  %v2296 = vmin.f32 %v2280, 20.0
  %v2297 = vmin.f32 %v2281, 20.0
  %v2298 = vmin.f32 %v2282, 20.0
  %v2299 = vmin.f32 %v2283, 20.0
  %v2300 = vmin.f32 %v2284, 20.0
  %v2301 = vmin.f32 %v2285, 20.0
  %v2302 = vmin.f32 %v2286, 20.0
  %v2303 = vmin.f32 %v2287, 20.0
  %v2304 = vmin.f32 %v2288, 20.0
  %v2305 = vsub.f32 0.0, %v2289
  %v2306 = vsub.f32 0.0, %v2290
  %v2307 = vsub.f32 0.0, %v2291
  %v2308 = vsub.f32 0.0, %v2292
  %v2309 = vsub.f32 0.0, %v2293
  %v2310 = vsub.f32 0.0, %v2294
  %v2311 = vsub.f32 0.0, %v2295
  %v2312 = vsub.f32 0.0, %v2296
  %v2313 = vsub.f32 0.0, %v2297
  %v2314 = vsub.f32 0.0, %v2298
  %v2315 = vsub.f32 0.0, %v2299
  %v2316 = vsub.f32 0.0, %v2300
  %v2317 = vsub.f32 0.0, %v2301
  %v2318 = vsub.f32 0.0, %v2302
  %v2319 = vsub.f32 0.0, %v2303
  %v2320 = vsub.f32 0.0, %v2304
  %v2321 = vmul.f32 %v2305, 1.442695
  %v2322 = vpow.pop %v2321
  %v2323 = vmul.f32 %v2306, 1.442695
  %v2324 = vpow.pop %v2323
  %v2325 = vmul.f32 %v2307, 1.442695
  %v2326 = vpow.pop %v2325
  %v2327 = vmul.f32 %v2308, 1.442695
  %v2328 = vpow.pop %v2327
  %v2329 = vmul.f32 %v2309, 1.442695
  %v2330 = vpow.pop %v2329
  %v2331 = vmul.f32 %v2310, 1.442695
  %v2332 = vpow.pop %v2331
  %v2333 = vmul.f32 %v2311, 1.442695
  %v2334 = vpow.pop %v2333
  %v2335 = vmul.f32 %v2312, 1.442695
  %v2336 = vpow.pop %v2335
  %v2337 = vmul.f32 %v2313, 1.442695
  %v2338 = vpow.pop %v2337
  %v2339 = vmul.f32 %v2314, 1.442695
  %v2340 = vpow.pop %v2339
  %v2341 = vmul.f32 %v2315, 1.442695
  %v2342 = vpow.pop %v2341
  %v2343 = vmul.f32 %v2316, 1.442695
  %v2344 = vpow.pop %v2343
  %v2345 = vmul.f32 %v2317, 1.442695
  %v2346 = vpow.pop %v2345
  %v2347 = vmul.f32 %v2318, 1.442695
  %v2348 = vpow.pop %v2347
  %v2349 = vmul.f32 %v2319, 1.442695
  %v2350 = vpow.pop %v2349
  %v2351 = vmul.f32 %v2320, 1.442695
  %v2352 = vpow.pop %v2351
  %v2353 = vadd.f32 %v2322, 1.0
  %v2354 = vadd.f32 %v2324, 1.0
  %v2355 = vadd.f32 %v2326, 1.0
  %v2356 = vadd.f32 %v2328, 1.0
  %v2357 = vadd.f32 %v2330, 1.0
  %v2358 = vadd.f32 %v2332, 1.0
  %v2359 = vadd.f32 %v2334, 1.0
  %v2360 = vadd.f32 %v2336, 1.0
  %v2361 = vadd.f32 %v2338, 1.0
  %v2362 = vadd.f32 %v2340, 1.0
  %v2363 = vadd.f32 %v2342, 1.0
  %v2364 = vadd.f32 %v2344, 1.0
  %v2365 = vadd.f32 %v2346, 1.0
  %v2366 = vadd.f32 %v2348, 1.0
  %v2367 = vadd.f32 %v2350, 1.0
  %v2368 = vadd.f32 %v2352, 1.0
  %v2369 = vrcp.pop %v2353
  %v2370 = vrcp.pop %v2354
  %v2371 = vrcp.pop %v2355
  %v2372 = vrcp.pop %v2356
  %v2373 = vrcp.pop %v2357
  %v2374 = vrcp.pop %v2358
  %v2375 = vrcp.pop %v2359
  %v2376 = vrcp.pop %v2360
  %v2377 = vrcp.pop %v2361
  %v2378 = vrcp.pop %v2362
  %v2379 = vrcp.pop %v2363
  %v2380 = vrcp.pop %v2364
  %v2381 = vrcp.pop %v2365
  %v2382 = vrcp.pop %v2366
  %v2383 = vrcp.pop %v2367
  %v2384 = vrcp.pop %v2368
  %v2385 = vmul.f32 %v2322, %v2322
  %v2386 = vmul.f32 %v2324, %v2324
  %v2387 = vmul.f32 %v2326, %v2326
  %v2388 = vmul.f32 %v2328, %v2328
  %v2389 = vmul.f32 %v2330, %v2330
  %v2390 = vmul.f32 %v2332, %v2332
  %v2391 = vmul.f32 %v2334, %v2334
  %v2392 = vmul.f32 %v2336, %v2336
  %v2393 = vmul.f32 %v2338, %v2338
  %v2394 = vmul.f32 %v2340, %v2340
  %v2395 = vmul.f32 %v2342, %v2342
  %v2396 = vmul.f32 %v2344, %v2344
  %v2397 = vmul.f32 %v2346, %v2346
  %v2398 = vmul.f32 %v2348, %v2348
  %v2399 = vmul.f32 %v2350, %v2350
  %v2400 = vmul.f32 %v2352, %v2352
  %v2401 = vsub.f32 1.0, %v2385
  %v2402 = vsub.f32 1.0, %v2386
  %v2403 = vsub.f32 1.0, %v2387
  %v2404 = vsub.f32 1.0, %v2388
  %v2405 = vsub.f32 1.0, %v2389
  %v2406 = vsub.f32 1.0, %v2390
  %v2407 = vsub.f32 1.0, %v2391
  %v2408 = vsub.f32 1.0, %v2392
  %v2409 = vsub.f32 1.0, %v2393
  %v2410 = vsub.f32 1.0, %v2394
  %v2411 = vsub.f32 1.0, %v2395
  %v2412 = vsub.f32 1.0, %v2396
  %v2413 = vsub.f32 1.0, %v2397
  %v2414 = vsub.f32 1.0, %v2398
  %v2415 = vsub.f32 1.0, %v2399
  %v2416 = vsub.f32 1.0, %v2400
  %v2417 = vadd.f32 %v2385, 1.0
  %v2418 = vadd.f32 %v2386, 1.0
  %v2419 = vadd.f32 %v2387, 1.0
  %v2420 = vadd.f32 %v2388, 1.0
  %v2421 = vadd.f32 %v2389, 1.0
  %v2422 = vadd.f32 %v2390, 1.0
  %v2423 = vadd.f32 %v2391, 1.0
  %v2424 = vadd.f32 %v2392, 1.0
  %v2425 = vadd.f32 %v2393, 1.0
  %v2426 = vadd.f32 %v2394, 1.0
  %v2427 = vadd.f32 %v2395, 1.0
  %v2428 = vadd.f32 %v2396, 1.0
  %v2429 = vadd.f32 %v2397, 1.0
  %v2430 = vadd.f32 %v2398, 1.0
  %v2431 = vadd.f32 %v2399, 1.0
  %v2432 = vadd.f32 %v2400, 1.0
  %v2433 = vrcp.pop %v2417
  %v2434 = vrcp.pop %v2418
  %v2435 = vrcp.pop %v2419
  %v2436 = vrcp.pop %v2420
  %v2437 = vrcp.pop %v2421
  %v2438 = vrcp.pop %v2422
  %v2439 = vrcp.pop %v2423
  %v2440 = vrcp.pop %v2424
  %v2441 = vrcp.pop %v2425
  %v2442 = vrcp.pop %v2426
  %v2443 = vrcp.pop %v2427
  %v2444 = vrcp.pop %v2428
  %v2445 = vrcp.pop %v2429
  %v2446 = vrcp.pop %v2430
  %v2447 = vrcp.pop %v2431
  %v2448 = vrcp.pop %v2432
  %v2449 = vmul.f32 %v2401, %v2433
  %v2450 = vmul.f32 %v2402, %v2434
  %v2451 = vmul.f32 %v2403, %v2435
  %v2452 = vmul.f32 %v2404, %v2436
  %v2453 = vmul.f32 %v2405, %v2437
  %v2454 = vmul.f32 %v2406, %v2438
  %v2455 = vmul.f32 %v2407, %v2439
  %v2456 = vmul.f32 %v2408, %v2440
  %v2457 = vmul.f32 %v2409, %v2441
  %v2458 = vmul.f32 %v2410, %v2442
  %v2459 = vmul.f32 %v2411, %v2443
  %v2460 = vmul.f32 %v2412, %v2444
  %v2461 = vmul.f32 %v2413, %v2445
  %v2462 = vmul.f32 %v2414, %v2446
  %v2463 = vmul.f32 %v2415, %v2447
  %v2464 = vmul.f32 %v2416, %v2448
  %v2465 = vld [vmem:[%s5] sm:$0xff]
  %v2466 = vld [vmem:[%s5 + $0x8] sm:$0xff]
  %v2467 = vld [vmem:[%s5 + $0x10] sm:$0xff]
  %v2468 = vld [vmem:[%s5 + $0x18] sm:$0xff]
  %v2469 = vld [vmem:[%s5 + $0x20] sm:$0xff]
  %v2470 = vld [vmem:[%s5 + $0x28] sm:$0xff]
  %v2471 = vld [vmem:[%s5 + $0x30] sm:$0xff]
  %v2472 = vld [vmem:[%s5 + $0x38] sm:$0xff]
  %v2473 = vld [vmem:[%s5 + $0x40] sm:$0xff]
  %v2474 = vld [vmem:[%s5 + $0x48] sm:$0xff]
  %v2475 = vld [vmem:[%s5 + $0x50] sm:$0xff]
  %v2476 = vld [vmem:[%s5 + $0x58] sm:$0xff]
  %v2477 = vld [vmem:[%s5 + $0x60] sm:$0xff]
  %v2478 = vld [vmem:[%s5 + $0x68] sm:$0xff]
  %v2479 = vld [vmem:[%s5 + $0x70] sm:$0xff]
  %v2480 = vld [vmem:[%s5 + $0x78] sm:$0xff]
  %v2481 = vadd.f32 %v2465, %v2449
  %v2482 = vadd.f32 %v2466, %v2450
  %v2483 = vadd.f32 %v2467, %v2451
  %v2484 = vadd.f32 %v2468, %v2452
  %v2485 = vadd.f32 %v2469, %v2453
  %v2486 = vadd.f32 %v2470, %v2454
  %v2487 = vadd.f32 %v2471, %v2455
  %v2488 = vadd.f32 %v2472, %v2456
  %v2489 = vadd.f32 %v2473, %v2457
  %v2490 = vadd.f32 %v2474, %v2458
  %v2491 = vadd.f32 %v2475, %v2459
  %v2492 = vadd.f32 %v2476, %v2460
  %v2493 = vadd.f32 %v2477, %v2461
  %v2494 = vadd.f32 %v2478, %v2462
  %v2495 = vadd.f32 %v2479, %v2463
  %v2496 = vadd.f32 %v2480, %v2464
  %v2497 = vmul.f32 %v2369, %v2481
  %v2498 = vmul.f32 %v2370, %v2482
  %v2499 = vmul.f32 %v2371, %v2483
  %v2500 = vmul.f32 %v2372, %v2484
  %v2501 = vmul.f32 %v2373, %v2485
  %v2502 = vmul.f32 %v2374, %v2486
  %v2503 = vmul.f32 %v2375, %v2487
  %v2504 = vmul.f32 %v2376, %v2488
  %v2505 = vmul.f32 %v2377, %v2489
  %v2506 = vmul.f32 %v2378, %v2490
  %v2507 = vmul.f32 %v2379, %v2491
  %v2508 = vmul.f32 %v2380, %v2492
  %v2509 = vmul.f32 %v2381, %v2493
  %v2510 = vmul.f32 %v2382, %v2494
  %v2511 = vmul.f32 %v2383, %v2495
  %v2512 = vmul.f32 %v2384, %v2496
  %v2513 = vtanh.pop %v2497
  %v2514 = vtanh.pop %v2498
  %v2515 = vtanh.pop %v2499
  %v2516 = vtanh.pop %v2500
  %v2517 = vtanh.pop %v2501
  %v2518 = vtanh.pop %v2502
  %v2519 = vtanh.pop %v2503
  %v2520 = vtanh.pop %v2504
  %v2521 = vtanh.pop %v2505
  %v2522 = vtanh.pop %v2506
  %v2523 = vtanh.pop %v2507
  %v2524 = vtanh.pop %v2508
  %v2525 = vtanh.pop %v2509
  %v2526 = vtanh.pop %v2510
  %v2527 = vtanh.pop %v2511
  %v2528 = vtanh.pop %v2512
  %v2529 = vmul.f32 %v2369, %v2513
  %v2530 = vmul.f32 %v2370, %v2514
  %v2531 = vmul.f32 %v2371, %v2515
  %v2532 = vmul.f32 %v2372, %v2516
  %v2533 = vmul.f32 %v2373, %v2517
  %v2534 = vmul.f32 %v2374, %v2518
  %v2535 = vmul.f32 %v2375, %v2519
  %v2536 = vmul.f32 %v2376, %v2520
  %v2537 = vmul.f32 %v2377, %v2521
  %v2538 = vmul.f32 %v2378, %v2522
  %v2539 = vmul.f32 %v2379, %v2523
  %v2540 = vmul.f32 %v2380, %v2524
  %v2541 = vmul.f32 %v2381, %v2525
  %v2542 = vmul.f32 %v2382, %v2526
  %v2543 = vmul.f32 %v2383, %v2527
  %v2544 = vmul.f32 %v2384, %v2528
  %v2545 = vpack.c.bf16 %v2530, %v2529
  %v2546 = vpack.c.bf16 %v2532, %v2531
  %v2547 = vpack.c.bf16 %v2534, %v2533
  %v2548 = vpack.c.bf16 %v2536, %v2535
  %v2549 = vpack.c.bf16 %v2538, %v2537
  %v2550 = vpack.c.bf16 %v2540, %v2539
  %v2551 = vpack.c.bf16 %v2542, %v2541
  %v2552 = vpack.c.bf16 %v2544, %v2543
  %v2561 = vunpack.c.l.b16 %v2545
  %v2562 = vunpack.c.h.b16 %v2545
  %v2563 = vunpack.c.l.b16 %v2546
  %v2564 = vunpack.c.h.b16 %v2546
  %v2565 = vunpack.c.l.b16 %v2547
  %v2566 = vunpack.c.h.b16 %v2547
  %v2567 = vunpack.c.l.b16 %v2548
  %v2568 = vunpack.c.h.b16 %v2548
  %v2569 = vunpack.c.l.b16 %v2549
  %v2570 = vunpack.c.h.b16 %v2549
  %v2571 = vunpack.c.l.b16 %v2550
  %v2572 = vunpack.c.h.b16 %v2550
  %v2573 = vunpack.c.l.b16 %v2551
  %v2574 = vunpack.c.h.b16 %v2551
  %v2575 = vunpack.c.l.b16 %v2552
  %v2576 = vunpack.c.h.b16 %v2552
  %v2577 = vpack.c.b16 %v2561, %v2561
  %v2578 = vpack.c.b16 %v2562, %v2562
  %v2579 = vpack.c.b16 %v2563, %v2563
  %v2580 = vpack.c.b16 %v2564, %v2564
  %v2581 = vpack.c.b16 %v2565, %v2565
  %v2582 = vpack.c.b16 %v2566, %v2566
  %v2583 = vpack.c.b16 %v2567, %v2567
  %v2584 = vpack.c.b16 %v2568, %v2568
  %v2585 = vpack.c.b16 %v2569, %v2569
  %v2586 = vpack.c.b16 %v2570, %v2570
  %v2587 = vpack.c.b16 %v2571, %v2571
  %v2588 = vpack.c.b16 %v2572, %v2572
  %v2589 = vpack.c.b16 %v2573, %v2573
  %v2590 = vpack.c.b16 %v2574, %v2574
  %v2591 = vpack.c.b16 %v2575, %v2575
  %v2592 = vpack.c.b16 %v2576, %v2576
  %2609 = vst [vmem:[#allocation2] sm:$0xf] %v2577
  %2610 = vst [vmem:[#allocation2 + $0x4] sm:$0xf] %v2578
  %2611 = vst [vmem:[#allocation2 + $0x8] sm:$0xf] %v2579
  %2612 = vst [vmem:[#allocation2 + $0xc] sm:$0xf] %v2580
  %2613 = vst [vmem:[#allocation2 + $0x10] sm:$0xf] %v2581
  %2614 = vst [vmem:[#allocation2 + $0x14] sm:$0xf] %v2582
  %2615 = vst [vmem:[#allocation2 + $0x18] sm:$0xf] %v2583
  %2616 = vst [vmem:[#allocation2 + $0x1c] sm:$0xf] %v2584
  %2617 = vst [vmem:[#allocation2 + $0x20] sm:$0xf] %v2585
  %2618 = vst [vmem:[#allocation2 + $0x24] sm:$0xf] %v2586
  %2619 = vst [vmem:[#allocation2 + $0x28] sm:$0xf] %v2587
  %2620 = vst [vmem:[#allocation2 + $0x2c] sm:$0xf] %v2588
  %2621 = vst [vmem:[#allocation2 + $0x30] sm:$0xf] %v2589
  %2622 = vst [vmem:[#allocation2 + $0x34] sm:$0xf] %v2590
  %2623 = vst [vmem:[#allocation2 + $0x38] sm:$0xf] %v2591
  %2624 = vst [vmem:[#allocation2 + $0x3c] sm:$0xf] %v2592
  %2625 = vst [vmem:[%s5] sm:$0xff] %v2497
  %2626 = vst [vmem:[%s5 + $0x8] sm:$0xff] %v2498
  %2627 = vst [vmem:[%s5 + $0x10] sm:$0xff] %v2499
  %2628 = vst [vmem:[%s5 + $0x18] sm:$0xff] %v2500
  %2629 = vst [vmem:[%s5 + $0x20] sm:$0xff] %v2501
  %2630 = vst [vmem:[%s5 + $0x28] sm:$0xff] %v2502
  %2631 = vst [vmem:[%s5 + $0x30] sm:$0xff] %v2503
  %2632 = vst [vmem:[%s5 + $0x38] sm:$0xff] %v2504
  %2633 = vst [vmem:[%s5 + $0x40] sm:$0xff] %v2505
  %2634 = vst [vmem:[%s5 + $0x48] sm:$0xff] %v2506
  %2635 = vst [vmem:[%s5 + $0x50] sm:$0xff] %v2507
  %2636 = vst [vmem:[%s5 + $0x58] sm:$0xff] %v2508
  %2637 = vst [vmem:[%s5 + $0x60] sm:$0xff] %v2509
  %2638 = vst [vmem:[%s5 + $0x68] sm:$0xff] %v2510
  %2639 = vst [vmem:[%s5 + $0x70] sm:$0xff] %v2511
  %2640 = vst [vmem:[%s5 + $0x78] sm:$0xff] %v2512
  %s2641 = scalar_lea.vmem %s4, 192
  %2642 = vst [vmem:[%s2641] sm:$0xf] %v2577
  %2643 = vst [vmem:[%s2641 + $0x4] sm:$0xf] %v2578
  %2644 = vst [vmem:[%s2641 + $0x8] sm:$0xf] %v2579
  %2645 = vst [vmem:[%s2641 + $0xc] sm:$0xf] %v2580
  %2646 = vst [vmem:[%s2641 + $0x10] sm:$0xf] %v2581
  %2647 = vst [vmem:[%s2641 + $0x14] sm:$0xf] %v2582
  %2648 = vst [vmem:[%s2641 + $0x18] sm:$0xf] %v2583
  %2649 = vst [vmem:[%s2641 + $0x1c] sm:$0xf] %v2584
  %2650 = vst [vmem:[%s2641 + $0x20] sm:$0xf] %v2585
  %2651 = vst [vmem:[%s2641 + $0x24] sm:$0xf] %v2586
  %2652 = vst [vmem:[%s2641 + $0x28] sm:$0xf] %v2587
  %2653 = vst [vmem:[%s2641 + $0x2c] sm:$0xf] %v2588
  %2654 = vst [vmem:[%s2641 + $0x30] sm:$0xf] %v2589
  %2655 = vst [vmem:[%s2641 + $0x34] sm:$0xf] %v2590
  %2656 = vst [vmem:[%s2641 + $0x38] sm:$0xf] %v2591
  %2657 = vst [vmem:[%s2641 + $0x3c] sm:$0xf] %v2592
  %s2658 = scalar_lea.vmem %s0, 512
  %v2659 = vld [vmem:[%s2658] sm:$0xff]
  %v2660 = vld [vmem:[%s2658 + $0x8] sm:$0xff]
  %v2661 = vld [vmem:[%s2658 + $0x10] sm:$0xff]
  %v2662 = vld [vmem:[%s2658 + $0x18] sm:$0xff]
  %v2663 = vld [vmem:[%s2658 + $0x20] sm:$0xff]
  %v2664 = vld [vmem:[%s2658 + $0x28] sm:$0xff]
  %v2665 = vld [vmem:[%s2658 + $0x30] sm:$0xff]
  %v2666 = vld [vmem:[%s2658 + $0x38] sm:$0xff]
  %v2667 = vld [vmem:[%s2658 + $0x40] sm:$0xff]
  %v2668 = vld [vmem:[%s2658 + $0x48] sm:$0xff]
  %v2669 = vld [vmem:[%s2658 + $0x50] sm:$0xff]
  %v2670 = vld [vmem:[%s2658 + $0x58] sm:$0xff]
  %v2671 = vld [vmem:[%s2658 + $0x60] sm:$0xff]
  %v2672 = vld [vmem:[%s2658 + $0x68] sm:$0xff]
  %v2673 = vld [vmem:[%s2658 + $0x70] sm:$0xff]
  %v2674 = vld [vmem:[%s2658 + $0x78] sm:$0xff]
  %v2675 = vld [vmem:[#allocation2] sm:$0xf]
  %v2676 = vld [vmem:[#allocation2 + $0x4] sm:$0xf]
  %v2677 = vld [vmem:[#allocation2 + $0x8] sm:$0xf]
  %v2678 = vld [vmem:[#allocation2 + $0xc] sm:$0xf]
  %v2679 = vld [vmem:[#allocation2 + $0x10] sm:$0xf]
  %v2680 = vld [vmem:[#allocation2 + $0x14] sm:$0xf]
  %v2681 = vld [vmem:[#allocation2 + $0x18] sm:$0xf]
  %v2682 = vld [vmem:[#allocation2 + $0x1c] sm:$0xf]
  %v2683 = vld [vmem:[#allocation2 + $0x20] sm:$0xf]
  %v2684 = vld [vmem:[#allocation2 + $0x24] sm:$0xf]
  %v2685 = vld [vmem:[#allocation2 + $0x28] sm:$0xf]
  %v2686 = vld [vmem:[#allocation2 + $0x2c] sm:$0xf]
  %v2687 = vld [vmem:[#allocation2 + $0x30] sm:$0xf]
  %v2688 = vld [vmem:[#allocation2 + $0x34] sm:$0xf]
  %v2689 = vld [vmem:[#allocation2 + $0x38] sm:$0xf]
  %v2690 = vld [vmem:[#allocation2 + $0x3c] sm:$0xf]
  %v2691 = vld [vmem:[%s3] sm:$0xf]
  %v2692 = vld [vmem:[%s3 + $0x4] sm:$0xf]
  %v2693 = vld [vmem:[%s3 + $0x8] sm:$0xf]
  %v2694 = vld [vmem:[%s3 + $0xc] sm:$0xf]
  %v2695 = vld [vmem:[%s3 + $0x10] sm:$0xf]
  %v2696 = vld [vmem:[%s3 + $0x14] sm:$0xf]
  %v2697 = vld [vmem:[%s3 + $0x18] sm:$0xf]
  %v2698 = vld [vmem:[%s3 + $0x1c] sm:$0xf]
  %v2699 = vld [vmem:[%s3 + $0x20] sm:$0xf]
  %v2700 = vld [vmem:[%s3 + $0x24] sm:$0xf]
  %v2701 = vld [vmem:[%s3 + $0x28] sm:$0xf]
  %v2702 = vld [vmem:[%s3 + $0x2c] sm:$0xf]
  %v2703 = vld [vmem:[%s3 + $0x30] sm:$0xf]
  %v2704 = vld [vmem:[%s3 + $0x34] sm:$0xf]
  %v2705 = vld [vmem:[%s3 + $0x38] sm:$0xf]
  %v2706 = vld [vmem:[%s3 + $0x3c] sm:$0xf]
  %v2723 = vunpack.c.l.b16 %v2675
  %v2724 = vunpack.c.l.b16 %v2676
  %v2725 = vunpack.c.l.b16 %v2677
  %v2726 = vunpack.c.l.b16 %v2678
  %v2727 = vunpack.c.l.b16 %v2679
  %v2728 = vunpack.c.l.b16 %v2680
  %v2729 = vunpack.c.l.b16 %v2681
  %v2730 = vunpack.c.l.b16 %v2682
  %v2731 = vunpack.c.l.b16 %v2683
  %v2732 = vunpack.c.l.b16 %v2684
  %v2733 = vunpack.c.l.b16 %v2685
  %v2734 = vunpack.c.l.b16 %v2686
  %v2735 = vunpack.c.l.b16 %v2687
  %v2736 = vunpack.c.l.b16 %v2688
  %v2737 = vunpack.c.l.b16 %v2689
  %v2738 = vunpack.c.l.b16 %v2690
  %v2739 = vpack.c.b16 %v2724, %v2723
  %v2740 = vpack.c.b16 %v2726, %v2725
  %v2741 = vpack.c.b16 %v2728, %v2727
  %v2742 = vpack.c.b16 %v2730, %v2729
  %v2743 = vpack.c.b16 %v2732, %v2731
  %v2744 = vpack.c.b16 %v2734, %v2733
  %v2745 = vpack.c.b16 %v2736, %v2735
  %v2746 = vpack.c.b16 %v2738, %v2737
  %v2771 = vunpack.c.l.b16 %v2691
  %v2772 = vunpack.c.l.b16 %v2692
  %v2773 = vunpack.c.l.b16 %v2693
  %v2774 = vunpack.c.l.b16 %v2694
  %v2775 = vunpack.c.l.b16 %v2695
  %v2776 = vunpack.c.l.b16 %v2696
  %v2777 = vunpack.c.l.b16 %v2697
  %v2778 = vunpack.c.l.b16 %v2698
  %v2779 = vunpack.c.l.b16 %v2699
  %v2780 = vunpack.c.l.b16 %v2700
  %v2781 = vunpack.c.l.b16 %v2701
  %v2782 = vunpack.c.l.b16 %v2702
  %v2783 = vunpack.c.l.b16 %v2703
  %v2784 = vunpack.c.l.b16 %v2704
  %v2785 = vunpack.c.l.b16 %v2705
  %v2786 = vunpack.c.l.b16 %v2706
  %v2787 = vpack.c.b16 %v2772, %v2771
  %v2788 = vpack.c.b16 %v2774, %v2773
  %v2789 = vpack.c.b16 %v2776, %v2775
  %v2790 = vpack.c.b16 %v2778, %v2777
  %v2791 = vpack.c.b16 %v2780, %v2779
  %v2792 = vpack.c.b16 %v2782, %v2781
  %v2793 = vpack.c.b16 %v2784, %v2783
  %v2794 = vpack.c.b16 %v2786, %v2785
  %2803 = vmatprep.subr.bf16.mxu0 0
  %2804 = vmatpush1.bf16.msra.mxu0 %v2794
  %2805 = vmatprep.subr.bf16.mxu0 0
  %2806 = vmatpush1.bf16.msra.mxu0 %v2793
  %2807 = vmatprep.subr.bf16.mxu0 0
  %2808 = vmatpush1.bf16.msra.mxu0 %v2792
  %2809 = vmatprep.subr.bf16.mxu0 0
  %2810 = vmatpush1.bf16.msra.mxu0 %v2791
  %2811 = vmatprep.subr.bf16.mxu0 0
  %2812 = vmatpush1.bf16.msra.mxu0 %v2790
  %2813 = vmatprep.subr.bf16.mxu0 0
  %2814 = vmatpush1.bf16.msra.mxu0 %v2789
  %2815 = vmatprep.subr.bf16.mxu0 0
  %2816 = vmatpush1.bf16.msra.mxu0 %v2788
  %2817 = vmatprep.subr.bf16.mxu0 0
  %2818 = vmatpush1.bf16.msra.mxu0 %v2787
  %2819 = vmatprep.subr.bf16.mxu0 0
  %2820 = vmatpush2.bf16.msra.mxu0 0
  %2821 = vmatprep.subr.bf16.mxu0 0
  %2822 = vmatpush2.bf16.msra.mxu0 0
  %2823 = vmatprep.subr.bf16.mxu0 0
  %2824 = vmatpush2.bf16.msra.mxu0 0
  %2825 = vmatprep.subr.bf16.mxu0 0
  %2826 = vmatpush2.bf16.msra.mxu0 0
  %2827 = vmatprep.subr.bf16.mxu0 0
  %2828 = vmatpush2.bf16.msra.mxu0 0
  %2829 = vmatprep.subr.bf16.mxu0 0
  %2830 = vmatpush2.bf16.msra.mxu0 0
  %2831 = vmatprep.subr.bf16.mxu0 0
  %2832 = vmatpush2.bf16.msra.mxu0 0
  %2833 = vmatprep.subr.bf16.mxu0 0
  %2834 = vmatpush2.bf16.msra.mxu0 0
  %2835 = vmatprep.mubr.bf16.mxu0 0
  %2836 = vmatmul.mubr.bf16.gmra.mxu0 %v2739
  %v2837 = vpop.f32.mrf.mxu0
  %v2838 = vadd.f32 0.0, %v2837
  %v2839 = vpop.f32.mrf.mxu0
  %v2840 = vpop.f32.mrf.mxu0
  %v2841 = vadd.f32 0.0, %v2840
  %v2842 = vpop.f32.mrf.mxu0
  %2843 = vmatprep.mubr.bf16.mxu0 0
  %2844 = vmatmul.mubr.bf16.gmra.mxu0 %v2740
  %v2845 = vpop.f32.mrf.mxu0
  %v2846 = vadd.f32 0.0, %v2845
  %v2847 = vpop.f32.mrf.mxu0
  %v2848 = vpop.f32.mrf.mxu0
  %v2849 = vadd.f32 0.0, %v2848
  %v2850 = vpop.f32.mrf.mxu0
  %2851 = vmatprep.mubr.bf16.mxu0 0
  %2852 = vmatmul.mubr.bf16.gmra.mxu0 %v2741
  %v2853 = vpop.f32.mrf.mxu0
  %v2854 = vadd.f32 0.0, %v2853
  %v2855 = vpop.f32.mrf.mxu0
  %v2856 = vpop.f32.mrf.mxu0
  %v2857 = vadd.f32 0.0, %v2856
  %v2858 = vpop.f32.mrf.mxu0
  %2859 = vmatprep.mubr.bf16.mxu0 0
  %2860 = vmatmul.mubr.bf16.gmra.mxu0 %v2742
  %v2861 = vpop.f32.mrf.mxu0
  %v2862 = vadd.f32 0.0, %v2861
  %v2863 = vpop.f32.mrf.mxu0
  %v2864 = vpop.f32.mrf.mxu0
  %v2865 = vadd.f32 0.0, %v2864
  %v2866 = vpop.f32.mrf.mxu0
  %2867 = vmatprep.mubr.bf16.mxu0 0
  %2868 = vmatmul.mubr.bf16.gmra.mxu0 %v2743
  %v2869 = vpop.f32.mrf.mxu0
  %v2870 = vadd.f32 0.0, %v2869
  %v2871 = vpop.f32.mrf.mxu0
  %v2872 = vpop.f32.mrf.mxu0
  %v2873 = vadd.f32 0.0, %v2872
  %v2874 = vpop.f32.mrf.mxu0
  %2875 = vmatprep.mubr.bf16.mxu0 0
  %2876 = vmatmul.mubr.bf16.gmra.mxu0 %v2744
  %v2877 = vpop.f32.mrf.mxu0
  %v2878 = vadd.f32 0.0, %v2877
  %v2879 = vpop.f32.mrf.mxu0
  %v2880 = vpop.f32.mrf.mxu0
  %v2881 = vadd.f32 0.0, %v2880
  %v2882 = vpop.f32.mrf.mxu0
  %2883 = vmatprep.mubr.bf16.mxu0 0
  %2884 = vmatmul.mubr.bf16.gmra.mxu0 %v2745
  %v2885 = vpop.f32.mrf.mxu0
  %v2886 = vadd.f32 0.0, %v2885
  %v2887 = vpop.f32.mrf.mxu0
  %v2888 = vpop.f32.mrf.mxu0
  %v2889 = vadd.f32 0.0, %v2888
  %v2890 = vpop.f32.mrf.mxu0
  %2891 = vmatprep.mubr.bf16.mxu0 0
  %2892 = vmatmul.mubr.bf16.gmra.mxu0 %v2746
  %v2893 = vpop.f32.mrf.mxu0
  %v2894 = vadd.f32 0.0, %v2893
  %v2895 = vpop.f32.mrf.mxu0
  %v2896 = vpop.f32.mrf.mxu0
  %v2897 = vadd.f32 0.0, %v2896
  %v2898 = vpop.f32.mrf.mxu0
  %2899 = vdwg.mxu0
  %v2900 = vadd.f32 %v2659, %v2838
  %v2901 = vadd.f32 %v2660, %v2841
  %v2902 = vadd.f32 %v2661, %v2846
  %v2903 = vadd.f32 %v2662, %v2849
  %v2904 = vadd.f32 %v2663, %v2854
  %v2905 = vadd.f32 %v2664, %v2857
  %v2906 = vadd.f32 %v2665, %v2862
  %v2907 = vadd.f32 %v2666, %v2865
  %v2908 = vadd.f32 %v2667, %v2870
  %v2909 = vadd.f32 %v2668, %v2873
  %v2910 = vadd.f32 %v2669, %v2878
  %v2911 = vadd.f32 %v2670, %v2881
  %v2912 = vadd.f32 %v2671, %v2886
  %v2913 = vadd.f32 %v2672, %v2889
  %v2914 = vadd.f32 %v2673, %v2894
  %v2915 = vadd.f32 %v2674, %v2897
  %v2916 = vmax.f32 %v2900, -20.0
  %v2917 = vmax.f32 %v2901, -20.0
  %v2918 = vmax.f32 %v2902, -20.0
  %v2919 = vmax.f32 %v2903, -20.0
  %v2920 = vmax.f32 %v2904, -20.0
  %v2921 = vmax.f32 %v2905, -20.0
  %v2922 = vmax.f32 %v2906, -20.0
  %v2923 = vmax.f32 %v2907, -20.0
  %v2924 = vmax.f32 %v2908, -20.0
  %v2925 = vmax.f32 %v2909, -20.0
  %v2926 = vmax.f32 %v2910, -20.0
  %v2927 = vmax.f32 %v2911, -20.0
  %v2928 = vmax.f32 %v2912, -20.0
  %v2929 = vmax.f32 %v2913, -20.0
  %v2930 = vmax.f32 %v2914, -20.0
  %v2931 = vmax.f32 %v2915, -20.0
  %v2932 = vmin.f32 %v2916, 20.0
  %v2933 = vmin.f32 %v2917, 20.0
  %v2934 = vmin.f32 %v2918, 20.0
  %v2935 = vmin.f32 %v2919, 20.0
  %v2936 = vmin.f32 %v2920, 20.0
  %v2937 = vmin.f32 %v2921, 20.0
  %v2938 = vmin.f32 %v2922, 20.0
  %v2939 = vmin.f32 %v2923, 20.0
  %v2940 = vmin.f32 %v2924, 20.0
  %v2941 = vmin.f32 %v2925, 20.0
  %v2942 = vmin.f32 %v2926, 20.0
  %v2943 = vmin.f32 %v2927, 20.0
  %v2944 = vmin.f32 %v2928, 20.0
  %v2945 = vmin.f32 %v2929, 20.0
  %v2946 = vmin.f32 %v2930, 20.0
  %v2947 = vmin.f32 %v2931, 20.0
  %v2948 = vsub.f32 0.0, %v2932
  %v2949 = vsub.f32 0.0, %v2933
  %v2950 = vsub.f32 0.0, %v2934
  %v2951 = vsub.f32 0.0, %v2935
  %v2952 = vsub.f32 0.0, %v2936
  %v2953 = vsub.f32 0.0, %v2937
  %v2954 = vsub.f32 0.0, %v2938
  %v2955 = vsub.f32 0.0, %v2939
  %v2956 = vsub.f32 0.0, %v2940
  %v2957 = vsub.f32 0.0, %v2941
  %v2958 = vsub.f32 0.0, %v2942
  %v2959 = vsub.f32 0.0, %v2943
  %v2960 = vsub.f32 0.0, %v2944
  %v2961 = vsub.f32 0.0, %v2945
  %v2962 = vsub.f32 0.0, %v2946
  %v2963 = vsub.f32 0.0, %v2947
  %v2964 = vmul.f32 %v2948, 1.442695
  %v2965 = vpow.pop %v2964
  %v2966 = vmul.f32 %v2949, 1.442695
  %v2967 = vpow.pop %v2966
  %v2968 = vmul.f32 %v2950, 1.442695
  %v2969 = vpow.pop %v2968
  %v2970 = vmul.f32 %v2951, 1.442695
  %v2971 = vpow.pop %v2970
  %v2972 = vmul.f32 %v2952, 1.442695
  %v2973 = vpow.pop %v2972
  %v2974 = vmul.f32 %v2953, 1.442695
  %v2975 = vpow.pop %v2974
  %v2976 = vmul.f32 %v2954, 1.442695
  %v2977 = vpow.pop %v2976
  %v2978 = vmul.f32 %v2955, 1.442695
  %v2979 = vpow.pop %v2978
  %v2980 = vmul.f32 %v2956, 1.442695
  %v2981 = vpow.pop %v2980
  %v2982 = vmul.f32 %v2957, 1.442695
  %v2983 = vpow.pop %v2982
  %v2984 = vmul.f32 %v2958, 1.442695
  %v2985 = vpow.pop %v2984
  %v2986 = vmul.f32 %v2959, 1.442695
  %v2987 = vpow.pop %v2986
  %v2988 = vmul.f32 %v2960, 1.442695
  %v2989 = vpow.pop %v2988
  %v2990 = vmul.f32 %v2961, 1.442695
  %v2991 = vpow.pop %v2990
  %v2992 = vmul.f32 %v2962, 1.442695
  %v2993 = vpow.pop %v2992
  %v2994 = vmul.f32 %v2963, 1.442695
  %v2995 = vpow.pop %v2994
  %v2996 = vadd.f32 %v2965, 1.0
  %v2997 = vadd.f32 %v2967, 1.0
  %v2998 = vadd.f32 %v2969, 1.0
  %v2999 = vadd.f32 %v2971, 1.0
  %v3000 = vadd.f32 %v2973, 1.0
  %v3001 = vadd.f32 %v2975, 1.0
  %v3002 = vadd.f32 %v2977, 1.0
  %v3003 = vadd.f32 %v2979, 1.0
  %v3004 = vadd.f32 %v2981, 1.0
  %v3005 = vadd.f32 %v2983, 1.0
  %v3006 = vadd.f32 %v2985, 1.0
  %v3007 = vadd.f32 %v2987, 1.0
  %v3008 = vadd.f32 %v2989, 1.0
  %v3009 = vadd.f32 %v2991, 1.0
  %v3010 = vadd.f32 %v2993, 1.0
  %v3011 = vadd.f32 %v2995, 1.0
  %v3012 = vrcp.pop %v2996
  %v3013 = vrcp.pop %v2997
  %v3014 = vrcp.pop %v2998
  %v3015 = vrcp.pop %v2999
  %v3016 = vrcp.pop %v3000
  %v3017 = vrcp.pop %v3001
  %v3018 = vrcp.pop %v3002
  %v3019 = vrcp.pop %v3003
  %v3020 = vrcp.pop %v3004
  %v3021 = vrcp.pop %v3005
  %v3022 = vrcp.pop %v3006
  %v3023 = vrcp.pop %v3007
  %v3024 = vrcp.pop %v3008
  %v3025 = vrcp.pop %v3009
  %v3026 = vrcp.pop %v3010
  %v3027 = vrcp.pop %v3011
  %v3028 = vmul.f32 %v2965, %v2965
  %v3029 = vmul.f32 %v2967, %v2967
  %v3030 = vmul.f32 %v2969, %v2969
  %v3031 = vmul.f32 %v2971, %v2971
  %v3032 = vmul.f32 %v2973, %v2973
  %v3033 = vmul.f32 %v2975, %v2975
  %v3034 = vmul.f32 %v2977, %v2977
  %v3035 = vmul.f32 %v2979, %v2979
  %v3036 = vmul.f32 %v2981, %v2981
  %v3037 = vmul.f32 %v2983, %v2983
  %v3038 = vmul.f32 %v2985, %v2985
  %v3039 = vmul.f32 %v2987, %v2987
  %v3040 = vmul.f32 %v2989, %v2989
  %v3041 = vmul.f32 %v2991, %v2991
  %v3042 = vmul.f32 %v2993, %v2993
  %v3043 = vmul.f32 %v2995, %v2995
  %v3044 = vsub.f32 1.0, %v3028
  %v3045 = vsub.f32 1.0, %v3029
  %v3046 = vsub.f32 1.0, %v3030
  %v3047 = vsub.f32 1.0, %v3031
  %v3048 = vsub.f32 1.0, %v3032
  %v3049 = vsub.f32 1.0, %v3033
  %v3050 = vsub.f32 1.0, %v3034
  %v3051 = vsub.f32 1.0, %v3035
  %v3052 = vsub.f32 1.0, %v3036
  %v3053 = vsub.f32 1.0, %v3037
  %v3054 = vsub.f32 1.0, %v3038
  %v3055 = vsub.f32 1.0, %v3039
  %v3056 = vsub.f32 1.0, %v3040
  %v3057 = vsub.f32 1.0, %v3041
  %v3058 = vsub.f32 1.0, %v3042
  %v3059 = vsub.f32 1.0, %v3043
  %v3060 = vadd.f32 %v3028, 1.0
  %v3061 = vadd.f32 %v3029, 1.0
  %v3062 = vadd.f32 %v3030, 1.0
  %v3063 = vadd.f32 %v3031, 1.0
  %v3064 = vadd.f32 %v3032, 1.0
  %v3065 = vadd.f32 %v3033, 1.0
  %v3066 = vadd.f32 %v3034, 1.0
  %v3067 = vadd.f32 %v3035, 1.0
  %v3068 = vadd.f32 %v3036, 1.0
  %v3069 = vadd.f32 %v3037, 1.0
  %v3070 = vadd.f32 %v3038, 1.0
  %v3071 = vadd.f32 %v3039, 1.0
  %v3072 = vadd.f32 %v3040, 1.0
  %v3073 = vadd.f32 %v3041, 1.0
  %v3074 = vadd.f32 %v3042, 1.0
  %v3075 = vadd.f32 %v3043, 1.0
  %v3076 = vrcp.pop %v3060
  %v3077 = vrcp.pop %v3061
  %v3078 = vrcp.pop %v3062
  %v3079 = vrcp.pop %v3063
  %v3080 = vrcp.pop %v3064
  %v3081 = vrcp.pop %v3065
  %v3082 = vrcp.pop %v3066
  %v3083 = vrcp.pop %v3067
  %v3084 = vrcp.pop %v3068
  %v3085 = vrcp.pop %v3069
  %v3086 = vrcp.pop %v3070
  %v3087 = vrcp.pop %v3071
  %v3088 = vrcp.pop %v3072
  %v3089 = vrcp.pop %v3073
  %v3090 = vrcp.pop %v3074
  %v3091 = vrcp.pop %v3075
  %v3092 = vmul.f32 %v3044, %v3076
  %v3093 = vmul.f32 %v3045, %v3077
  %v3094 = vmul.f32 %v3046, %v3078
  %v3095 = vmul.f32 %v3047, %v3079
  %v3096 = vmul.f32 %v3048, %v3080
  %v3097 = vmul.f32 %v3049, %v3081
  %v3098 = vmul.f32 %v3050, %v3082
  %v3099 = vmul.f32 %v3051, %v3083
  %v3100 = vmul.f32 %v3052, %v3084
  %v3101 = vmul.f32 %v3053, %v3085
  %v3102 = vmul.f32 %v3054, %v3086
  %v3103 = vmul.f32 %v3055, %v3087
  %v3104 = vmul.f32 %v3056, %v3088
  %v3105 = vmul.f32 %v3057, %v3089
  %v3106 = vmul.f32 %v3058, %v3090
  %v3107 = vmul.f32 %v3059, %v3091
  %v3108 = vld [vmem:[%s5] sm:$0xff]
  %v3109 = vld [vmem:[%s5 + $0x8] sm:$0xff]
  %v3110 = vld [vmem:[%s5 + $0x10] sm:$0xff]
  %v3111 = vld [vmem:[%s5 + $0x18] sm:$0xff]
  %v3112 = vld [vmem:[%s5 + $0x20] sm:$0xff]
  %v3113 = vld [vmem:[%s5 + $0x28] sm:$0xff]
  %v3114 = vld [vmem:[%s5 + $0x30] sm:$0xff]
  %v3115 = vld [vmem:[%s5 + $0x38] sm:$0xff]
  %v3116 = vld [vmem:[%s5 + $0x40] sm:$0xff]
  %v3117 = vld [vmem:[%s5 + $0x48] sm:$0xff]
  %v3118 = vld [vmem:[%s5 + $0x50] sm:$0xff]
  %v3119 = vld [vmem:[%s5 + $0x58] sm:$0xff]
  %v3120 = vld [vmem:[%s5 + $0x60] sm:$0xff]
  %v3121 = vld [vmem:[%s5 + $0x68] sm:$0xff]
  %v3122 = vld [vmem:[%s5 + $0x70] sm:$0xff]
  %v3123 = vld [vmem:[%s5 + $0x78] sm:$0xff]
  %v3124 = vadd.f32 %v3108, %v3092
  %v3125 = vadd.f32 %v3109, %v3093
  %v3126 = vadd.f32 %v3110, %v3094
  %v3127 = vadd.f32 %v3111, %v3095
  %v3128 = vadd.f32 %v3112, %v3096
  %v3129 = vadd.f32 %v3113, %v3097
  %v3130 = vadd.f32 %v3114, %v3098
  %v3131 = vadd.f32 %v3115, %v3099
  %v3132 = vadd.f32 %v3116, %v3100
  %v3133 = vadd.f32 %v3117, %v3101
  %v3134 = vadd.f32 %v3118, %v3102
  %v3135 = vadd.f32 %v3119, %v3103
  %v3136 = vadd.f32 %v3120, %v3104
  %v3137 = vadd.f32 %v3121, %v3105
  %v3138 = vadd.f32 %v3122, %v3106
  %v3139 = vadd.f32 %v3123, %v3107
  %v3140 = vmul.f32 %v3012, %v3124
  %v3141 = vmul.f32 %v3013, %v3125
  %v3142 = vmul.f32 %v3014, %v3126
  %v3143 = vmul.f32 %v3015, %v3127
  %v3144 = vmul.f32 %v3016, %v3128
  %v3145 = vmul.f32 %v3017, %v3129
  %v3146 = vmul.f32 %v3018, %v3130
  %v3147 = vmul.f32 %v3019, %v3131
  %v3148 = vmul.f32 %v3020, %v3132
  %v3149 = vmul.f32 %v3021, %v3133
  %v3150 = vmul.f32 %v3022, %v3134
  %v3151 = vmul.f32 %v3023, %v3135
  %v3152 = vmul.f32 %v3024, %v3136
  %v3153 = vmul.f32 %v3025, %v3137
  %v3154 = vmul.f32 %v3026, %v3138
  %v3155 = vmul.f32 %v3027, %v3139
  %v3156 = vtanh.pop %v3140
  %v3157 = vtanh.pop %v3141
  %v3158 = vtanh.pop %v3142
  %v3159 = vtanh.pop %v3143
  %v3160 = vtanh.pop %v3144
  %v3161 = vtanh.pop %v3145
  %v3162 = vtanh.pop %v3146
  %v3163 = vtanh.pop %v3147
  %v3164 = vtanh.pop %v3148
  %v3165 = vtanh.pop %v3149
  %v3166 = vtanh.pop %v3150
  %v3167 = vtanh.pop %v3151
  %v3168 = vtanh.pop %v3152
  %v3169 = vtanh.pop %v3153
  %v3170 = vtanh.pop %v3154
  %v3171 = vtanh.pop %v3155
  %v3172 = vmul.f32 %v3012, %v3156
  %v3173 = vmul.f32 %v3013, %v3157
  %v3174 = vmul.f32 %v3014, %v3158
  %v3175 = vmul.f32 %v3015, %v3159
  %v3176 = vmul.f32 %v3016, %v3160
  %v3177 = vmul.f32 %v3017, %v3161
  %v3178 = vmul.f32 %v3018, %v3162
  %v3179 = vmul.f32 %v3019, %v3163
  %v3180 = vmul.f32 %v3020, %v3164
  %v3181 = vmul.f32 %v3021, %v3165
  %v3182 = vmul.f32 %v3022, %v3166
  %v3183 = vmul.f32 %v3023, %v3167
  %v3184 = vmul.f32 %v3024, %v3168
  %v3185 = vmul.f32 %v3025, %v3169
  %v3186 = vmul.f32 %v3026, %v3170
  %v3187 = vmul.f32 %v3027, %v3171
  %v3188 = vpack.c.bf16 %v3173, %v3172
  %v3189 = vpack.c.bf16 %v3175, %v3174
  %v3190 = vpack.c.bf16 %v3177, %v3176
  %v3191 = vpack.c.bf16 %v3179, %v3178
  %v3192 = vpack.c.bf16 %v3181, %v3180
  %v3193 = vpack.c.bf16 %v3183, %v3182
  %v3194 = vpack.c.bf16 %v3185, %v3184
  %v3195 = vpack.c.bf16 %v3187, %v3186
  %v3204 = vunpack.c.l.b16 %v3188
  %v3205 = vunpack.c.h.b16 %v3188
  %v3206 = vunpack.c.l.b16 %v3189
  %v3207 = vunpack.c.h.b16 %v3189
  %v3208 = vunpack.c.l.b16 %v3190
  %v3209 = vunpack.c.h.b16 %v3190
  %v3210 = vunpack.c.l.b16 %v3191
  %v3211 = vunpack.c.h.b16 %v3191
  %v3212 = vunpack.c.l.b16 %v3192
  %v3213 = vunpack.c.h.b16 %v3192
  %v3214 = vunpack.c.l.b16 %v3193
  %v3215 = vunpack.c.h.b16 %v3193
  %v3216 = vunpack.c.l.b16 %v3194
  %v3217 = vunpack.c.h.b16 %v3194
  %v3218 = vunpack.c.l.b16 %v3195
  %v3219 = vunpack.c.h.b16 %v3195
  %v3220 = vpack.c.b16 %v3204, %v3204
  %v3221 = vpack.c.b16 %v3205, %v3205
  %v3222 = vpack.c.b16 %v3206, %v3206
  %v3223 = vpack.c.b16 %v3207, %v3207
  %v3224 = vpack.c.b16 %v3208, %v3208
  %v3225 = vpack.c.b16 %v3209, %v3209
  %v3226 = vpack.c.b16 %v3210, %v3210
  %v3227 = vpack.c.b16 %v3211, %v3211
  %v3228 = vpack.c.b16 %v3212, %v3212
  %v3229 = vpack.c.b16 %v3213, %v3213
  %v3230 = vpack.c.b16 %v3214, %v3214
  %v3231 = vpack.c.b16 %v3215, %v3215
  %v3232 = vpack.c.b16 %v3216, %v3216
  %v3233 = vpack.c.b16 %v3217, %v3217
  %v3234 = vpack.c.b16 %v3218, %v3218
  %v3235 = vpack.c.b16 %v3219, %v3219
  %3252 = vst [vmem:[#allocation2] sm:$0xf] %v3220
  %3253 = vst [vmem:[#allocation2 + $0x4] sm:$0xf] %v3221
  %3254 = vst [vmem:[#allocation2 + $0x8] sm:$0xf] %v3222
  %3255 = vst [vmem:[#allocation2 + $0xc] sm:$0xf] %v3223
  %3256 = vst [vmem:[#allocation2 + $0x10] sm:$0xf] %v3224
  %3257 = vst [vmem:[#allocation2 + $0x14] sm:$0xf] %v3225
  %3258 = vst [vmem:[#allocation2 + $0x18] sm:$0xf] %v3226
  %3259 = vst [vmem:[#allocation2 + $0x1c] sm:$0xf] %v3227
  %3260 = vst [vmem:[#allocation2 + $0x20] sm:$0xf] %v3228
  %3261 = vst [vmem:[#allocation2 + $0x24] sm:$0xf] %v3229
  %3262 = vst [vmem:[#allocation2 + $0x28] sm:$0xf] %v3230
  %3263 = vst [vmem:[#allocation2 + $0x2c] sm:$0xf] %v3231
  %3264 = vst [vmem:[#allocation2 + $0x30] sm:$0xf] %v3232
  %3265 = vst [vmem:[#allocation2 + $0x34] sm:$0xf] %v3233
  %3266 = vst [vmem:[#allocation2 + $0x38] sm:$0xf] %v3234
  %3267 = vst [vmem:[#allocation2 + $0x3c] sm:$0xf] %v3235
  %3268 = vst [vmem:[%s5] sm:$0xff] %v3140
  %3269 = vst [vmem:[%s5 + $0x8] sm:$0xff] %v3141
  %3270 = vst [vmem:[%s5 + $0x10] sm:$0xff] %v3142
  %3271 = vst [vmem:[%s5 + $0x18] sm:$0xff] %v3143
  %3272 = vst [vmem:[%s5 + $0x20] sm:$0xff] %v3144
  %3273 = vst [vmem:[%s5 + $0x28] sm:$0xff] %v3145
  %3274 = vst [vmem:[%s5 + $0x30] sm:$0xff] %v3146
  %3275 = vst [vmem:[%s5 + $0x38] sm:$0xff] %v3147
  %3276 = vst [vmem:[%s5 + $0x40] sm:$0xff] %v3148
  %3277 = vst [vmem:[%s5 + $0x48] sm:$0xff] %v3149
  %3278 = vst [vmem:[%s5 + $0x50] sm:$0xff] %v3150
  %3279 = vst [vmem:[%s5 + $0x58] sm:$0xff] %v3151
  %3280 = vst [vmem:[%s5 + $0x60] sm:$0xff] %v3152
  %3281 = vst [vmem:[%s5 + $0x68] sm:$0xff] %v3153
  %3282 = vst [vmem:[%s5 + $0x70] sm:$0xff] %v3154
  %3283 = vst [vmem:[%s5 + $0x78] sm:$0xff] %v3155
  %s3284 = scalar_lea.vmem %s4, 256
  %3285 = vst [vmem:[%s3284] sm:$0xf] %v3220
  %3286 = vst [vmem:[%s3284 + $0x4] sm:$0xf] %v3221
  %3287 = vst [vmem:[%s3284 + $0x8] sm:$0xf] %v3222
  %3288 = vst [vmem:[%s3284 + $0xc] sm:$0xf] %v3223
  %3289 = vst [vmem:[%s3284 + $0x10] sm:$0xf] %v3224
  %3290 = vst [vmem:[%s3284 + $0x14] sm:$0xf] %v3225
  %3291 = vst [vmem:[%s3284 + $0x18] sm:$0xf] %v3226
  %3292 = vst [vmem:[%s3284 + $0x1c] sm:$0xf] %v3227
  %3293 = vst [vmem:[%s3284 + $0x20] sm:$0xf] %v3228
  %3294 = vst [vmem:[%s3284 + $0x24] sm:$0xf] %v3229
  %3295 = vst [vmem:[%s3284 + $0x28] sm:$0xf] %v3230
  %3296 = vst [vmem:[%s3284 + $0x2c] sm:$0xf] %v3231
  %3297 = vst [vmem:[%s3284 + $0x30] sm:$0xf] %v3232
  %3298 = vst [vmem:[%s3284 + $0x34] sm:$0xf] %v3233
  %3299 = vst [vmem:[%s3284 + $0x38] sm:$0xf] %v3234
  %3300 = vst [vmem:[%s3284 + $0x3c] sm:$0xf] %v3235
  %s3301 = scalar_lea.vmem %s0, 640
  %v3302 = vld [vmem:[%s3301] sm:$0xff]
  %v3303 = vld [vmem:[%s3301 + $0x8] sm:$0xff]
  %v3304 = vld [vmem:[%s3301 + $0x10] sm:$0xff]
  %v3305 = vld [vmem:[%s3301 + $0x18] sm:$0xff]
  %v3306 = vld [vmem:[%s3301 + $0x20] sm:$0xff]
  %v3307 = vld [vmem:[%s3301 + $0x28] sm:$0xff]
  %v3308 = vld [vmem:[%s3301 + $0x30] sm:$0xff]
  %v3309 = vld [vmem:[%s3301 + $0x38] sm:$0xff]
  %v3310 = vld [vmem:[%s3301 + $0x40] sm:$0xff]
  %v3311 = vld [vmem:[%s3301 + $0x48] sm:$0xff]
  %v3312 = vld [vmem:[%s3301 + $0x50] sm:$0xff]
  %v3313 = vld [vmem:[%s3301 + $0x58] sm:$0xff]
  %v3314 = vld [vmem:[%s3301 + $0x60] sm:$0xff]
  %v3315 = vld [vmem:[%s3301 + $0x68] sm:$0xff]
  %v3316 = vld [vmem:[%s3301 + $0x70] sm:$0xff]
  %v3317 = vld [vmem:[%s3301 + $0x78] sm:$0xff]
  %v3318 = vld [vmem:[#allocation2] sm:$0xf]
  %v3319 = vld [vmem:[#allocation2 + $0x4] sm:$0xf]
  %v3320 = vld [vmem:[#allocation2 + $0x8] sm:$0xf]
  %v3321 = vld [vmem:[#allocation2 + $0xc] sm:$0xf]
  %v3322 = vld [vmem:[#allocation2 + $0x10] sm:$0xf]
  %v3323 = vld [vmem:[#allocation2 + $0x14] sm:$0xf]
  %v3324 = vld [vmem:[#allocation2 + $0x18] sm:$0xf]
  %v3325 = vld [vmem:[#allocation2 + $0x1c] sm:$0xf]
  %v3326 = vld [vmem:[#allocation2 + $0x20] sm:$0xf]
  %v3327 = vld [vmem:[#allocation2 + $0x24] sm:$0xf]
  %v3328 = vld [vmem:[#allocation2 + $0x28] sm:$0xf]
  %v3329 = vld [vmem:[#allocation2 + $0x2c] sm:$0xf]
  %v3330 = vld [vmem:[#allocation2 + $0x30] sm:$0xf]
  %v3331 = vld [vmem:[#allocation2 + $0x34] sm:$0xf]
  %v3332 = vld [vmem:[#allocation2 + $0x38] sm:$0xf]
  %v3333 = vld [vmem:[#allocation2 + $0x3c] sm:$0xf]
  %v3334 = vld [vmem:[%s3] sm:$0xf]
  %v3335 = vld [vmem:[%s3 + $0x4] sm:$0xf]
  %v3336 = vld [vmem:[%s3 + $0x8] sm:$0xf]
  %v3337 = vld [vmem:[%s3 + $0xc] sm:$0xf]
  %v3338 = vld [vmem:[%s3 + $0x10] sm:$0xf]
  %v3339 = vld [vmem:[%s3 + $0x14] sm:$0xf]
  %v3340 = vld [vmem:[%s3 + $0x18] sm:$0xf]
  %v3341 = vld [vmem:[%s3 + $0x1c] sm:$0xf]
  %v3342 = vld [vmem:[%s3 + $0x20] sm:$0xf]
  %v3343 = vld [vmem:[%s3 + $0x24] sm:$0xf]
  %v3344 = vld [vmem:[%s3 + $0x28] sm:$0xf]
  %v3345 = vld [vmem:[%s3 + $0x2c] sm:$0xf]
  %v3346 = vld [vmem:[%s3 + $0x30] sm:$0xf]
  %v3347 = vld [vmem:[%s3 + $0x34] sm:$0xf]
  %v3348 = vld [vmem:[%s3 + $0x38] sm:$0xf]
  %v3349 = vld [vmem:[%s3 + $0x3c] sm:$0xf]
  %v3366 = vunpack.c.l.b16 %v3318
  %v3367 = vunpack.c.l.b16 %v3319
  %v3368 = vunpack.c.l.b16 %v3320
  %v3369 = vunpack.c.l.b16 %v3321
  %v3370 = vunpack.c.l.b16 %v3322
  %v3371 = vunpack.c.l.b16 %v3323
  %v3372 = vunpack.c.l.b16 %v3324
  %v3373 = vunpack.c.l.b16 %v3325
  %v3374 = vunpack.c.l.b16 %v3326
  %v3375 = vunpack.c.l.b16 %v3327
  %v3376 = vunpack.c.l.b16 %v3328
  %v3377 = vunpack.c.l.b16 %v3329
  %v3378 = vunpack.c.l.b16 %v3330
  %v3379 = vunpack.c.l.b16 %v3331
  %v3380 = vunpack.c.l.b16 %v3332
  %v3381 = vunpack.c.l.b16 %v3333
  %v3382 = vpack.c.b16 %v3367, %v3366
  %v3383 = vpack.c.b16 %v3369, %v3368
  %v3384 = vpack.c.b16 %v3371, %v3370
  %v3385 = vpack.c.b16 %v3373, %v3372
  %v3386 = vpack.c.b16 %v3375, %v3374
  %v3387 = vpack.c.b16 %v3377, %v3376
  %v3388 = vpack.c.b16 %v3379, %v3378
  %v3389 = vpack.c.b16 %v3381, %v3380
  %v3414 = vunpack.c.l.b16 %v3334
  %v3415 = vunpack.c.l.b16 %v3335
  %v3416 = vunpack.c.l.b16 %v3336
  %v3417 = vunpack.c.l.b16 %v3337
  %v3418 = vunpack.c.l.b16 %v3338
  %v3419 = vunpack.c.l.b16 %v3339
  %v3420 = vunpack.c.l.b16 %v3340
  %v3421 = vunpack.c.l.b16 %v3341
  %v3422 = vunpack.c.l.b16 %v3342
  %v3423 = vunpack.c.l.b16 %v3343
  %v3424 = vunpack.c.l.b16 %v3344
  %v3425 = vunpack.c.l.b16 %v3345
  %v3426 = vunpack.c.l.b16 %v3346
  %v3427 = vunpack.c.l.b16 %v3347
  %v3428 = vunpack.c.l.b16 %v3348
  %v3429 = vunpack.c.l.b16 %v3349
  %v3430 = vpack.c.b16 %v3415, %v3414
  %v3431 = vpack.c.b16 %v3417, %v3416
  %v3432 = vpack.c.b16 %v3419, %v3418
  %v3433 = vpack.c.b16 %v3421, %v3420
  %v3434 = vpack.c.b16 %v3423, %v3422
  %v3435 = vpack.c.b16 %v3425, %v3424
  %v3436 = vpack.c.b16 %v3427, %v3426
  %v3437 = vpack.c.b16 %v3429, %v3428
  %3446 = vmatprep.subr.bf16.mxu0 0
  %3447 = vmatpush1.bf16.msra.mxu0 %v3437
  %3448 = vmatprep.subr.bf16.mxu0 0
  %3449 = vmatpush1.bf16.msra.mxu0 %v3436
  %3450 = vmatprep.subr.bf16.mxu0 0
  %3451 = vmatpush1.bf16.msra.mxu0 %v3435
  %3452 = vmatprep.subr.bf16.mxu0 0
  %3453 = vmatpush1.bf16.msra.mxu0 %v3434
  %3454 = vmatprep.subr.bf16.mxu0 0
  %3455 = vmatpush1.bf16.msra.mxu0 %v3433
  %3456 = vmatprep.subr.bf16.mxu0 0
  %3457 = vmatpush1.bf16.msra.mxu0 %v3432
  %3458 = vmatprep.subr.bf16.mxu0 0
  %3459 = vmatpush1.bf16.msra.mxu0 %v3431
  %3460 = vmatprep.subr.bf16.mxu0 0
  %3461 = vmatpush1.bf16.msra.mxu0 %v3430
  %3462 = vmatprep.subr.bf16.mxu0 0
  %3463 = vmatpush2.bf16.msra.mxu0 0
  %3464 = vmatprep.subr.bf16.mxu0 0
  %3465 = vmatpush2.bf16.msra.mxu0 0
  %3466 = vmatprep.subr.bf16.mxu0 0
  %3467 = vmatpush2.bf16.msra.mxu0 0
  %3468 = vmatprep.subr.bf16.mxu0 0
  %3469 = vmatpush2.bf16.msra.mxu0 0
  %3470 = vmatprep.subr.bf16.mxu0 0
  %3471 = vmatpush2.bf16.msra.mxu0 0
  %3472 = vmatprep.subr.bf16.mxu0 0
  %3473 = vmatpush2.bf16.msra.mxu0 0
  %3474 = vmatprep.subr.bf16.mxu0 0
  %3475 = vmatpush2.bf16.msra.mxu0 0
  %3476 = vmatprep.subr.bf16.mxu0 0
  %3477 = vmatpush2.bf16.msra.mxu0 0
  %3478 = vmatprep.mubr.bf16.mxu0 0
  %3479 = vmatmul.mubr.bf16.gmra.mxu0 %v3382
  %v3480 = vpop.f32.mrf.mxu0
  %v3481 = vadd.f32 0.0, %v3480
  %v3482 = vpop.f32.mrf.mxu0
  %v3483 = vpop.f32.mrf.mxu0
  %v3484 = vadd.f32 0.0, %v3483
  %v3485 = vpop.f32.mrf.mxu0
  %3486 = vmatprep.mubr.bf16.mxu0 0
  %3487 = vmatmul.mubr.bf16.gmra.mxu0 %v3383
  %v3488 = vpop.f32.mrf.mxu0
  %v3489 = vadd.f32 0.0, %v3488
  %v3490 = vpop.f32.mrf.mxu0
  %v3491 = vpop.f32.mrf.mxu0
  %v3492 = vadd.f32 0.0, %v3491
  %v3493 = vpop.f32.mrf.mxu0
  %3494 = vmatprep.mubr.bf16.mxu0 0
  %3495 = vmatmul.mubr.bf16.gmra.mxu0 %v3384
  %v3496 = vpop.f32.mrf.mxu0
  %v3497 = vadd.f32 0.0, %v3496
  %v3498 = vpop.f32.mrf.mxu0
  %v3499 = vpop.f32.mrf.mxu0
  %v3500 = vadd.f32 0.0, %v3499
  %v3501 = vpop.f32.mrf.mxu0
  %3502 = vmatprep.mubr.bf16.mxu0 0
  %3503 = vmatmul.mubr.bf16.gmra.mxu0 %v3385
  %v3504 = vpop.f32.mrf.mxu0
  %v3505 = vadd.f32 0.0, %v3504
  %v3506 = vpop.f32.mrf.mxu0
  %v3507 = vpop.f32.mrf.mxu0
  %v3508 = vadd.f32 0.0, %v3507
  %v3509 = vpop.f32.mrf.mxu0
  %3510 = vmatprep.mubr.bf16.mxu0 0
  %3511 = vmatmul.mubr.bf16.gmra.mxu0 %v3386
  %v3512 = vpop.f32.mrf.mxu0
  %v3513 = vadd.f32 0.0, %v3512
  %v3514 = vpop.f32.mrf.mxu0
  %v3515 = vpop.f32.mrf.mxu0
  %v3516 = vadd.f32 0.0, %v3515
  %v3517 = vpop.f32.mrf.mxu0
  %3518 = vmatprep.mubr.bf16.mxu0 0
  %3519 = vmatmul.mubr.bf16.gmra.mxu0 %v3387
  %v3520 = vpop.f32.mrf.mxu0
  %v3521 = vadd.f32 0.0, %v3520
  %v3522 = vpop.f32.mrf.mxu0
  %v3523 = vpop.f32.mrf.mxu0
  %v3524 = vadd.f32 0.0, %v3523
  %v3525 = vpop.f32.mrf.mxu0
  %3526 = vmatprep.mubr.bf16.mxu0 0
  %3527 = vmatmul.mubr.bf16.gmra.mxu0 %v3388
  %v3528 = vpop.f32.mrf.mxu0
  %v3529 = vadd.f32 0.0, %v3528
  %v3530 = vpop.f32.mrf.mxu0
  %v3531 = vpop.f32.mrf.mxu0
  %v3532 = vadd.f32 0.0, %v3531
  %v3533 = vpop.f32.mrf.mxu0
  %3534 = vmatprep.mubr.bf16.mxu0 0
  %3535 = vmatmul.mubr.bf16.gmra.mxu0 %v3389
  %v3536 = vpop.f32.mrf.mxu0
  %v3537 = vadd.f32 0.0, %v3536
  %v3538 = vpop.f32.mrf.mxu0
  %v3539 = vpop.f32.mrf.mxu0
  %v3540 = vadd.f32 0.0, %v3539
  %v3541 = vpop.f32.mrf.mxu0
  %3542 = vdwg.mxu0
  %v3543 = vadd.f32 %v3302, %v3481
  %v3544 = vadd.f32 %v3303, %v3484
  %v3545 = vadd.f32 %v3304, %v3489
  %v3546 = vadd.f32 %v3305, %v3492
  %v3547 = vadd.f32 %v3306, %v3497
  %v3548 = vadd.f32 %v3307, %v3500
  %v3549 = vadd.f32 %v3308, %v3505
  %v3550 = vadd.f32 %v3309, %v3508
  %v3551 = vadd.f32 %v3310, %v3513
  %v3552 = vadd.f32 %v3311, %v3516
  %v3553 = vadd.f32 %v3312, %v3521
  %v3554 = vadd.f32 %v3313, %v3524
  %v3555 = vadd.f32 %v3314, %v3529
  %v3556 = vadd.f32 %v3315, %v3532
  %v3557 = vadd.f32 %v3316, %v3537
  %v3558 = vadd.f32 %v3317, %v3540
  %v3559 = vmax.f32 %v3543, -20.0
  %v3560 = vmax.f32 %v3544, -20.0
  %v3561 = vmax.f32 %v3545, -20.0
  %v3562 = vmax.f32 %v3546, -20.0
  %v3563 = vmax.f32 %v3547, -20.0
  %v3564 = vmax.f32 %v3548, -20.0
  %v3565 = vmax.f32 %v3549, -20.0
  %v3566 = vmax.f32 %v3550, -20.0
  %v3567 = vmax.f32 %v3551, -20.0
  %v3568 = vmax.f32 %v3552, -20.0
  %v3569 = vmax.f32 %v3553, -20.0
  %v3570 = vmax.f32 %v3554, -20.0
  %v3571 = vmax.f32 %v3555, -20.0
  %v3572 = vmax.f32 %v3556, -20.0
  %v3573 = vmax.f32 %v3557, -20.0
  %v3574 = vmax.f32 %v3558, -20.0
  %v3575 = vmin.f32 %v3559, 20.0
  %v3576 = vmin.f32 %v3560, 20.0
  %v3577 = vmin.f32 %v3561, 20.0
  %v3578 = vmin.f32 %v3562, 20.0
  %v3579 = vmin.f32 %v3563, 20.0
  %v3580 = vmin.f32 %v3564, 20.0
  %v3581 = vmin.f32 %v3565, 20.0
  %v3582 = vmin.f32 %v3566, 20.0
  %v3583 = vmin.f32 %v3567, 20.0
  %v3584 = vmin.f32 %v3568, 20.0
  %v3585 = vmin.f32 %v3569, 20.0
  %v3586 = vmin.f32 %v3570, 20.0
  %v3587 = vmin.f32 %v3571, 20.0
  %v3588 = vmin.f32 %v3572, 20.0
  %v3589 = vmin.f32 %v3573, 20.0
  %v3590 = vmin.f32 %v3574, 20.0
  %v3591 = vsub.f32 0.0, %v3575
  %v3592 = vsub.f32 0.0, %v3576
  %v3593 = vsub.f32 0.0, %v3577
  %v3594 = vsub.f32 0.0, %v3578
  %v3595 = vsub.f32 0.0, %v3579
  %v3596 = vsub.f32 0.0, %v3580
  %v3597 = vsub.f32 0.0, %v3581
  %v3598 = vsub.f32 0.0, %v3582
  %v3599 = vsub.f32 0.0, %v3583
  %v3600 = vsub.f32 0.0, %v3584
  %v3601 = vsub.f32 0.0, %v3585
  %v3602 = vsub.f32 0.0, %v3586
  %v3603 = vsub.f32 0.0, %v3587
  %v3604 = vsub.f32 0.0, %v3588
  %v3605 = vsub.f32 0.0, %v3589
  %v3606 = vsub.f32 0.0, %v3590
  %v3607 = vmul.f32 %v3591, 1.442695
  %v3608 = vpow.pop %v3607
  %v3609 = vmul.f32 %v3592, 1.442695
  %v3610 = vpow.pop %v3609
  %v3611 = vmul.f32 %v3593, 1.442695
  %v3612 = vpow.pop %v3611
  %v3613 = vmul.f32 %v3594, 1.442695
  %v3614 = vpow.pop %v3613
  %v3615 = vmul.f32 %v3595, 1.442695
  %v3616 = vpow.pop %v3615
  %v3617 = vmul.f32 %v3596, 1.442695
  %v3618 = vpow.pop %v3617
  %v3619 = vmul.f32 %v3597, 1.442695
  %v3620 = vpow.pop %v3619
  %v3621 = vmul.f32 %v3598, 1.442695
  %v3622 = vpow.pop %v3621
  %v3623 = vmul.f32 %v3599, 1.442695
  %v3624 = vpow.pop %v3623
  %v3625 = vmul.f32 %v3600, 1.442695
  %v3626 = vpow.pop %v3625
  %v3627 = vmul.f32 %v3601, 1.442695
  %v3628 = vpow.pop %v3627
  %v3629 = vmul.f32 %v3602, 1.442695
  %v3630 = vpow.pop %v3629
  %v3631 = vmul.f32 %v3603, 1.442695
  %v3632 = vpow.pop %v3631
  %v3633 = vmul.f32 %v3604, 1.442695
  %v3634 = vpow.pop %v3633
  %v3635 = vmul.f32 %v3605, 1.442695
  %v3636 = vpow.pop %v3635
  %v3637 = vmul.f32 %v3606, 1.442695
  %v3638 = vpow.pop %v3637
  %v3639 = vadd.f32 %v3608, 1.0
  %v3640 = vadd.f32 %v3610, 1.0
  %v3641 = vadd.f32 %v3612, 1.0
  %v3642 = vadd.f32 %v3614, 1.0
  %v3643 = vadd.f32 %v3616, 1.0
  %v3644 = vadd.f32 %v3618, 1.0
  %v3645 = vadd.f32 %v3620, 1.0
  %v3646 = vadd.f32 %v3622, 1.0
  %v3647 = vadd.f32 %v3624, 1.0
  %v3648 = vadd.f32 %v3626, 1.0
  %v3649 = vadd.f32 %v3628, 1.0
  %v3650 = vadd.f32 %v3630, 1.0
  %v3651 = vadd.f32 %v3632, 1.0
  %v3652 = vadd.f32 %v3634, 1.0
  %v3653 = vadd.f32 %v3636, 1.0
  %v3654 = vadd.f32 %v3638, 1.0
  %v3655 = vrcp.pop %v3639
  %v3656 = vrcp.pop %v3640
  %v3657 = vrcp.pop %v3641
  %v3658 = vrcp.pop %v3642
  %v3659 = vrcp.pop %v3643
  %v3660 = vrcp.pop %v3644
  %v3661 = vrcp.pop %v3645
  %v3662 = vrcp.pop %v3646
  %v3663 = vrcp.pop %v3647
  %v3664 = vrcp.pop %v3648
  %v3665 = vrcp.pop %v3649
  %v3666 = vrcp.pop %v3650
  %v3667 = vrcp.pop %v3651
  %v3668 = vrcp.pop %v3652
  %v3669 = vrcp.pop %v3653
  %v3670 = vrcp.pop %v3654
  %v3671 = vmul.f32 %v3608, %v3608
  %v3672 = vmul.f32 %v3610, %v3610
  %v3673 = vmul.f32 %v3612, %v3612
  %v3674 = vmul.f32 %v3614, %v3614
  %v3675 = vmul.f32 %v3616, %v3616
  %v3676 = vmul.f32 %v3618, %v3618
  %v3677 = vmul.f32 %v3620, %v3620
  %v3678 = vmul.f32 %v3622, %v3622
  %v3679 = vmul.f32 %v3624, %v3624
  %v3680 = vmul.f32 %v3626, %v3626
  %v3681 = vmul.f32 %v3628, %v3628
  %v3682 = vmul.f32 %v3630, %v3630
  %v3683 = vmul.f32 %v3632, %v3632
  %v3684 = vmul.f32 %v3634, %v3634
  %v3685 = vmul.f32 %v3636, %v3636
  %v3686 = vmul.f32 %v3638, %v3638
  %v3687 = vsub.f32 1.0, %v3671
  %v3688 = vsub.f32 1.0, %v3672
  %v3689 = vsub.f32 1.0, %v3673
  %v3690 = vsub.f32 1.0, %v3674
  %v3691 = vsub.f32 1.0, %v3675
  %v3692 = vsub.f32 1.0, %v3676
  %v3693 = vsub.f32 1.0, %v3677
  %v3694 = vsub.f32 1.0, %v3678
  %v3695 = vsub.f32 1.0, %v3679
  %v3696 = vsub.f32 1.0, %v3680
  %v3697 = vsub.f32 1.0, %v3681
  %v3698 = vsub.f32 1.0, %v3682
  %v3699 = vsub.f32 1.0, %v3683
  %v3700 = vsub.f32 1.0, %v3684
  %v3701 = vsub.f32 1.0, %v3685
  %v3702 = vsub.f32 1.0, %v3686
  %v3703 = vadd.f32 %v3671, 1.0
  %v3704 = vadd.f32 %v3672, 1.0
  %v3705 = vadd.f32 %v3673, 1.0
  %v3706 = vadd.f32 %v3674, 1.0
  %v3707 = vadd.f32 %v3675, 1.0
  %v3708 = vadd.f32 %v3676, 1.0
  %v3709 = vadd.f32 %v3677, 1.0
  %v3710 = vadd.f32 %v3678, 1.0
  %v3711 = vadd.f32 %v3679, 1.0
  %v3712 = vadd.f32 %v3680, 1.0
  %v3713 = vadd.f32 %v3681, 1.0
  %v3714 = vadd.f32 %v3682, 1.0
  %v3715 = vadd.f32 %v3683, 1.0
  %v3716 = vadd.f32 %v3684, 1.0
  %v3717 = vadd.f32 %v3685, 1.0
  %v3718 = vadd.f32 %v3686, 1.0
  %v3719 = vrcp.pop %v3703
  %v3720 = vrcp.pop %v3704
  %v3721 = vrcp.pop %v3705
  %v3722 = vrcp.pop %v3706
  %v3723 = vrcp.pop %v3707
  %v3724 = vrcp.pop %v3708
  %v3725 = vrcp.pop %v3709
  %v3726 = vrcp.pop %v3710
  %v3727 = vrcp.pop %v3711
  %v3728 = vrcp.pop %v3712
  %v3729 = vrcp.pop %v3713
  %v3730 = vrcp.pop %v3714
  %v3731 = vrcp.pop %v3715
  %v3732 = vrcp.pop %v3716
  %v3733 = vrcp.pop %v3717
  %v3734 = vrcp.pop %v3718
  %v3735 = vmul.f32 %v3687, %v3719
  %v3736 = vmul.f32 %v3688, %v3720
  %v3737 = vmul.f32 %v3689, %v3721
  %v3738 = vmul.f32 %v3690, %v3722
  %v3739 = vmul.f32 %v3691, %v3723
  %v3740 = vmul.f32 %v3692, %v3724
  %v3741 = vmul.f32 %v3693, %v3725
  %v3742 = vmul.f32 %v3694, %v3726
  %v3743 = vmul.f32 %v3695, %v3727
  %v3744 = vmul.f32 %v3696, %v3728
  %v3745 = vmul.f32 %v3697, %v3729
  %v3746 = vmul.f32 %v3698, %v3730
  %v3747 = vmul.f32 %v3699, %v3731
  %v3748 = vmul.f32 %v3700, %v3732
  %v3749 = vmul.f32 %v3701, %v3733
  %v3750 = vmul.f32 %v3702, %v3734
  %v3751 = vld [vmem:[%s5] sm:$0xff]
  %v3752 = vld [vmem:[%s5 + $0x8] sm:$0xff]
  %v3753 = vld [vmem:[%s5 + $0x10] sm:$0xff]
  %v3754 = vld [vmem:[%s5 + $0x18] sm:$0xff]
  %v3755 = vld [vmem:[%s5 + $0x20] sm:$0xff]
  %v3756 = vld [vmem:[%s5 + $0x28] sm:$0xff]
  %v3757 = vld [vmem:[%s5 + $0x30] sm:$0xff]
  %v3758 = vld [vmem:[%s5 + $0x38] sm:$0xff]
  %v3759 = vld [vmem:[%s5 + $0x40] sm:$0xff]
  %v3760 = vld [vmem:[%s5 + $0x48] sm:$0xff]
  %v3761 = vld [vmem:[%s5 + $0x50] sm:$0xff]
  %v3762 = vld [vmem:[%s5 + $0x58] sm:$0xff]
  %v3763 = vld [vmem:[%s5 + $0x60] sm:$0xff]
  %v3764 = vld [vmem:[%s5 + $0x68] sm:$0xff]
  %v3765 = vld [vmem:[%s5 + $0x70] sm:$0xff]
  %v3766 = vld [vmem:[%s5 + $0x78] sm:$0xff]
  %v3767 = vadd.f32 %v3751, %v3735
  %v3768 = vadd.f32 %v3752, %v3736
  %v3769 = vadd.f32 %v3753, %v3737
  %v3770 = vadd.f32 %v3754, %v3738
  %v3771 = vadd.f32 %v3755, %v3739
  %v3772 = vadd.f32 %v3756, %v3740
  %v3773 = vadd.f32 %v3757, %v3741
  %v3774 = vadd.f32 %v3758, %v3742
  %v3775 = vadd.f32 %v3759, %v3743
  %v3776 = vadd.f32 %v3760, %v3744
  %v3777 = vadd.f32 %v3761, %v3745
  %v3778 = vadd.f32 %v3762, %v3746
  %v3779 = vadd.f32 %v3763, %v3747
  %v3780 = vadd.f32 %v3764, %v3748
  %v3781 = vadd.f32 %v3765, %v3749
  %v3782 = vadd.f32 %v3766, %v3750
  %v3783 = vmul.f32 %v3655, %v3767
  %v3784 = vmul.f32 %v3656, %v3768
  %v3785 = vmul.f32 %v3657, %v3769
  %v3786 = vmul.f32 %v3658, %v3770
  %v3787 = vmul.f32 %v3659, %v3771
  %v3788 = vmul.f32 %v3660, %v3772
  %v3789 = vmul.f32 %v3661, %v3773
  %v3790 = vmul.f32 %v3662, %v3774
  %v3791 = vmul.f32 %v3663, %v3775
  %v3792 = vmul.f32 %v3664, %v3776
  %v3793 = vmul.f32 %v3665, %v3777
  %v3794 = vmul.f32 %v3666, %v3778
  %v3795 = vmul.f32 %v3667, %v3779
  %v3796 = vmul.f32 %v3668, %v3780
  %v3797 = vmul.f32 %v3669, %v3781
  %v3798 = vmul.f32 %v3670, %v3782
  %v3799 = vtanh.pop %v3783
  %v3800 = vtanh.pop %v3784
  %v3801 = vtanh.pop %v3785
  %v3802 = vtanh.pop %v3786
  %v3803 = vtanh.pop %v3787
  %v3804 = vtanh.pop %v3788
  %v3805 = vtanh.pop %v3789
  %v3806 = vtanh.pop %v3790
  %v3807 = vtanh.pop %v3791
  %v3808 = vtanh.pop %v3792
  %v3809 = vtanh.pop %v3793
  %v3810 = vtanh.pop %v3794
  %v3811 = vtanh.pop %v3795
  %v3812 = vtanh.pop %v3796
  %v3813 = vtanh.pop %v3797
  %v3814 = vtanh.pop %v3798
  %v3815 = vmul.f32 %v3655, %v3799
  %v3816 = vmul.f32 %v3656, %v3800
  %v3817 = vmul.f32 %v3657, %v3801
  %v3818 = vmul.f32 %v3658, %v3802
  %v3819 = vmul.f32 %v3659, %v3803
  %v3820 = vmul.f32 %v3660, %v3804
  %v3821 = vmul.f32 %v3661, %v3805
  %v3822 = vmul.f32 %v3662, %v3806
  %v3823 = vmul.f32 %v3663, %v3807
  %v3824 = vmul.f32 %v3664, %v3808
  %v3825 = vmul.f32 %v3665, %v3809
  %v3826 = vmul.f32 %v3666, %v3810
  %v3827 = vmul.f32 %v3667, %v3811
  %v3828 = vmul.f32 %v3668, %v3812
  %v3829 = vmul.f32 %v3669, %v3813
  %v3830 = vmul.f32 %v3670, %v3814
  %v3831 = vpack.c.bf16 %v3816, %v3815
  %v3832 = vpack.c.bf16 %v3818, %v3817
  %v3833 = vpack.c.bf16 %v3820, %v3819
  %v3834 = vpack.c.bf16 %v3822, %v3821
  %v3835 = vpack.c.bf16 %v3824, %v3823
  %v3836 = vpack.c.bf16 %v3826, %v3825
  %v3837 = vpack.c.bf16 %v3828, %v3827
  %v3838 = vpack.c.bf16 %v3830, %v3829
  %v3847 = vunpack.c.l.b16 %v3831
  %v3848 = vunpack.c.h.b16 %v3831
  %v3849 = vunpack.c.l.b16 %v3832
  %v3850 = vunpack.c.h.b16 %v3832
  %v3851 = vunpack.c.l.b16 %v3833
  %v3852 = vunpack.c.h.b16 %v3833
  %v3853 = vunpack.c.l.b16 %v3834
  %v3854 = vunpack.c.h.b16 %v3834
  %v3855 = vunpack.c.l.b16 %v3835
  %v3856 = vunpack.c.h.b16 %v3835
  %v3857 = vunpack.c.l.b16 %v3836
  %v3858 = vunpack.c.h.b16 %v3836
  %v3859 = vunpack.c.l.b16 %v3837
  %v3860 = vunpack.c.h.b16 %v3837
  %v3861 = vunpack.c.l.b16 %v3838
  %v3862 = vunpack.c.h.b16 %v3838
  %v3863 = vpack.c.b16 %v3847, %v3847
  %v3864 = vpack.c.b16 %v3848, %v3848
  %v3865 = vpack.c.b16 %v3849, %v3849
  %v3866 = vpack.c.b16 %v3850, %v3850
  %v3867 = vpack.c.b16 %v3851, %v3851
  %v3868 = vpack.c.b16 %v3852, %v3852
  %v3869 = vpack.c.b16 %v3853, %v3853
  %v3870 = vpack.c.b16 %v3854, %v3854
  %v3871 = vpack.c.b16 %v3855, %v3855
  %v3872 = vpack.c.b16 %v3856, %v3856
  %v3873 = vpack.c.b16 %v3857, %v3857
  %v3874 = vpack.c.b16 %v3858, %v3858
  %v3875 = vpack.c.b16 %v3859, %v3859
  %v3876 = vpack.c.b16 %v3860, %v3860
  %v3877 = vpack.c.b16 %v3861, %v3861
  %v3878 = vpack.c.b16 %v3862, %v3862
  %3895 = vst [vmem:[#allocation2] sm:$0xf] %v3863
  %3896 = vst [vmem:[#allocation2 + $0x4] sm:$0xf] %v3864
  %3897 = vst [vmem:[#allocation2 + $0x8] sm:$0xf] %v3865
  %3898 = vst [vmem:[#allocation2 + $0xc] sm:$0xf] %v3866
  %3899 = vst [vmem:[#allocation2 + $0x10] sm:$0xf] %v3867
  %3900 = vst [vmem:[#allocation2 + $0x14] sm:$0xf] %v3868
  %3901 = vst [vmem:[#allocation2 + $0x18] sm:$0xf] %v3869
  %3902 = vst [vmem:[#allocation2 + $0x1c] sm:$0xf] %v3870
  %3903 = vst [vmem:[#allocation2 + $0x20] sm:$0xf] %v3871
  %3904 = vst [vmem:[#allocation2 + $0x24] sm:$0xf] %v3872
  %3905 = vst [vmem:[#allocation2 + $0x28] sm:$0xf] %v3873
  %3906 = vst [vmem:[#allocation2 + $0x2c] sm:$0xf] %v3874
  %3907 = vst [vmem:[#allocation2 + $0x30] sm:$0xf] %v3875
  %3908 = vst [vmem:[#allocation2 + $0x34] sm:$0xf] %v3876
  %3909 = vst [vmem:[#allocation2 + $0x38] sm:$0xf] %v3877
  %3910 = vst [vmem:[#allocation2 + $0x3c] sm:$0xf] %v3878
  %3911 = vst [vmem:[%s5] sm:$0xff] %v3783
  %3912 = vst [vmem:[%s5 + $0x8] sm:$0xff] %v3784
  %3913 = vst [vmem:[%s5 + $0x10] sm:$0xff] %v3785
  %3914 = vst [vmem:[%s5 + $0x18] sm:$0xff] %v3786
  %3915 = vst [vmem:[%s5 + $0x20] sm:$0xff] %v3787
  %3916 = vst [vmem:[%s5 + $0x28] sm:$0xff] %v3788
  %3917 = vst [vmem:[%s5 + $0x30] sm:$0xff] %v3789
  %3918 = vst [vmem:[%s5 + $0x38] sm:$0xff] %v3790
  %3919 = vst [vmem:[%s5 + $0x40] sm:$0xff] %v3791
  %3920 = vst [vmem:[%s5 + $0x48] sm:$0xff] %v3792
  %3921 = vst [vmem:[%s5 + $0x50] sm:$0xff] %v3793
  %3922 = vst [vmem:[%s5 + $0x58] sm:$0xff] %v3794
  %3923 = vst [vmem:[%s5 + $0x60] sm:$0xff] %v3795
  %3924 = vst [vmem:[%s5 + $0x68] sm:$0xff] %v3796
  %3925 = vst [vmem:[%s5 + $0x70] sm:$0xff] %v3797
  %3926 = vst [vmem:[%s5 + $0x78] sm:$0xff] %v3798
  %s3927 = scalar_lea.vmem %s4, 320
  %3928 = vst [vmem:[%s3927] sm:$0xf] %v3863
  %3929 = vst [vmem:[%s3927 + $0x4] sm:$0xf] %v3864
  %3930 = vst [vmem:[%s3927 + $0x8] sm:$0xf] %v3865
  %3931 = vst [vmem:[%s3927 + $0xc] sm:$0xf] %v3866
  %3932 = vst [vmem:[%s3927 + $0x10] sm:$0xf] %v3867
  %3933 = vst [vmem:[%s3927 + $0x14] sm:$0xf] %v3868
  %3934 = vst [vmem:[%s3927 + $0x18] sm:$0xf] %v3869
  %3935 = vst [vmem:[%s3927 + $0x1c] sm:$0xf] %v3870
  %3936 = vst [vmem:[%s3927 + $0x20] sm:$0xf] %v3871
  %3937 = vst [vmem:[%s3927 + $0x24] sm:$0xf] %v3872
  %3938 = vst [vmem:[%s3927 + $0x28] sm:$0xf] %v3873
  %3939 = vst [vmem:[%s3927 + $0x2c] sm:$0xf] %v3874
  %3940 = vst [vmem:[%s3927 + $0x30] sm:$0xf] %v3875
  %3941 = vst [vmem:[%s3927 + $0x34] sm:$0xf] %v3876
  %3942 = vst [vmem:[%s3927 + $0x38] sm:$0xf] %v3877
  %3943 = vst [vmem:[%s3927 + $0x3c] sm:$0xf] %v3878
  %s3944 = scalar_lea.vmem %s0, 768
  %v3945 = vld [vmem:[%s3944] sm:$0xff]
  %v3946 = vld [vmem:[%s3944 + $0x8] sm:$0xff]
  %v3947 = vld [vmem:[%s3944 + $0x10] sm:$0xff]
  %v3948 = vld [vmem:[%s3944 + $0x18] sm:$0xff]
  %v3949 = vld [vmem:[%s3944 + $0x20] sm:$0xff]
  %v3950 = vld [vmem:[%s3944 + $0x28] sm:$0xff]
  %v3951 = vld [vmem:[%s3944 + $0x30] sm:$0xff]
  %v3952 = vld [vmem:[%s3944 + $0x38] sm:$0xff]
  %v3953 = vld [vmem:[%s3944 + $0x40] sm:$0xff]
  %v3954 = vld [vmem:[%s3944 + $0x48] sm:$0xff]
  %v3955 = vld [vmem:[%s3944 + $0x50] sm:$0xff]
  %v3956 = vld [vmem:[%s3944 + $0x58] sm:$0xff]
  %v3957 = vld [vmem:[%s3944 + $0x60] sm:$0xff]
  %v3958 = vld [vmem:[%s3944 + $0x68] sm:$0xff]
  %v3959 = vld [vmem:[%s3944 + $0x70] sm:$0xff]
  %v3960 = vld [vmem:[%s3944 + $0x78] sm:$0xff]
  %v3961 = vld [vmem:[#allocation2] sm:$0xf]
  %v3962 = vld [vmem:[#allocation2 + $0x4] sm:$0xf]
  %v3963 = vld [vmem:[#allocation2 + $0x8] sm:$0xf]
  %v3964 = vld [vmem:[#allocation2 + $0xc] sm:$0xf]
  %v3965 = vld [vmem:[#allocation2 + $0x10] sm:$0xf]
  %v3966 = vld [vmem:[#allocation2 + $0x14] sm:$0xf]
  %v3967 = vld [vmem:[#allocation2 + $0x18] sm:$0xf]
  %v3968 = vld [vmem:[#allocation2 + $0x1c] sm:$0xf]
  %v3969 = vld [vmem:[#allocation2 + $0x20] sm:$0xf]
  %v3970 = vld [vmem:[#allocation2 + $0x24] sm:$0xf]
  %v3971 = vld [vmem:[#allocation2 + $0x28] sm:$0xf]
  %v3972 = vld [vmem:[#allocation2 + $0x2c] sm:$0xf]
  %v3973 = vld [vmem:[#allocation2 + $0x30] sm:$0xf]
  %v3974 = vld [vmem:[#allocation2 + $0x34] sm:$0xf]
  %v3975 = vld [vmem:[#allocation2 + $0x38] sm:$0xf]
  %v3976 = vld [vmem:[#allocation2 + $0x3c] sm:$0xf]
  %v3977 = vld [vmem:[%s3] sm:$0xf]
  %v3978 = vld [vmem:[%s3 + $0x4] sm:$0xf]
  %v3979 = vld [vmem:[%s3 + $0x8] sm:$0xf]
  %v3980 = vld [vmem:[%s3 + $0xc] sm:$0xf]
  %v3981 = vld [vmem:[%s3 + $0x10] sm:$0xf]
  %v3982 = vld [vmem:[%s3 + $0x14] sm:$0xf]
  %v3983 = vld [vmem:[%s3 + $0x18] sm:$0xf]
  %v3984 = vld [vmem:[%s3 + $0x1c] sm:$0xf]
  %v3985 = vld [vmem:[%s3 + $0x20] sm:$0xf]
  %v3986 = vld [vmem:[%s3 + $0x24] sm:$0xf]
  %v3987 = vld [vmem:[%s3 + $0x28] sm:$0xf]
  %v3988 = vld [vmem:[%s3 + $0x2c] sm:$0xf]
  %v3989 = vld [vmem:[%s3 + $0x30] sm:$0xf]
  %v3990 = vld [vmem:[%s3 + $0x34] sm:$0xf]
  %v3991 = vld [vmem:[%s3 + $0x38] sm:$0xf]
  %v3992 = vld [vmem:[%s3 + $0x3c] sm:$0xf]
  %v4009 = vunpack.c.l.b16 %v3961
  %v4010 = vunpack.c.l.b16 %v3962
  %v4011 = vunpack.c.l.b16 %v3963
  %v4012 = vunpack.c.l.b16 %v3964
  %v4013 = vunpack.c.l.b16 %v3965
  %v4014 = vunpack.c.l.b16 %v3966
  %v4015 = vunpack.c.l.b16 %v3967
  %v4016 = vunpack.c.l.b16 %v3968
  %v4017 = vunpack.c.l.b16 %v3969
  %v4018 = vunpack.c.l.b16 %v3970
  %v4019 = vunpack.c.l.b16 %v3971
  %v4020 = vunpack.c.l.b16 %v3972
  %v4021 = vunpack.c.l.b16 %v3973
  %v4022 = vunpack.c.l.b16 %v3974
  %v4023 = vunpack.c.l.b16 %v3975
  %v4024 = vunpack.c.l.b16 %v3976
  %v4025 = vpack.c.b16 %v4010, %v4009
  %v4026 = vpack.c.b16 %v4012, %v4011
  %v4027 = vpack.c.b16 %v4014, %v4013
  %v4028 = vpack.c.b16 %v4016, %v4015
  %v4029 = vpack.c.b16 %v4018, %v4017
  %v4030 = vpack.c.b16 %v4020, %v4019
  %v4031 = vpack.c.b16 %v4022, %v4021
  %v4032 = vpack.c.b16 %v4024, %v4023
  %v4057 = vunpack.c.l.b16 %v3977
  %v4058 = vunpack.c.l.b16 %v3978
  %v4059 = vunpack.c.l.b16 %v3979
  %v4060 = vunpack.c.l.b16 %v3980
  %v4061 = vunpack.c.l.b16 %v3981
  %v4062 = vunpack.c.l.b16 %v3982
  %v4063 = vunpack.c.l.b16 %v3983
  %v4064 = vunpack.c.l.b16 %v3984
  %v4065 = vunpack.c.l.b16 %v3985
  %v4066 = vunpack.c.l.b16 %v3986
  %v4067 = vunpack.c.l.b16 %v3987
  %v4068 = vunpack.c.l.b16 %v3988
  %v4069 = vunpack.c.l.b16 %v3989
  %v4070 = vunpack.c.l.b16 %v3990
  %v4071 = vunpack.c.l.b16 %v3991
  %v4072 = vunpack.c.l.b16 %v3992
  %v4073 = vpack.c.b16 %v4058, %v4057
  %v4074 = vpack.c.b16 %v4060, %v4059
  %v4075 = vpack.c.b16 %v4062, %v4061
  %v4076 = vpack.c.b16 %v4064, %v4063
  %v4077 = vpack.c.b16 %v4066, %v4065
  %v4078 = vpack.c.b16 %v4068, %v4067
  %v4079 = vpack.c.b16 %v4070, %v4069
  %v4080 = vpack.c.b16 %v4072, %v4071
  %4089 = vmatprep.subr.bf16.mxu0 0
  %4090 = vmatpush1.bf16.msra.mxu0 %v4080
  %4091 = vmatprep.subr.bf16.mxu0 0
  %4092 = vmatpush1.bf16.msra.mxu0 %v4079
  %4093 = vmatprep.subr.bf16.mxu0 0
  %4094 = vmatpush1.bf16.msra.mxu0 %v4078
  %4095 = vmatprep.subr.bf16.mxu0 0
  %4096 = vmatpush1.bf16.msra.mxu0 %v4077
  %4097 = vmatprep.subr.bf16.mxu0 0
  %4098 = vmatpush1.bf16.msra.mxu0 %v4076
  %4099 = vmatprep.subr.bf16.mxu0 0
  %4100 = vmatpush1.bf16.msra.mxu0 %v4075
  %4101 = vmatprep.subr.bf16.mxu0 0
  %4102 = vmatpush1.bf16.msra.mxu0 %v4074
  %4103 = vmatprep.subr.bf16.mxu0 0
  %4104 = vmatpush1.bf16.msra.mxu0 %v4073
  %4105 = vmatprep.subr.bf16.mxu0 0
  %4106 = vmatpush2.bf16.msra.mxu0 0
  %4107 = vmatprep.subr.bf16.mxu0 0
  %4108 = vmatpush2.bf16.msra.mxu0 0
  %4109 = vmatprep.subr.bf16.mxu0 0
  %4110 = vmatpush2.bf16.msra.mxu0 0
  %4111 = vmatprep.subr.bf16.mxu0 0
  %4112 = vmatpush2.bf16.msra.mxu0 0
  %4113 = vmatprep.subr.bf16.mxu0 0
  %4114 = vmatpush2.bf16.msra.mxu0 0
  %4115 = vmatprep.subr.bf16.mxu0 0
  %4116 = vmatpush2.bf16.msra.mxu0 0
  %4117 = vmatprep.subr.bf16.mxu0 0
  %4118 = vmatpush2.bf16.msra.mxu0 0
  %4119 = vmatprep.subr.bf16.mxu0 0
  %4120 = vmatpush2.bf16.msra.mxu0 0
  %4121 = vmatprep.mubr.bf16.mxu0 0
  %4122 = vmatmul.mubr.bf16.gmra.mxu0 %v4025
  %v4123 = vpop.f32.mrf.mxu0
  %v4124 = vadd.f32 0.0, %v4123
  %v4125 = vpop.f32.mrf.mxu0
  %v4126 = vpop.f32.mrf.mxu0
  %v4127 = vadd.f32 0.0, %v4126
  %v4128 = vpop.f32.mrf.mxu0
  %4129 = vmatprep.mubr.bf16.mxu0 0
  %4130 = vmatmul.mubr.bf16.gmra.mxu0 %v4026
  %v4131 = vpop.f32.mrf.mxu0
  %v4132 = vadd.f32 0.0, %v4131
  %v4133 = vpop.f32.mrf.mxu0
  %v4134 = vpop.f32.mrf.mxu0
  %v4135 = vadd.f32 0.0, %v4134
  %v4136 = vpop.f32.mrf.mxu0
  %4137 = vmatprep.mubr.bf16.mxu0 0
  %4138 = vmatmul.mubr.bf16.gmra.mxu0 %v4027
  %v4139 = vpop.f32.mrf.mxu0
  %v4140 = vadd.f32 0.0, %v4139
  %v4141 = vpop.f32.mrf.mxu0
  %v4142 = vpop.f32.mrf.mxu0
  %v4143 = vadd.f32 0.0, %v4142
  %v4144 = vpop.f32.mrf.mxu0
  %4145 = vmatprep.mubr.bf16.mxu0 0
  %4146 = vmatmul.mubr.bf16.gmra.mxu0 %v4028
  %v4147 = vpop.f32.mrf.mxu0
  %v4148 = vadd.f32 0.0, %v4147
  %v4149 = vpop.f32.mrf.mxu0
  %v4150 = vpop.f32.mrf.mxu0
  %v4151 = vadd.f32 0.0, %v4150
  %v4152 = vpop.f32.mrf.mxu0
  %4153 = vmatprep.mubr.bf16.mxu0 0
  %4154 = vmatmul.mubr.bf16.gmra.mxu0 %v4029
  %v4155 = vpop.f32.mrf.mxu0
  %v4156 = vadd.f32 0.0, %v4155
  %v4157 = vpop.f32.mrf.mxu0
  %v4158 = vpop.f32.mrf.mxu0
  %v4159 = vadd.f32 0.0, %v4158
  %v4160 = vpop.f32.mrf.mxu0
  %4161 = vmatprep.mubr.bf16.mxu0 0
  %4162 = vmatmul.mubr.bf16.gmra.mxu0 %v4030
  %v4163 = vpop.f32.mrf.mxu0
  %v4164 = vadd.f32 0.0, %v4163
  %v4165 = vpop.f32.mrf.mxu0
  %v4166 = vpop.f32.mrf.mxu0
  %v4167 = vadd.f32 0.0, %v4166
  %v4168 = vpop.f32.mrf.mxu0
  %4169 = vmatprep.mubr.bf16.mxu0 0
  %4170 = vmatmul.mubr.bf16.gmra.mxu0 %v4031
  %v4171 = vpop.f32.mrf.mxu0
  %v4172 = vadd.f32 0.0, %v4171
  %v4173 = vpop.f32.mrf.mxu0
  %v4174 = vpop.f32.mrf.mxu0
  %v4175 = vadd.f32 0.0, %v4174
  %v4176 = vpop.f32.mrf.mxu0
  %4177 = vmatprep.mubr.bf16.mxu0 0
  %4178 = vmatmul.mubr.bf16.gmra.mxu0 %v4032
  %v4179 = vpop.f32.mrf.mxu0
  %v4180 = vadd.f32 0.0, %v4179
  %v4181 = vpop.f32.mrf.mxu0
  %v4182 = vpop.f32.mrf.mxu0
  %v4183 = vadd.f32 0.0, %v4182
  %v4184 = vpop.f32.mrf.mxu0
  %4185 = vdwg.mxu0
  %v4186 = vadd.f32 %v3945, %v4124
  %v4187 = vadd.f32 %v3946, %v4127
  %v4188 = vadd.f32 %v3947, %v4132
  %v4189 = vadd.f32 %v3948, %v4135
  %v4190 = vadd.f32 %v3949, %v4140
  %v4191 = vadd.f32 %v3950, %v4143
  %v4192 = vadd.f32 %v3951, %v4148
  %v4193 = vadd.f32 %v3952, %v4151
  %v4194 = vadd.f32 %v3953, %v4156
  %v4195 = vadd.f32 %v3954, %v4159
  %v4196 = vadd.f32 %v3955, %v4164
  %v4197 = vadd.f32 %v3956, %v4167
  %v4198 = vadd.f32 %v3957, %v4172
  %v4199 = vadd.f32 %v3958, %v4175
  %v4200 = vadd.f32 %v3959, %v4180
  %v4201 = vadd.f32 %v3960, %v4183
  %v4202 = vmax.f32 %v4186, -20.0
  %v4203 = vmax.f32 %v4187, -20.0
  %v4204 = vmax.f32 %v4188, -20.0
  %v4205 = vmax.f32 %v4189, -20.0
  %v4206 = vmax.f32 %v4190, -20.0
  %v4207 = vmax.f32 %v4191, -20.0
  %v4208 = vmax.f32 %v4192, -20.0
  %v4209 = vmax.f32 %v4193, -20.0
  %v4210 = vmax.f32 %v4194, -20.0
  %v4211 = vmax.f32 %v4195, -20.0
  %v4212 = vmax.f32 %v4196, -20.0
  %v4213 = vmax.f32 %v4197, -20.0
  %v4214 = vmax.f32 %v4198, -20.0
  %v4215 = vmax.f32 %v4199, -20.0
  %v4216 = vmax.f32 %v4200, -20.0
  %v4217 = vmax.f32 %v4201, -20.0
  %v4218 = vmin.f32 %v4202, 20.0
  %v4219 = vmin.f32 %v4203, 20.0
  %v4220 = vmin.f32 %v4204, 20.0
  %v4221 = vmin.f32 %v4205, 20.0
  %v4222 = vmin.f32 %v4206, 20.0
  %v4223 = vmin.f32 %v4207, 20.0
  %v4224 = vmin.f32 %v4208, 20.0
  %v4225 = vmin.f32 %v4209, 20.0
  %v4226 = vmin.f32 %v4210, 20.0
  %v4227 = vmin.f32 %v4211, 20.0
  %v4228 = vmin.f32 %v4212, 20.0
  %v4229 = vmin.f32 %v4213, 20.0
  %v4230 = vmin.f32 %v4214, 20.0
  %v4231 = vmin.f32 %v4215, 20.0
  %v4232 = vmin.f32 %v4216, 20.0
  %v4233 = vmin.f32 %v4217, 20.0
  %v4234 = vsub.f32 0.0, %v4218
  %v4235 = vsub.f32 0.0, %v4219
  %v4236 = vsub.f32 0.0, %v4220
  %v4237 = vsub.f32 0.0, %v4221
  %v4238 = vsub.f32 0.0, %v4222
  %v4239 = vsub.f32 0.0, %v4223
  %v4240 = vsub.f32 0.0, %v4224
  %v4241 = vsub.f32 0.0, %v4225
  %v4242 = vsub.f32 0.0, %v4226
  %v4243 = vsub.f32 0.0, %v4227
  %v4244 = vsub.f32 0.0, %v4228
  %v4245 = vsub.f32 0.0, %v4229
  %v4246 = vsub.f32 0.0, %v4230
  %v4247 = vsub.f32 0.0, %v4231
  %v4248 = vsub.f32 0.0, %v4232
  %v4249 = vsub.f32 0.0, %v4233
  %v4250 = vmul.f32 %v4234, 1.442695
  %v4251 = vpow.pop %v4250
  %v4252 = vmul.f32 %v4235, 1.442695
  %v4253 = vpow.pop %v4252
  %v4254 = vmul.f32 %v4236, 1.442695
  %v4255 = vpow.pop %v4254
  %v4256 = vmul.f32 %v4237, 1.442695
  %v4257 = vpow.pop %v4256
  %v4258 = vmul.f32 %v4238, 1.442695
  %v4259 = vpow.pop %v4258
  %v4260 = vmul.f32 %v4239, 1.442695
  %v4261 = vpow.pop %v4260
  %v4262 = vmul.f32 %v4240, 1.442695
  %v4263 = vpow.pop %v4262
  %v4264 = vmul.f32 %v4241, 1.442695
  %v4265 = vpow.pop %v4264
  %v4266 = vmul.f32 %v4242, 1.442695
  %v4267 = vpow.pop %v4266
  %v4268 = vmul.f32 %v4243, 1.442695
  %v4269 = vpow.pop %v4268
  %v4270 = vmul.f32 %v4244, 1.442695
  %v4271 = vpow.pop %v4270
  %v4272 = vmul.f32 %v4245, 1.442695
  %v4273 = vpow.pop %v4272
  %v4274 = vmul.f32 %v4246, 1.442695
  %v4275 = vpow.pop %v4274
  %v4276 = vmul.f32 %v4247, 1.442695
  %v4277 = vpow.pop %v4276
  %v4278 = vmul.f32 %v4248, 1.442695
  %v4279 = vpow.pop %v4278
  %v4280 = vmul.f32 %v4249, 1.442695
  %v4281 = vpow.pop %v4280
  %v4282 = vadd.f32 %v4251, 1.0
  %v4283 = vadd.f32 %v4253, 1.0
  %v4284 = vadd.f32 %v4255, 1.0
  %v4285 = vadd.f32 %v4257, 1.0
  %v4286 = vadd.f32 %v4259, 1.0
  %v4287 = vadd.f32 %v4261, 1.0
  %v4288 = vadd.f32 %v4263, 1.0
  %v4289 = vadd.f32 %v4265, 1.0
  %v4290 = vadd.f32 %v4267, 1.0
  %v4291 = vadd.f32 %v4269, 1.0
  %v4292 = vadd.f32 %v4271, 1.0
  %v4293 = vadd.f32 %v4273, 1.0
  %v4294 = vadd.f32 %v4275, 1.0
  %v4295 = vadd.f32 %v4277, 1.0
  %v4296 = vadd.f32 %v4279, 1.0
  %v4297 = vadd.f32 %v4281, 1.0
  %v4298 = vrcp.pop %v4282
  %v4299 = vrcp.pop %v4283
  %v4300 = vrcp.pop %v4284
  %v4301 = vrcp.pop %v4285
  %v4302 = vrcp.pop %v4286
  %v4303 = vrcp.pop %v4287
  %v4304 = vrcp.pop %v4288
  %v4305 = vrcp.pop %v4289
  %v4306 = vrcp.pop %v4290
  %v4307 = vrcp.pop %v4291
  %v4308 = vrcp.pop %v4292
  %v4309 = vrcp.pop %v4293
  %v4310 = vrcp.pop %v4294
  %v4311 = vrcp.pop %v4295
  %v4312 = vrcp.pop %v4296
  %v4313 = vrcp.pop %v4297
  %v4314 = vmul.f32 %v4251, %v4251
  %v4315 = vmul.f32 %v4253, %v4253
  %v4316 = vmul.f32 %v4255, %v4255
  %v4317 = vmul.f32 %v4257, %v4257
  %v4318 = vmul.f32 %v4259, %v4259
  %v4319 = vmul.f32 %v4261, %v4261
  %v4320 = vmul.f32 %v4263, %v4263
  %v4321 = vmul.f32 %v4265, %v4265
  %v4322 = vmul.f32 %v4267, %v4267
  %v4323 = vmul.f32 %v4269, %v4269
  %v4324 = vmul.f32 %v4271, %v4271
  %v4325 = vmul.f32 %v4273, %v4273
  %v4326 = vmul.f32 %v4275, %v4275
  %v4327 = vmul.f32 %v4277, %v4277
  %v4328 = vmul.f32 %v4279, %v4279
  %v4329 = vmul.f32 %v4281, %v4281
  %v4330 = vsub.f32 1.0, %v4314
  %v4331 = vsub.f32 1.0, %v4315
  %v4332 = vsub.f32 1.0, %v4316
  %v4333 = vsub.f32 1.0, %v4317
  %v4334 = vsub.f32 1.0, %v4318
  %v4335 = vsub.f32 1.0, %v4319
  %v4336 = vsub.f32 1.0, %v4320
  %v4337 = vsub.f32 1.0, %v4321
  %v4338 = vsub.f32 1.0, %v4322
  %v4339 = vsub.f32 1.0, %v4323
  %v4340 = vsub.f32 1.0, %v4324
  %v4341 = vsub.f32 1.0, %v4325
  %v4342 = vsub.f32 1.0, %v4326
  %v4343 = vsub.f32 1.0, %v4327
  %v4344 = vsub.f32 1.0, %v4328
  %v4345 = vsub.f32 1.0, %v4329
  %v4346 = vadd.f32 %v4314, 1.0
  %v4347 = vadd.f32 %v4315, 1.0
  %v4348 = vadd.f32 %v4316, 1.0
  %v4349 = vadd.f32 %v4317, 1.0
  %v4350 = vadd.f32 %v4318, 1.0
  %v4351 = vadd.f32 %v4319, 1.0
  %v4352 = vadd.f32 %v4320, 1.0
  %v4353 = vadd.f32 %v4321, 1.0
  %v4354 = vadd.f32 %v4322, 1.0
  %v4355 = vadd.f32 %v4323, 1.0
  %v4356 = vadd.f32 %v4324, 1.0
  %v4357 = vadd.f32 %v4325, 1.0
  %v4358 = vadd.f32 %v4326, 1.0
  %v4359 = vadd.f32 %v4327, 1.0
  %v4360 = vadd.f32 %v4328, 1.0
  %v4361 = vadd.f32 %v4329, 1.0
  %v4362 = vrcp.pop %v4346
  %v4363 = vrcp.pop %v4347
  %v4364 = vrcp.pop %v4348
  %v4365 = vrcp.pop %v4349
  %v4366 = vrcp.pop %v4350
  %v4367 = vrcp.pop %v4351
  %v4368 = vrcp.pop %v4352
  %v4369 = vrcp.pop %v4353
  %v4370 = vrcp.pop %v4354
  %v4371 = vrcp.pop %v4355
  %v4372 = vrcp.pop %v4356
  %v4373 = vrcp.pop %v4357
  %v4374 = vrcp.pop %v4358
  %v4375 = vrcp.pop %v4359
  %v4376 = vrcp.pop %v4360
  %v4377 = vrcp.pop %v4361
  %v4378 = vmul.f32 %v4330, %v4362
  %v4379 = vmul.f32 %v4331, %v4363
  %v4380 = vmul.f32 %v4332, %v4364
  %v4381 = vmul.f32 %v4333, %v4365
  %v4382 = vmul.f32 %v4334, %v4366
  %v4383 = vmul.f32 %v4335, %v4367
  %v4384 = vmul.f32 %v4336, %v4368
  %v4385 = vmul.f32 %v4337, %v4369
  %v4386 = vmul.f32 %v4338, %v4370
  %v4387 = vmul.f32 %v4339, %v4371
  %v4388 = vmul.f32 %v4340, %v4372
  %v4389 = vmul.f32 %v4341, %v4373
  %v4390 = vmul.f32 %v4342, %v4374
  %v4391 = vmul.f32 %v4343, %v4375
  %v4392 = vmul.f32 %v4344, %v4376
  %v4393 = vmul.f32 %v4345, %v4377
  %v4394 = vld [vmem:[%s5] sm:$0xff]
  %v4395 = vld [vmem:[%s5 + $0x8] sm:$0xff]
  %v4396 = vld [vmem:[%s5 + $0x10] sm:$0xff]
  %v4397 = vld [vmem:[%s5 + $0x18] sm:$0xff]
  %v4398 = vld [vmem:[%s5 + $0x20] sm:$0xff]
  %v4399 = vld [vmem:[%s5 + $0x28] sm:$0xff]
  %v4400 = vld [vmem:[%s5 + $0x30] sm:$0xff]
  %v4401 = vld [vmem:[%s5 + $0x38] sm:$0xff]
  %v4402 = vld [vmem:[%s5 + $0x40] sm:$0xff]
  %v4403 = vld [vmem:[%s5 + $0x48] sm:$0xff]
  %v4404 = vld [vmem:[%s5 + $0x50] sm:$0xff]
  %v4405 = vld [vmem:[%s5 + $0x58] sm:$0xff]
  %v4406 = vld [vmem:[%s5 + $0x60] sm:$0xff]
  %v4407 = vld [vmem:[%s5 + $0x68] sm:$0xff]
  %v4408 = vld [vmem:[%s5 + $0x70] sm:$0xff]
  %v4409 = vld [vmem:[%s5 + $0x78] sm:$0xff]
  %v4410 = vadd.f32 %v4394, %v4378
  %v4411 = vadd.f32 %v4395, %v4379
  %v4412 = vadd.f32 %v4396, %v4380
  %v4413 = vadd.f32 %v4397, %v4381
  %v4414 = vadd.f32 %v4398, %v4382
  %v4415 = vadd.f32 %v4399, %v4383
  %v4416 = vadd.f32 %v4400, %v4384
  %v4417 = vadd.f32 %v4401, %v4385
  %v4418 = vadd.f32 %v4402, %v4386
  %v4419 = vadd.f32 %v4403, %v4387
  %v4420 = vadd.f32 %v4404, %v4388
  %v4421 = vadd.f32 %v4405, %v4389
  %v4422 = vadd.f32 %v4406, %v4390
  %v4423 = vadd.f32 %v4407, %v4391
  %v4424 = vadd.f32 %v4408, %v4392
  %v4425 = vadd.f32 %v4409, %v4393
  %v4426 = vmul.f32 %v4298, %v4410
  %v4427 = vmul.f32 %v4299, %v4411
  %v4428 = vmul.f32 %v4300, %v4412
  %v4429 = vmul.f32 %v4301, %v4413
  %v4430 = vmul.f32 %v4302, %v4414
  %v4431 = vmul.f32 %v4303, %v4415
  %v4432 = vmul.f32 %v4304, %v4416
  %v4433 = vmul.f32 %v4305, %v4417
  %v4434 = vmul.f32 %v4306, %v4418
  %v4435 = vmul.f32 %v4307, %v4419
  %v4436 = vmul.f32 %v4308, %v4420
  %v4437 = vmul.f32 %v4309, %v4421
  %v4438 = vmul.f32 %v4310, %v4422
  %v4439 = vmul.f32 %v4311, %v4423
  %v4440 = vmul.f32 %v4312, %v4424
  %v4441 = vmul.f32 %v4313, %v4425
  %v4442 = vtanh.pop %v4426
  %v4443 = vtanh.pop %v4427
  %v4444 = vtanh.pop %v4428
  %v4445 = vtanh.pop %v4429
  %v4446 = vtanh.pop %v4430
  %v4447 = vtanh.pop %v4431
  %v4448 = vtanh.pop %v4432
  %v4449 = vtanh.pop %v4433
  %v4450 = vtanh.pop %v4434
  %v4451 = vtanh.pop %v4435
  %v4452 = vtanh.pop %v4436
  %v4453 = vtanh.pop %v4437
  %v4454 = vtanh.pop %v4438
  %v4455 = vtanh.pop %v4439
  %v4456 = vtanh.pop %v4440
  %v4457 = vtanh.pop %v4441
  %v4458 = vmul.f32 %v4298, %v4442
  %v4459 = vmul.f32 %v4299, %v4443
  %v4460 = vmul.f32 %v4300, %v4444
  %v4461 = vmul.f32 %v4301, %v4445
  %v4462 = vmul.f32 %v4302, %v4446
  %v4463 = vmul.f32 %v4303, %v4447
  %v4464 = vmul.f32 %v4304, %v4448
  %v4465 = vmul.f32 %v4305, %v4449
  %v4466 = vmul.f32 %v4306, %v4450
  %v4467 = vmul.f32 %v4307, %v4451
  %v4468 = vmul.f32 %v4308, %v4452
  %v4469 = vmul.f32 %v4309, %v4453
  %v4470 = vmul.f32 %v4310, %v4454
  %v4471 = vmul.f32 %v4311, %v4455
  %v4472 = vmul.f32 %v4312, %v4456
  %v4473 = vmul.f32 %v4313, %v4457
  %v4474 = vpack.c.bf16 %v4459, %v4458
  %v4475 = vpack.c.bf16 %v4461, %v4460
  %v4476 = vpack.c.bf16 %v4463, %v4462
  %v4477 = vpack.c.bf16 %v4465, %v4464
  %v4478 = vpack.c.bf16 %v4467, %v4466
  %v4479 = vpack.c.bf16 %v4469, %v4468
  %v4480 = vpack.c.bf16 %v4471, %v4470
  %v4481 = vpack.c.bf16 %v4473, %v4472
  %v4490 = vunpack.c.l.b16 %v4474
  %v4491 = vunpack.c.h.b16 %v4474
  %v4492 = vunpack.c.l.b16 %v4475
  %v4493 = vunpack.c.h.b16 %v4475
  %v4494 = vunpack.c.l.b16 %v4476
  %v4495 = vunpack.c.h.b16 %v4476
  %v4496 = vunpack.c.l.b16 %v4477
  %v4497 = vunpack.c.h.b16 %v4477
  %v4498 = vunpack.c.l.b16 %v4478
  %v4499 = vunpack.c.h.b16 %v4478
  %v4500 = vunpack.c.l.b16 %v4479
  %v4501 = vunpack.c.h.b16 %v4479
  %v4502 = vunpack.c.l.b16 %v4480
  %v4503 = vunpack.c.h.b16 %v4480
  %v4504 = vunpack.c.l.b16 %v4481
  %v4505 = vunpack.c.h.b16 %v4481
  %v4506 = vpack.c.b16 %v4490, %v4490
  %v4507 = vpack.c.b16 %v4491, %v4491
  %v4508 = vpack.c.b16 %v4492, %v4492
  %v4509 = vpack.c.b16 %v4493, %v4493
  %v4510 = vpack.c.b16 %v4494, %v4494
  %v4511 = vpack.c.b16 %v4495, %v4495
  %v4512 = vpack.c.b16 %v4496, %v4496
  %v4513 = vpack.c.b16 %v4497, %v4497
  %v4514 = vpack.c.b16 %v4498, %v4498
  %v4515 = vpack.c.b16 %v4499, %v4499
  %v4516 = vpack.c.b16 %v4500, %v4500
  %v4517 = vpack.c.b16 %v4501, %v4501
  %v4518 = vpack.c.b16 %v4502, %v4502
  %v4519 = vpack.c.b16 %v4503, %v4503
  %v4520 = vpack.c.b16 %v4504, %v4504
  %v4521 = vpack.c.b16 %v4505, %v4505
  %4538 = vst [vmem:[#allocation2] sm:$0xf] %v4506
  %4539 = vst [vmem:[#allocation2 + $0x4] sm:$0xf] %v4507
  %4540 = vst [vmem:[#allocation2 + $0x8] sm:$0xf] %v4508
  %4541 = vst [vmem:[#allocation2 + $0xc] sm:$0xf] %v4509
  %4542 = vst [vmem:[#allocation2 + $0x10] sm:$0xf] %v4510
  %4543 = vst [vmem:[#allocation2 + $0x14] sm:$0xf] %v4511
  %4544 = vst [vmem:[#allocation2 + $0x18] sm:$0xf] %v4512
  %4545 = vst [vmem:[#allocation2 + $0x1c] sm:$0xf] %v4513
  %4546 = vst [vmem:[#allocation2 + $0x20] sm:$0xf] %v4514
  %4547 = vst [vmem:[#allocation2 + $0x24] sm:$0xf] %v4515
  %4548 = vst [vmem:[#allocation2 + $0x28] sm:$0xf] %v4516
  %4549 = vst [vmem:[#allocation2 + $0x2c] sm:$0xf] %v4517
  %4550 = vst [vmem:[#allocation2 + $0x30] sm:$0xf] %v4518
  %4551 = vst [vmem:[#allocation2 + $0x34] sm:$0xf] %v4519
  %4552 = vst [vmem:[#allocation2 + $0x38] sm:$0xf] %v4520
  %4553 = vst [vmem:[#allocation2 + $0x3c] sm:$0xf] %v4521
  %4554 = vst [vmem:[%s5] sm:$0xff] %v4426
  %4555 = vst [vmem:[%s5 + $0x8] sm:$0xff] %v4427
  %4556 = vst [vmem:[%s5 + $0x10] sm:$0xff] %v4428
  %4557 = vst [vmem:[%s5 + $0x18] sm:$0xff] %v4429
  %4558 = vst [vmem:[%s5 + $0x20] sm:$0xff] %v4430
  %4559 = vst [vmem:[%s5 + $0x28] sm:$0xff] %v4431
  %4560 = vst [vmem:[%s5 + $0x30] sm:$0xff] %v4432
  %4561 = vst [vmem:[%s5 + $0x38] sm:$0xff] %v4433
  %4562 = vst [vmem:[%s5 + $0x40] sm:$0xff] %v4434
  %4563 = vst [vmem:[%s5 + $0x48] sm:$0xff] %v4435
  %4564 = vst [vmem:[%s5 + $0x50] sm:$0xff] %v4436
  %4565 = vst [vmem:[%s5 + $0x58] sm:$0xff] %v4437
  %4566 = vst [vmem:[%s5 + $0x60] sm:$0xff] %v4438
  %4567 = vst [vmem:[%s5 + $0x68] sm:$0xff] %v4439
  %4568 = vst [vmem:[%s5 + $0x70] sm:$0xff] %v4440
  %4569 = vst [vmem:[%s5 + $0x78] sm:$0xff] %v4441
  %s4570 = scalar_lea.vmem %s4, 384
  %4571 = vst [vmem:[%s4570] sm:$0xf] %v4506
  %4572 = vst [vmem:[%s4570 + $0x4] sm:$0xf] %v4507
  %4573 = vst [vmem:[%s4570 + $0x8] sm:$0xf] %v4508
  %4574 = vst [vmem:[%s4570 + $0xc] sm:$0xf] %v4509
  %4575 = vst [vmem:[%s4570 + $0x10] sm:$0xf] %v4510
  %4576 = vst [vmem:[%s4570 + $0x14] sm:$0xf] %v4511
  %4577 = vst [vmem:[%s4570 + $0x18] sm:$0xf] %v4512
  %4578 = vst [vmem:[%s4570 + $0x1c] sm:$0xf] %v4513
  %4579 = vst [vmem:[%s4570 + $0x20] sm:$0xf] %v4514
  %4580 = vst [vmem:[%s4570 + $0x24] sm:$0xf] %v4515
  %4581 = vst [vmem:[%s4570 + $0x28] sm:$0xf] %v4516
  %4582 = vst [vmem:[%s4570 + $0x2c] sm:$0xf] %v4517
  %4583 = vst [vmem:[%s4570 + $0x30] sm:$0xf] %v4518
  %4584 = vst [vmem:[%s4570 + $0x34] sm:$0xf] %v4519
  %4585 = vst [vmem:[%s4570 + $0x38] sm:$0xf] %v4520
  %4586 = vst [vmem:[%s4570 + $0x3c] sm:$0xf] %v4521
  %s4587 = scalar_lea.vmem %s0, 896
  %v4588 = vld [vmem:[%s4587] sm:$0xff]
  %v4589 = vld [vmem:[%s4587 + $0x8] sm:$0xff]
  %v4590 = vld [vmem:[%s4587 + $0x10] sm:$0xff]
  %v4591 = vld [vmem:[%s4587 + $0x18] sm:$0xff]
  %v4592 = vld [vmem:[%s4587 + $0x20] sm:$0xff]
  %v4593 = vld [vmem:[%s4587 + $0x28] sm:$0xff]
  %v4594 = vld [vmem:[%s4587 + $0x30] sm:$0xff]
  %v4595 = vld [vmem:[%s4587 + $0x38] sm:$0xff]
  %v4596 = vld [vmem:[%s4587 + $0x40] sm:$0xff]
  %v4597 = vld [vmem:[%s4587 + $0x48] sm:$0xff]
  %v4598 = vld [vmem:[%s4587 + $0x50] sm:$0xff]
  %v4599 = vld [vmem:[%s4587 + $0x58] sm:$0xff]
  %v4600 = vld [vmem:[%s4587 + $0x60] sm:$0xff]
  %v4601 = vld [vmem:[%s4587 + $0x68] sm:$0xff]
  %v4602 = vld [vmem:[%s4587 + $0x70] sm:$0xff]
  %v4603 = vld [vmem:[%s4587 + $0x78] sm:$0xff]
  %v4604 = vld [vmem:[#allocation2] sm:$0xf]
  %v4605 = vld [vmem:[#allocation2 + $0x4] sm:$0xf]
  %v4606 = vld [vmem:[#allocation2 + $0x8] sm:$0xf]
  %v4607 = vld [vmem:[#allocation2 + $0xc] sm:$0xf]
  %v4608 = vld [vmem:[#allocation2 + $0x10] sm:$0xf]
  %v4609 = vld [vmem:[#allocation2 + $0x14] sm:$0xf]
  %v4610 = vld [vmem:[#allocation2 + $0x18] sm:$0xf]
  %v4611 = vld [vmem:[#allocation2 + $0x1c] sm:$0xf]
  %v4612 = vld [vmem:[#allocation2 + $0x20] sm:$0xf]
  %v4613 = vld [vmem:[#allocation2 + $0x24] sm:$0xf]
  %v4614 = vld [vmem:[#allocation2 + $0x28] sm:$0xf]
  %v4615 = vld [vmem:[#allocation2 + $0x2c] sm:$0xf]
  %v4616 = vld [vmem:[#allocation2 + $0x30] sm:$0xf]
  %v4617 = vld [vmem:[#allocation2 + $0x34] sm:$0xf]
  %v4618 = vld [vmem:[#allocation2 + $0x38] sm:$0xf]
  %v4619 = vld [vmem:[#allocation2 + $0x3c] sm:$0xf]
  %v4620 = vld [vmem:[%s3] sm:$0xf]
  %v4621 = vld [vmem:[%s3 + $0x4] sm:$0xf]
  %v4622 = vld [vmem:[%s3 + $0x8] sm:$0xf]
  %v4623 = vld [vmem:[%s3 + $0xc] sm:$0xf]
  %v4624 = vld [vmem:[%s3 + $0x10] sm:$0xf]
  %v4625 = vld [vmem:[%s3 + $0x14] sm:$0xf]
  %v4626 = vld [vmem:[%s3 + $0x18] sm:$0xf]
  %v4627 = vld [vmem:[%s3 + $0x1c] sm:$0xf]
  %v4628 = vld [vmem:[%s3 + $0x20] sm:$0xf]
  %v4629 = vld [vmem:[%s3 + $0x24] sm:$0xf]
  %v4630 = vld [vmem:[%s3 + $0x28] sm:$0xf]
  %v4631 = vld [vmem:[%s3 + $0x2c] sm:$0xf]
  %v4632 = vld [vmem:[%s3 + $0x30] sm:$0xf]
  %v4633 = vld [vmem:[%s3 + $0x34] sm:$0xf]
  %v4634 = vld [vmem:[%s3 + $0x38] sm:$0xf]
  %v4635 = vld [vmem:[%s3 + $0x3c] sm:$0xf]
  %v4652 = vunpack.c.l.b16 %v4604
  %v4653 = vunpack.c.l.b16 %v4605
  %v4654 = vunpack.c.l.b16 %v4606
  %v4655 = vunpack.c.l.b16 %v4607
  %v4656 = vunpack.c.l.b16 %v4608
  %v4657 = vunpack.c.l.b16 %v4609
  %v4658 = vunpack.c.l.b16 %v4610
  %v4659 = vunpack.c.l.b16 %v4611
  %v4660 = vunpack.c.l.b16 %v4612
  %v4661 = vunpack.c.l.b16 %v4613
  %v4662 = vunpack.c.l.b16 %v4614
  %v4663 = vunpack.c.l.b16 %v4615
  %v4664 = vunpack.c.l.b16 %v4616
  %v4665 = vunpack.c.l.b16 %v4617
  %v4666 = vunpack.c.l.b16 %v4618
  %v4667 = vunpack.c.l.b16 %v4619
  %v4668 = vpack.c.b16 %v4653, %v4652
  %v4669 = vpack.c.b16 %v4655, %v4654
  %v4670 = vpack.c.b16 %v4657, %v4656
  %v4671 = vpack.c.b16 %v4659, %v4658
  %v4672 = vpack.c.b16 %v4661, %v4660
  %v4673 = vpack.c.b16 %v4663, %v4662
  %v4674 = vpack.c.b16 %v4665, %v4664
  %v4675 = vpack.c.b16 %v4667, %v4666
  %v4700 = vunpack.c.l.b16 %v4620
  %v4701 = vunpack.c.l.b16 %v4621
  %v4702 = vunpack.c.l.b16 %v4622
  %v4703 = vunpack.c.l.b16 %v4623
  %v4704 = vunpack.c.l.b16 %v4624
  %v4705 = vunpack.c.l.b16 %v4625
  %v4706 = vunpack.c.l.b16 %v4626
  %v4707 = vunpack.c.l.b16 %v4627
  %v4708 = vunpack.c.l.b16 %v4628
  %v4709 = vunpack.c.l.b16 %v4629
  %v4710 = vunpack.c.l.b16 %v4630
  %v4711 = vunpack.c.l.b16 %v4631
  %v4712 = vunpack.c.l.b16 %v4632
  %v4713 = vunpack.c.l.b16 %v4633
  %v4714 = vunpack.c.l.b16 %v4634
  %v4715 = vunpack.c.l.b16 %v4635
  %v4716 = vpack.c.b16 %v4701, %v4700
  %v4717 = vpack.c.b16 %v4703, %v4702
  %v4718 = vpack.c.b16 %v4705, %v4704
  %v4719 = vpack.c.b16 %v4707, %v4706
  %v4720 = vpack.c.b16 %v4709, %v4708
  %v4721 = vpack.c.b16 %v4711, %v4710
  %v4722 = vpack.c.b16 %v4713, %v4712
  %v4723 = vpack.c.b16 %v4715, %v4714
  %4732 = vmatprep.subr.bf16.mxu0 0
  %4733 = vmatpush1.bf16.msra.mxu0 %v4723
  %4734 = vmatprep.subr.bf16.mxu0 0
  %4735 = vmatpush1.bf16.msra.mxu0 %v4722
  %4736 = vmatprep.subr.bf16.mxu0 0
  %4737 = vmatpush1.bf16.msra.mxu0 %v4721
  %4738 = vmatprep.subr.bf16.mxu0 0
  %4739 = vmatpush1.bf16.msra.mxu0 %v4720
  %4740 = vmatprep.subr.bf16.mxu0 0
  %4741 = vmatpush1.bf16.msra.mxu0 %v4719
  %4742 = vmatprep.subr.bf16.mxu0 0
  %4743 = vmatpush1.bf16.msra.mxu0 %v4718
  %4744 = vmatprep.subr.bf16.mxu0 0
  %4745 = vmatpush1.bf16.msra.mxu0 %v4717
  %4746 = vmatprep.subr.bf16.mxu0 0
  %4747 = vmatpush1.bf16.msra.mxu0 %v4716
  %4748 = vmatprep.subr.bf16.mxu0 0
  %4749 = vmatpush2.bf16.msra.mxu0 0
  %4750 = vmatprep.subr.bf16.mxu0 0
  %4751 = vmatpush2.bf16.msra.mxu0 0
  %4752 = vmatprep.subr.bf16.mxu0 0
  %4753 = vmatpush2.bf16.msra.mxu0 0
  %4754 = vmatprep.subr.bf16.mxu0 0
  %4755 = vmatpush2.bf16.msra.mxu0 0
  %4756 = vmatprep.subr.bf16.mxu0 0
  %4757 = vmatpush2.bf16.msra.mxu0 0
  %4758 = vmatprep.subr.bf16.mxu0 0
  %4759 = vmatpush2.bf16.msra.mxu0 0
  %4760 = vmatprep.subr.bf16.mxu0 0
  %4761 = vmatpush2.bf16.msra.mxu0 0
  %4762 = vmatprep.subr.bf16.mxu0 0
  %4763 = vmatpush2.bf16.msra.mxu0 0
  %4764 = vmatprep.mubr.bf16.mxu0 0
  %4765 = vmatmul.mubr.bf16.gmra.mxu0 %v4668
  %v4766 = vpop.f32.mrf.mxu0
  %v4767 = vadd.f32 0.0, %v4766
  %v4768 = vpop.f32.mrf.mxu0
  %v4769 = vpop.f32.mrf.mxu0
  %v4770 = vadd.f32 0.0, %v4769
  %v4771 = vpop.f32.mrf.mxu0
  %4772 = vmatprep.mubr.bf16.mxu0 0
  %4773 = vmatmul.mubr.bf16.gmra.mxu0 %v4669
  %v4774 = vpop.f32.mrf.mxu0
  %v4775 = vadd.f32 0.0, %v4774
  %v4776 = vpop.f32.mrf.mxu0
  %v4777 = vpop.f32.mrf.mxu0
  %v4778 = vadd.f32 0.0, %v4777
  %v4779 = vpop.f32.mrf.mxu0
  %4780 = vmatprep.mubr.bf16.mxu0 0
  %4781 = vmatmul.mubr.bf16.gmra.mxu0 %v4670
  %v4782 = vpop.f32.mrf.mxu0
  %v4783 = vadd.f32 0.0, %v4782
  %v4784 = vpop.f32.mrf.mxu0
  %v4785 = vpop.f32.mrf.mxu0
  %v4786 = vadd.f32 0.0, %v4785
  %v4787 = vpop.f32.mrf.mxu0
  %4788 = vmatprep.mubr.bf16.mxu0 0
  %4789 = vmatmul.mubr.bf16.gmra.mxu0 %v4671
  %v4790 = vpop.f32.mrf.mxu0
  %v4791 = vadd.f32 0.0, %v4790
  %v4792 = vpop.f32.mrf.mxu0
  %v4793 = vpop.f32.mrf.mxu0
  %v4794 = vadd.f32 0.0, %v4793
  %v4795 = vpop.f32.mrf.mxu0
  %4796 = vmatprep.mubr.bf16.mxu0 0
  %4797 = vmatmul.mubr.bf16.gmra.mxu0 %v4672
  %v4798 = vpop.f32.mrf.mxu0
  %v4799 = vadd.f32 0.0, %v4798
  %v4800 = vpop.f32.mrf.mxu0
  %v4801 = vpop.f32.mrf.mxu0
  %v4802 = vadd.f32 0.0, %v4801
  %v4803 = vpop.f32.mrf.mxu0
  %4804 = vmatprep.mubr.bf16.mxu0 0
  %4805 = vmatmul.mubr.bf16.gmra.mxu0 %v4673
  %v4806 = vpop.f32.mrf.mxu0
  %v4807 = vadd.f32 0.0, %v4806
  %v4808 = vpop.f32.mrf.mxu0
  %v4809 = vpop.f32.mrf.mxu0
  %v4810 = vadd.f32 0.0, %v4809
  %v4811 = vpop.f32.mrf.mxu0
  %4812 = vmatprep.mubr.bf16.mxu0 0
  %4813 = vmatmul.mubr.bf16.gmra.mxu0 %v4674
  %v4814 = vpop.f32.mrf.mxu0
  %v4815 = vadd.f32 0.0, %v4814
  %v4816 = vpop.f32.mrf.mxu0
  %v4817 = vpop.f32.mrf.mxu0
  %v4818 = vadd.f32 0.0, %v4817
  %v4819 = vpop.f32.mrf.mxu0
  %4820 = vmatprep.mubr.bf16.mxu0 0
  %4821 = vmatmul.mubr.bf16.gmra.mxu0 %v4675
  %v4822 = vpop.f32.mrf.mxu0
  %v4823 = vadd.f32 0.0, %v4822
  %v4824 = vpop.f32.mrf.mxu0
  %v4825 = vpop.f32.mrf.mxu0
  %v4826 = vadd.f32 0.0, %v4825
  %v4827 = vpop.f32.mrf.mxu0
  %4828 = vdwg.mxu0
  %v4829 = vadd.f32 %v4588, %v4767
  %v4830 = vadd.f32 %v4589, %v4770
  %v4831 = vadd.f32 %v4590, %v4775
  %v4832 = vadd.f32 %v4591, %v4778
  %v4833 = vadd.f32 %v4592, %v4783
  %v4834 = vadd.f32 %v4593, %v4786
  %v4835 = vadd.f32 %v4594, %v4791
  %v4836 = vadd.f32 %v4595, %v4794
  %v4837 = vadd.f32 %v4596, %v4799
  %v4838 = vadd.f32 %v4597, %v4802
  %v4839 = vadd.f32 %v4598, %v4807
  %v4840 = vadd.f32 %v4599, %v4810
  %v4841 = vadd.f32 %v4600, %v4815
  %v4842 = vadd.f32 %v4601, %v4818
  %v4843 = vadd.f32 %v4602, %v4823
  %v4844 = vadd.f32 %v4603, %v4826
  %v4845 = vmax.f32 %v4829, -20.0
  %v4846 = vmax.f32 %v4830, -20.0
  %v4847 = vmax.f32 %v4831, -20.0
  %v4848 = vmax.f32 %v4832, -20.0
  %v4849 = vmax.f32 %v4833, -20.0
  %v4850 = vmax.f32 %v4834, -20.0
  %v4851 = vmax.f32 %v4835, -20.0
  %v4852 = vmax.f32 %v4836, -20.0
  %v4853 = vmax.f32 %v4837, -20.0
  %v4854 = vmax.f32 %v4838, -20.0
  %v4855 = vmax.f32 %v4839, -20.0
  %v4856 = vmax.f32 %v4840, -20.0
  %v4857 = vmax.f32 %v4841, -20.0
  %v4858 = vmax.f32 %v4842, -20.0
  %v4859 = vmax.f32 %v4843, -20.0
  %v4860 = vmax.f32 %v4844, -20.0
  %v4861 = vmin.f32 %v4845, 20.0
  %v4862 = vmin.f32 %v4846, 20.0
  %v4863 = vmin.f32 %v4847, 20.0
  %v4864 = vmin.f32 %v4848, 20.0
  %v4865 = vmin.f32 %v4849, 20.0
  %v4866 = vmin.f32 %v4850, 20.0
  %v4867 = vmin.f32 %v4851, 20.0
  %v4868 = vmin.f32 %v4852, 20.0
  %v4869 = vmin.f32 %v4853, 20.0
  %v4870 = vmin.f32 %v4854, 20.0
  %v4871 = vmin.f32 %v4855, 20.0
  %v4872 = vmin.f32 %v4856, 20.0
  %v4873 = vmin.f32 %v4857, 20.0
  %v4874 = vmin.f32 %v4858, 20.0
  %v4875 = vmin.f32 %v4859, 20.0
  %v4876 = vmin.f32 %v4860, 20.0
  %v4877 = vsub.f32 0.0, %v4861
  %v4878 = vsub.f32 0.0, %v4862
  %v4879 = vsub.f32 0.0, %v4863
  %v4880 = vsub.f32 0.0, %v4864
  %v4881 = vsub.f32 0.0, %v4865
  %v4882 = vsub.f32 0.0, %v4866
  %v4883 = vsub.f32 0.0, %v4867
  %v4884 = vsub.f32 0.0, %v4868
  %v4885 = vsub.f32 0.0, %v4869
  %v4886 = vsub.f32 0.0, %v4870
  %v4887 = vsub.f32 0.0, %v4871
  %v4888 = vsub.f32 0.0, %v4872
  %v4889 = vsub.f32 0.0, %v4873
  %v4890 = vsub.f32 0.0, %v4874
  %v4891 = vsub.f32 0.0, %v4875
  %v4892 = vsub.f32 0.0, %v4876
  %v4893 = vmul.f32 %v4877, 1.442695
  %v4894 = vpow.pop %v4893
  %v4895 = vmul.f32 %v4878, 1.442695
  %v4896 = vpow.pop %v4895
  %v4897 = vmul.f32 %v4879, 1.442695
  %v4898 = vpow.pop %v4897
  %v4899 = vmul.f32 %v4880, 1.442695
  %v4900 = vpow.pop %v4899
  %v4901 = vmul.f32 %v4881, 1.442695
  %v4902 = vpow.pop %v4901
  %v4903 = vmul.f32 %v4882, 1.442695
  %v4904 = vpow.pop %v4903
  %v4905 = vmul.f32 %v4883, 1.442695
  %v4906 = vpow.pop %v4905
  %v4907 = vmul.f32 %v4884, 1.442695
  %v4908 = vpow.pop %v4907
  %v4909 = vmul.f32 %v4885, 1.442695
  %v4910 = vpow.pop %v4909
  %v4911 = vmul.f32 %v4886, 1.442695
  %v4912 = vpow.pop %v4911
  %v4913 = vmul.f32 %v4887, 1.442695
  %v4914 = vpow.pop %v4913
  %v4915 = vmul.f32 %v4888, 1.442695
  %v4916 = vpow.pop %v4915
  %v4917 = vmul.f32 %v4889, 1.442695
  %v4918 = vpow.pop %v4917
  %v4919 = vmul.f32 %v4890, 1.442695
  %v4920 = vpow.pop %v4919
  %v4921 = vmul.f32 %v4891, 1.442695
  %v4922 = vpow.pop %v4921
  %v4923 = vmul.f32 %v4892, 1.442695
  %v4924 = vpow.pop %v4923
  %v4925 = vadd.f32 %v4894, 1.0
  %v4926 = vadd.f32 %v4896, 1.0
  %v4927 = vadd.f32 %v4898, 1.0
  %v4928 = vadd.f32 %v4900, 1.0
  %v4929 = vadd.f32 %v4902, 1.0
  %v4930 = vadd.f32 %v4904, 1.0
  %v4931 = vadd.f32 %v4906, 1.0
  %v4932 = vadd.f32 %v4908, 1.0
  %v4933 = vadd.f32 %v4910, 1.0
  %v4934 = vadd.f32 %v4912, 1.0
  %v4935 = vadd.f32 %v4914, 1.0
  %v4936 = vadd.f32 %v4916, 1.0
  %v4937 = vadd.f32 %v4918, 1.0
  %v4938 = vadd.f32 %v4920, 1.0
  %v4939 = vadd.f32 %v4922, 1.0
  %v4940 = vadd.f32 %v4924, 1.0
  %v4941 = vrcp.pop %v4925
  %v4942 = vrcp.pop %v4926
  %v4943 = vrcp.pop %v4927
  %v4944 = vrcp.pop %v4928
  %v4945 = vrcp.pop %v4929
  %v4946 = vrcp.pop %v4930
  %v4947 = vrcp.pop %v4931
  %v4948 = vrcp.pop %v4932
  %v4949 = vrcp.pop %v4933
  %v4950 = vrcp.pop %v4934
  %v4951 = vrcp.pop %v4935
  %v4952 = vrcp.pop %v4936
  %v4953 = vrcp.pop %v4937
  %v4954 = vrcp.pop %v4938
  %v4955 = vrcp.pop %v4939
  %v4956 = vrcp.pop %v4940
  %v4957 = vmul.f32 %v4894, %v4894
  %v4958 = vmul.f32 %v4896, %v4896
  %v4959 = vmul.f32 %v4898, %v4898
  %v4960 = vmul.f32 %v4900, %v4900
  %v4961 = vmul.f32 %v4902, %v4902
  %v4962 = vmul.f32 %v4904, %v4904
  %v4963 = vmul.f32 %v4906, %v4906
  %v4964 = vmul.f32 %v4908, %v4908
  %v4965 = vmul.f32 %v4910, %v4910
  %v4966 = vmul.f32 %v4912, %v4912
  %v4967 = vmul.f32 %v4914, %v4914
  %v4968 = vmul.f32 %v4916, %v4916
  %v4969 = vmul.f32 %v4918, %v4918
  %v4970 = vmul.f32 %v4920, %v4920
  %v4971 = vmul.f32 %v4922, %v4922
  %v4972 = vmul.f32 %v4924, %v4924
  %v4973 = vsub.f32 1.0, %v4957
  %v4974 = vsub.f32 1.0, %v4958
  %v4975 = vsub.f32 1.0, %v4959
  %v4976 = vsub.f32 1.0, %v4960
  %v4977 = vsub.f32 1.0, %v4961
  %v4978 = vsub.f32 1.0, %v4962
  %v4979 = vsub.f32 1.0, %v4963
  %v4980 = vsub.f32 1.0, %v4964
  %v4981 = vsub.f32 1.0, %v4965
  %v4982 = vsub.f32 1.0, %v4966
  %v4983 = vsub.f32 1.0, %v4967
  %v4984 = vsub.f32 1.0, %v4968
  %v4985 = vsub.f32 1.0, %v4969
  %v4986 = vsub.f32 1.0, %v4970
  %v4987 = vsub.f32 1.0, %v4971
  %v4988 = vsub.f32 1.0, %v4972
  %v4989 = vadd.f32 %v4957, 1.0
  %v4990 = vadd.f32 %v4958, 1.0
  %v4991 = vadd.f32 %v4959, 1.0
  %v4992 = vadd.f32 %v4960, 1.0
  %v4993 = vadd.f32 %v4961, 1.0
  %v4994 = vadd.f32 %v4962, 1.0
  %v4995 = vadd.f32 %v4963, 1.0
  %v4996 = vadd.f32 %v4964, 1.0
  %v4997 = vadd.f32 %v4965, 1.0
  %v4998 = vadd.f32 %v4966, 1.0
  %v4999 = vadd.f32 %v4967, 1.0
  %v5000 = vadd.f32 %v4968, 1.0
  %v5001 = vadd.f32 %v4969, 1.0
  %v5002 = vadd.f32 %v4970, 1.0
  %v5003 = vadd.f32 %v4971, 1.0
  %v5004 = vadd.f32 %v4972, 1.0
  %v5005 = vrcp.pop %v4989
  %v5006 = vrcp.pop %v4990
  %v5007 = vrcp.pop %v4991
  %v5008 = vrcp.pop %v4992
  %v5009 = vrcp.pop %v4993
  %v5010 = vrcp.pop %v4994
  %v5011 = vrcp.pop %v4995
  %v5012 = vrcp.pop %v4996
  %v5013 = vrcp.pop %v4997
  %v5014 = vrcp.pop %v4998
  %v5015 = vrcp.pop %v4999
  %v5016 = vrcp.pop %v5000
  %v5017 = vrcp.pop %v5001
  %v5018 = vrcp.pop %v5002
  %v5019 = vrcp.pop %v5003
  %v5020 = vrcp.pop %v5004
  %v5021 = vmul.f32 %v4973, %v5005
  %v5022 = vmul.f32 %v4974, %v5006
  %v5023 = vmul.f32 %v4975, %v5007
  %v5024 = vmul.f32 %v4976, %v5008
  %v5025 = vmul.f32 %v4977, %v5009
  %v5026 = vmul.f32 %v4978, %v5010
  %v5027 = vmul.f32 %v4979, %v5011
  %v5028 = vmul.f32 %v4980, %v5012
  %v5029 = vmul.f32 %v4981, %v5013
  %v5030 = vmul.f32 %v4982, %v5014
  %v5031 = vmul.f32 %v4983, %v5015
  %v5032 = vmul.f32 %v4984, %v5016
  %v5033 = vmul.f32 %v4985, %v5017
  %v5034 = vmul.f32 %v4986, %v5018
  %v5035 = vmul.f32 %v4987, %v5019
  %v5036 = vmul.f32 %v4988, %v5020
  %v5037 = vld [vmem:[%s5] sm:$0xff]
  %v5038 = vld [vmem:[%s5 + $0x8] sm:$0xff]
  %v5039 = vld [vmem:[%s5 + $0x10] sm:$0xff]
  %v5040 = vld [vmem:[%s5 + $0x18] sm:$0xff]
  %v5041 = vld [vmem:[%s5 + $0x20] sm:$0xff]
  %v5042 = vld [vmem:[%s5 + $0x28] sm:$0xff]
  %v5043 = vld [vmem:[%s5 + $0x30] sm:$0xff]
  %v5044 = vld [vmem:[%s5 + $0x38] sm:$0xff]
  %v5045 = vld [vmem:[%s5 + $0x40] sm:$0xff]
  %v5046 = vld [vmem:[%s5 + $0x48] sm:$0xff]
  %v5047 = vld [vmem:[%s5 + $0x50] sm:$0xff]
  %v5048 = vld [vmem:[%s5 + $0x58] sm:$0xff]
  %v5049 = vld [vmem:[%s5 + $0x60] sm:$0xff]
  %v5050 = vld [vmem:[%s5 + $0x68] sm:$0xff]
  %v5051 = vld [vmem:[%s5 + $0x70] sm:$0xff]
  %v5052 = vld [vmem:[%s5 + $0x78] sm:$0xff]
  %v5053 = vadd.f32 %v5037, %v5021
  %v5054 = vadd.f32 %v5038, %v5022
  %v5055 = vadd.f32 %v5039, %v5023
  %v5056 = vadd.f32 %v5040, %v5024
  %v5057 = vadd.f32 %v5041, %v5025
  %v5058 = vadd.f32 %v5042, %v5026
  %v5059 = vadd.f32 %v5043, %v5027
  %v5060 = vadd.f32 %v5044, %v5028
  %v5061 = vadd.f32 %v5045, %v5029
  %v5062 = vadd.f32 %v5046, %v5030
  %v5063 = vadd.f32 %v5047, %v5031
  %v5064 = vadd.f32 %v5048, %v5032
  %v5065 = vadd.f32 %v5049, %v5033
  %v5066 = vadd.f32 %v5050, %v5034
  %v5067 = vadd.f32 %v5051, %v5035
  %v5068 = vadd.f32 %v5052, %v5036
  %v5069 = vmul.f32 %v4941, %v5053
  %v5070 = vmul.f32 %v4942, %v5054
  %v5071 = vmul.f32 %v4943, %v5055
  %v5072 = vmul.f32 %v4944, %v5056
  %v5073 = vmul.f32 %v4945, %v5057
  %v5074 = vmul.f32 %v4946, %v5058
  %v5075 = vmul.f32 %v4947, %v5059
  %v5076 = vmul.f32 %v4948, %v5060
  %v5077 = vmul.f32 %v4949, %v5061
  %v5078 = vmul.f32 %v4950, %v5062
  %v5079 = vmul.f32 %v4951, %v5063
  %v5080 = vmul.f32 %v4952, %v5064
  %v5081 = vmul.f32 %v4953, %v5065
  %v5082 = vmul.f32 %v4954, %v5066
  %v5083 = vmul.f32 %v4955, %v5067
  %v5084 = vmul.f32 %v4956, %v5068
  %v5085 = vtanh.pop %v5069
  %v5086 = vtanh.pop %v5070
  %v5087 = vtanh.pop %v5071
  %v5088 = vtanh.pop %v5072
  %v5089 = vtanh.pop %v5073
  %v5090 = vtanh.pop %v5074
  %v5091 = vtanh.pop %v5075
  %v5092 = vtanh.pop %v5076
  %v5093 = vtanh.pop %v5077
  %v5094 = vtanh.pop %v5078
  %v5095 = vtanh.pop %v5079
  %v5096 = vtanh.pop %v5080
  %v5097 = vtanh.pop %v5081
  %v5098 = vtanh.pop %v5082
  %v5099 = vtanh.pop %v5083
  %v5100 = vtanh.pop %v5084
  %v5101 = vmul.f32 %v4941, %v5085
  %v5102 = vmul.f32 %v4942, %v5086
  %v5103 = vmul.f32 %v4943, %v5087
  %v5104 = vmul.f32 %v4944, %v5088
  %v5105 = vmul.f32 %v4945, %v5089
  %v5106 = vmul.f32 %v4946, %v5090
  %v5107 = vmul.f32 %v4947, %v5091
  %v5108 = vmul.f32 %v4948, %v5092
  %v5109 = vmul.f32 %v4949, %v5093
  %v5110 = vmul.f32 %v4950, %v5094
  %v5111 = vmul.f32 %v4951, %v5095
  %v5112 = vmul.f32 %v4952, %v5096
  %v5113 = vmul.f32 %v4953, %v5097
  %v5114 = vmul.f32 %v4954, %v5098
  %v5115 = vmul.f32 %v4955, %v5099
  %v5116 = vmul.f32 %v4956, %v5100
  %v5117 = vpack.c.bf16 %v5102, %v5101
  %v5118 = vpack.c.bf16 %v5104, %v5103
  %v5119 = vpack.c.bf16 %v5106, %v5105
  %v5120 = vpack.c.bf16 %v5108, %v5107
  %v5121 = vpack.c.bf16 %v5110, %v5109
  %v5122 = vpack.c.bf16 %v5112, %v5111
  %v5123 = vpack.c.bf16 %v5114, %v5113
  %v5124 = vpack.c.bf16 %v5116, %v5115
  %v5133 = vunpack.c.l.b16 %v5117
  %v5134 = vunpack.c.h.b16 %v5117
  %v5135 = vunpack.c.l.b16 %v5118
  %v5136 = vunpack.c.h.b16 %v5118
  %v5137 = vunpack.c.l.b16 %v5119
  %v5138 = vunpack.c.h.b16 %v5119
  %v5139 = vunpack.c.l.b16 %v5120
  %v5140 = vunpack.c.h.b16 %v5120
  %v5141 = vunpack.c.l.b16 %v5121
  %v5142 = vunpack.c.h.b16 %v5121
  %v5143 = vunpack.c.l.b16 %v5122
  %v5144 = vunpack.c.h.b16 %v5122
  %v5145 = vunpack.c.l.b16 %v5123
  %v5146 = vunpack.c.h.b16 %v5123
  %v5147 = vunpack.c.l.b16 %v5124
  %v5148 = vunpack.c.h.b16 %v5124
  %v5149 = vpack.c.b16 %v5133, %v5133
  %v5150 = vpack.c.b16 %v5134, %v5134
  %v5151 = vpack.c.b16 %v5135, %v5135
  %v5152 = vpack.c.b16 %v5136, %v5136
  %v5153 = vpack.c.b16 %v5137, %v5137
  %v5154 = vpack.c.b16 %v5138, %v5138
  %v5155 = vpack.c.b16 %v5139, %v5139
  %v5156 = vpack.c.b16 %v5140, %v5140
  %v5157 = vpack.c.b16 %v5141, %v5141
  %v5158 = vpack.c.b16 %v5142, %v5142
  %v5159 = vpack.c.b16 %v5143, %v5143
  %v5160 = vpack.c.b16 %v5144, %v5144
  %v5161 = vpack.c.b16 %v5145, %v5145
  %v5162 = vpack.c.b16 %v5146, %v5146
  %v5163 = vpack.c.b16 %v5147, %v5147
  %v5164 = vpack.c.b16 %v5148, %v5148
  %5181 = vst [vmem:[#allocation2] sm:$0xf] %v5149
  %5182 = vst [vmem:[#allocation2 + $0x4] sm:$0xf] %v5150
  %5183 = vst [vmem:[#allocation2 + $0x8] sm:$0xf] %v5151
  %5184 = vst [vmem:[#allocation2 + $0xc] sm:$0xf] %v5152
  %5185 = vst [vmem:[#allocation2 + $0x10] sm:$0xf] %v5153
  %5186 = vst [vmem:[#allocation2 + $0x14] sm:$0xf] %v5154
  %5187 = vst [vmem:[#allocation2 + $0x18] sm:$0xf] %v5155
  %5188 = vst [vmem:[#allocation2 + $0x1c] sm:$0xf] %v5156
  %5189 = vst [vmem:[#allocation2 + $0x20] sm:$0xf] %v5157
  %5190 = vst [vmem:[#allocation2 + $0x24] sm:$0xf] %v5158
  %5191 = vst [vmem:[#allocation2 + $0x28] sm:$0xf] %v5159
  %5192 = vst [vmem:[#allocation2 + $0x2c] sm:$0xf] %v5160
  %5193 = vst [vmem:[#allocation2 + $0x30] sm:$0xf] %v5161
  %5194 = vst [vmem:[#allocation2 + $0x34] sm:$0xf] %v5162
  %5195 = vst [vmem:[#allocation2 + $0x38] sm:$0xf] %v5163
  %5196 = vst [vmem:[#allocation2 + $0x3c] sm:$0xf] %v5164
  %5197 = vst [vmem:[%s5] sm:$0xff] %v5069
  %5198 = vst [vmem:[%s5 + $0x8] sm:$0xff] %v5070
  %5199 = vst [vmem:[%s5 + $0x10] sm:$0xff] %v5071
  %5200 = vst [vmem:[%s5 + $0x18] sm:$0xff] %v5072
  %5201 = vst [vmem:[%s5 + $0x20] sm:$0xff] %v5073
  %5202 = vst [vmem:[%s5 + $0x28] sm:$0xff] %v5074
  %5203 = vst [vmem:[%s5 + $0x30] sm:$0xff] %v5075
  %5204 = vst [vmem:[%s5 + $0x38] sm:$0xff] %v5076
  %5205 = vst [vmem:[%s5 + $0x40] sm:$0xff] %v5077
  %5206 = vst [vmem:[%s5 + $0x48] sm:$0xff] %v5078
  %5207 = vst [vmem:[%s5 + $0x50] sm:$0xff] %v5079
  %5208 = vst [vmem:[%s5 + $0x58] sm:$0xff] %v5080
  %5209 = vst [vmem:[%s5 + $0x60] sm:$0xff] %v5081
  %5210 = vst [vmem:[%s5 + $0x68] sm:$0xff] %v5082
  %5211 = vst [vmem:[%s5 + $0x70] sm:$0xff] %v5083
  %5212 = vst [vmem:[%s5 + $0x78] sm:$0xff] %v5084
  %s5213 = scalar_lea.vmem %s4, 448
  %5214 = vst [vmem:[%s5213] sm:$0xf] %v5149
  %5215 = vst [vmem:[%s5213 + $0x4] sm:$0xf] %v5150
  %5216 = vst [vmem:[%s5213 + $0x8] sm:$0xf] %v5151
  %5217 = vst [vmem:[%s5213 + $0xc] sm:$0xf] %v5152
  %5218 = vst [vmem:[%s5213 + $0x10] sm:$0xf] %v5153
  %5219 = vst [vmem:[%s5213 + $0x14] sm:$0xf] %v5154
  %5220 = vst [vmem:[%s5213 + $0x18] sm:$0xf] %v5155
  %5221 = vst [vmem:[%s5213 + $0x1c] sm:$0xf] %v5156
  %5222 = vst [vmem:[%s5213 + $0x20] sm:$0xf] %v5157
  %5223 = vst [vmem:[%s5213 + $0x24] sm:$0xf] %v5158
  %5224 = vst [vmem:[%s5213 + $0x28] sm:$0xf] %v5159
  %5225 = vst [vmem:[%s5213 + $0x2c] sm:$0xf] %v5160
  %5226 = vst [vmem:[%s5213 + $0x30] sm:$0xf] %v5161
  %5227 = vst [vmem:[%s5213 + $0x34] sm:$0xf] %v5162
  %5228 = vst [vmem:[%s5213 + $0x38] sm:$0xf] %v5163
  %5229 = vst [vmem:[%s5213 + $0x3c] sm:$0xf] %v5164
  // Predicated region
  $region22: #{lstm_sequence.1} parent=0 // pred_check
    _
  $region23: #{lstm_sequence.1} parent=0 // pred_check_branch
    %5231 = sbr.rel (0) target = $region25
  $region24: #{lstm_sequence.1} parent=0 // pred_region
    _
  $region25: #{lstm_sequence.1} parent=0 // pred_fallthru
    _
  // Predicated region
  $region26: #{lstm_sequence.1} parent=0 // pred_check
    _
  $region27: #{lstm_sequence.1} parent=0 // pred_check_branch
    %5233 = sbr.rel (0) target = $region29
  $region28: #{lstm_sequence.1} parent=0 // pred_region
    _
  $region29: #{lstm_sequence.1} parent=0 // pred_fallthru
    _
  // Predicated region
  $region30: #{lstm_sequence.1} parent=0 // pred_check
    _
  $region31: #{lstm_sequence.1} parent=0 // pred_check_branch
    %5235 = sbr.rel (0) target = $region33
  $region32: #{lstm_sequence.1} parent=0 // pred_region
    _
  $region33: #{lstm_sequence.1} parent=0 // pred_fallthru
    _
  // Predicated region
  $region34: #{lstm_sequence.1} parent=0 // pred_check
    _
  $region35: #{lstm_sequence.1} parent=0 // pred_check_branch
    %5237 = sbr.rel (0) target = $region37
  $region36: #{lstm_sequence.1} parent=0 // pred_region
    _
  $region37: #{lstm_sequence.1} parent=0 // pred_fallthru
    _

</llo_original>
